<compile_context>
chip_gen: v7x
topology: tpu7x:2x2x1
jax: 0.10.0
libtpu: 0.0.40
codegen_flags: <defaults>
</compile_context>

<pallas_src>
import functools

import jax
import jax.numpy as jnp
from jax.experimental import pallas as pl
from jax.experimental.pallas import tpu as pltpu


LANE_BATCH = 4  # images packed along the lane axis per grid step (review: B=2-4)


# ---------------- fused Pallas kernel ----------------

def _make_kernel(H, W, B):
    """Fully fused autoencoder kernel; B images lane-packed per grid step."""
    H2, W2 = H // 2, W // 2

    def conv3x3_relu(x, w_ref, b_ref, mask_ref, w_img):
        # x: (Cin, M) f32, M = B*h*w, image-major lanes.
        # w_ref: (Cout, 9*Cin) tap-major packed weights; b_ref: (Cout, 1).
        # mask_ref: (9, 1, M) hoisted per-tap boundary masks (also kill any
        # cyclic-roll leakage across image boundaries in the lane-packed layout).
        _, m = x.shape
        taps = []
        for t in range(9):
            dh, dw = t // 3 - 1, t % 3 - 1
            off = dh * w_img + dw
            shifted = x if off == 0 else pltpu.roll(x, shift=(-off) % m, axis=1)
            taps.append(shifted * mask_ref[t])            # (Cin, M) * (1, M)
        stacked = jnp.concatenate(taps, axis=0)           # (9*Cin, M) im2col
        acc = jnp.dot(w_ref[...], stacked,                # single K=9*Cin matmul
                      preferred_element_type=jnp.float32)
        return jnp.maximum(acc + b_ref[...], 0.0)

    def maxpool2x2(x, sel_ref, w_img):
        # 2x2 stride-2 max pool: 3 lane rolls + max, then a block-diagonal 0/1
        # selection matmul (idle MXU) gathers each window's top-left lane.
        # For top-left lanes the +1/+W/+W+1 offsets never cross an image
        # boundary, so rolling the whole B-image slab is safe.
        m = x.shape[1]
        r1 = pltpu.roll(x, shift=m - 1, axis=1)           # x[i + 1]
        r2 = pltpu.roll(x, shift=m - w_img, axis=1)       # x[i + W]
        r3 = pltpu.roll(x, shift=m - w_img - 1, axis=1)   # x[i + W + 1]
        t = jnp.maximum(jnp.maximum(x, r1), jnp.maximum(r2, r3))
        return jnp.dot(t, sel_ref[...], preferred_element_type=jnp.float32)

    def kernel(x_ref, w1_ref, b1_ref, w2_ref, b2_ref, w3_ref, b3_ref,
               w4_ref, b4_ref, m1_ref, m2_ref, s1_ref, s2_ref,
               u1_ref, u2_ref, o_ref):
        x = x_ref[0]                                      # (8, B*HW), chans 1->8 padded
        h = conv3x3_relu(x, w1_ref, b1_ref, m1_ref, W)    # (16, B*HW)
        h = maxpool2x2(h, s1_ref, W)                      # (16, B*HW/4)
        h = conv3x3_relu(h, w2_ref, b2_ref, m2_ref, W2)   # (8,  B*HW/4) rows 4..7 = 0
        h = maxpool2x2(h, s2_ref, W2)                     # (8,  B*HW/16)
        h = jnp.dot(h, u1_ref[...],
                    preferred_element_type=jnp.float32)   # 2x nearest -> (8, B*HW/4)
        h = conv3x3_relu(h, w3_ref, b3_ref, m2_ref, W2)   # (16, B*HW/4)
        h = jnp.dot(h, u2_ref[...],
                    preferred_element_type=jnp.float32)   # 2x nearest -> (16, B*HW)
        h = conv3x3_relu(h, w4_ref, b4_ref, m1_ref, W)    # (8, B*HW); rows 1..7 = 0
        o_ref[0] = h[0:1, :]                              # lane-dense (1, B*HW) store

    return kernel


# ---------------- host-side weight packing & constants ----------------

def _pack_conv_w(w, cin_pad=None, cout_pad=None):
    # Conv weight (Cout, Cin, 3, 3) -> (Cout_pad, 9*Cin_pad), tap-major columns
    # (column index = (kh*3+kw)*Cin_pad + ci), matching the in-kernel im2col stack.
    cout, cin = w.shape[:2]
    if cin_pad is not None and cin_pad > cin:
        w = jnp.pad(w, ((0, 0), (0, cin_pad - cin), (0, 0), (0, 0)))
    if cout_pad is not None and cout_pad > cout:
        w = jnp.pad(w, ((0, cout_pad - cout), (0, 0), (0, 0), (0, 0)))
    co, ci = w.shape[:2]
    return jnp.transpose(w, (0, 2, 3, 1)).reshape(co, 9 * ci)


def _convT_to_conv_w(w):
    # ConvTranspose2d(stride=1, padding=1) == conv with spatially flipped,
    # ci/co-swapped weights.  (Cin, Cout, 3, 3) -> (Cout, Cin, 3, 3).
    return jnp.transpose(jnp.flip(w, axis=(2, 3)), (1, 0, 2, 3))


def _conv_masks(H, W, B):
    # (9, 1, B*H*W) validity masks for the 9 taps (hoisted out of the kernel).
    lane = jnp.arange(B * H * W)
    p = lane % (H * W)
    h, w = p // W, p % W
    rows = []
    for t in range(9):
        dh, dw = t // 3 - 1, t % 3 - 1
        rows.append((h + dh >= 0) & (h + dh < H) & (w + dw >= 0) & (w + dw < W))
    return jnp.stack(rows).astype(jnp.float32)[:, None, :]


def _pool_select(H, W, B):
    # Block-diag (B*H*W, B*(H/2)*(W/2)) 0/1 matrix gathering each 2x2 window's
    # top-left lane, per image.
    m = jnp.arange(H * W)
    h, w = m // W, m % W
    is_tl = (h % 2 == 0) & (w % 2 == 0)
    dst = (h // 2) * (W // 2) + (w // 2)
    s = jnp.where(is_tl[:, None],
                  jax.nn.one_hot(dst, (H // 2) * (W // 2), dtype=jnp.float32), 0.0)
    return jnp.kron(jnp.eye(B, dtype=jnp.float32), s)


def _upsample_map(H, W, B):
    # Block-diag (B*H*W, B*4*H*W) 0/1 matrix for 2x nearest upsampling, per image.
    Wo = 2 * W
    mo = jnp.arange(4 * H * W)
    src = (mo // Wo // 2) * W + (mo % Wo) // 2
    u = jax.nn.one_hot(src, H * W, dtype=jnp.float32).T
    return jnp.kron(jnp.eye(B, dtype=jnp.float32), u)


def _const_spec(a):
    n = a.ndim
    return pl.BlockSpec(a.shape, lambda i, n=n: (0,) * n)


# ---------------- forward ----------------

@functools.partial(jax.jit, static_argnames=("lane_batch",))
def autoencoder_forward(x_nchw, params, lane_batch=LANE_BATCH):
    N, Cin, H, W = x_nchw.shape
    HW = H * W
    B = max(1, min(lane_batch, N))
    G = (N + B - 1) // B
    Np = G * B
    M = B * HW

    # NCHW -> (G, 8, B*HW): pad batch to a multiple of B, channels 1 -> 8
    # (sublane multiple), pack B images along the lane axis (image-major lanes).
    x = x_nchw.reshape(N, Cin, HW)
    x = jnp.pad(x, ((0, Np - N), (0, 8 - Cin), (0, 0)))
    x = x.reshape(G, B, 8, HW).transpose(0, 2, 1, 3).reshape(G, 8, M)

    w1 = _pack_conv_w(params["w1"], cin_pad=8)                        # (16, 72)
    b1 = params["b1"].reshape(-1, 1)
    w2 = _pack_conv_w(params["w2"], cout_pad=8)                       # (8, 144)
    b2 = jnp.pad(params["b2"].reshape(-1, 1), ((0, 4), (0, 0)))
    w3 = _pack_conv_w(_convT_to_conv_w(params["wt1"]), cin_pad=8)     # (16, 72)
    b3 = params["bt1"].reshape(-1, 1)
    w4 = _pack_conv_w(_convT_to_conv_w(params["wt2"]), cout_pad=8)    # (8, 144)
    b4 = jnp.pad(params["bt2"].reshape(-1, 1), ((0, 7), (0, 0)))

    m1 = _conv_masks(H, W, B)                    # (9, 1, M)
    m2 = _conv_masks(H // 2, W // 2, B)          # (9, 1, M/4)
    s1 = _pool_select(H, W, B)                   # (M,    M/4)
    s2 = _pool_select(H // 2, W // 2, B)         # (M/4,  M/16)
    u1 = _upsample_map(H // 4, W // 4, B)        # (M/16, M/4)
    u2 = _upsample_map(H // 2, W // 2, B)        # (M/4,  M)

    out = pl.pallas_call(
        _make_kernel(H, W, B),
        out_shape=jax.ShapeDtypeStruct((G, 1, M), jnp.float32),
        grid=(G,),
        in_specs=[
            pl.BlockSpec((1, 8, M), lambda i: (i, 0, 0)),
            _const_spec(w1), _const_spec(b1),
            _const_spec(w2), _const_spec(b2),
            _const_spec(w3), _const_spec(b3),
            _const_spec(w4), _const_spec(b4),
            _const_spec(m1), _const_spec(m2),
            _const_spec(s1), _const_spec(s2),
            _const_spec(u1), _const_spec(u2),
        ],
        out_specs=pl.BlockSpec((1, 1, M), lambda i: (i, 0, 0)),
        compiler_params=pltpu.CompilerParams(
            dimension_semantics=("parallel",)),
    )(x, w1, b1, w2, b2, w3, b3, w4, b4, m1, m2, s1, s2, u1, u2)

    # (G, 1, B*HW) -> (N, 1, H, W)
    out = out.reshape(G, B, HW).reshape(Np, 1, H, W)[:N]
    return out


# ---------------- parameters ----------------

def _uniform(key, shape, fan_in):
    bound = (1.0 / fan_in) ** 0.5
    return jax.random.uniform(key, shape, jnp.float32, -bound, bound)


def make_params():
    ks = jax.random.split(jax.random.PRNGKey(42), 8)
    p = {}
    p["w1"] = _uniform(ks[0], (16, 1, 3, 3), 1 * 9)     # Conv2d(1, 16, 3, pad=1)
    p["b1"] = _uniform(ks[1], (16,), 1 * 9)
    p["w2"] = _uniform(ks[2], (4, 16, 3, 3), 16 * 9)    # Conv2d(16, 4, 3, pad=1)
    p["b2"] = _uniform(ks[3], (4,), 16 * 9)
    p["wt1"] = _uniform(ks[4], (4, 16, 3, 3), 4 * 9)    # ConvTranspose2d(4, 16, 3, pad=1)
    p["bt1"] = _uniform(ks[5], (16,), 4 * 9)
    p["wt2"] = _uniform(ks[6], (16, 1, 3, 3), 16 * 9)   # ConvTranspose2d(16, 1, 3, pad=1)
    p["bt2"] = _uniform(ks[7], (1,), 16 * 9)
    return p


# ---------------- pure-JAX reference (correctness check) ----------------

def _conv_ref(x, w, b):  # x NCHW, w (Cout, Cin, 3, 3), padding=1
    N, Cin, H, W = x.shape
    Cout = w.shape[0]
    xp = jnp.pad(x, ((0, 0), (0, 0), (1, 1), (1, 1)))
    out = jnp.zeros((N, Cout, H, W), jnp.float32)
    for kh in range(3):
        for kw in range(3):
            out = out + jnp.einsum("nchw,dc->ndhw",
                                   xp[:, :, kh:kh + H, kw:kw + W], w[:, :, kh, kw])
    return out + b[None, :, None, None]


def _convT_ref(x, w, b):  # x NCHW, w (Cin, Cout, 3, 3), stride=1, padding=1
    N, Cin, H, W = x.shape
    Cout = w.shape[1]
    out = jnp.zeros((N, Cout, H + 2, W + 2), jnp.float32)
    for kh in range(3):
        for kw in range(3):
            out = out.at[:, :, kh:kh + H, kw:kw + W].add(
                jnp.einsum("nchw,cd->ndhw", x, w[:, :, kh, kw]))
    return out[:, :, 1:1 + H, 1:1 + W] + b[None, :, None, None]


def _maxpool_ref(x):
    N, C, H, W = x.shape
    return x.reshape(N, C, H // 2, 2, W // 2, 2).max(axis=(3, 5))


def _upsample_ref(x):
    return jnp.repeat(jnp.repeat(x, 2, axis=2), 2, axis=3)


def reference_forward(x, p):
    h = jnp.maximum(_conv_ref(x, p["w1"], p["b1"]), 0.0)
    h = _maxpool_ref(h)
    h = jnp.maximum(_conv_ref(h, p["w2"], p["b2"]), 0.0)
    h = _maxpool_ref(h)
    h = _upsample_ref(h)
    h = jnp.maximum(_convT_ref(h, p["wt1"], p["bt1"]), 0.0)
    h = _upsample_ref(h)
    h = jnp.maximum(_convT_ref(h, p["wt2"], p["bt2"]), 0.0)
    return h


if __name__ == "__main__":
    # N=8 with LANE_BATCH=4 -> grid of 2 steps, each processing 4 lane-packed images.
    x = jax.random.normal(jax.random.PRNGKey(0), (8, 1, 16, 16), jnp.float32)  # NCHW
    params = make_params()

    out = jax.block_until_ready(autoencoder_forward(x, params))
    assert out.shape == (8, 1, 16, 16)

    ref = reference_forward(x, params)
    if not bool(jnp.allclose(out, ref, rtol=1e-3, atol=1e-3)):
        err = float(jnp.max(jnp.abs(out - ref)))
        raise SystemExit(f"MISMATCH: max abs err {err:e}")
    print("KERNEL_OK")
</pallas_src>

<mosaic_0001>
module attributes {stable_mosaic.version = 11 : i64} {
  func.func @kernel(%arg0: i32, %arg1: memref<1x8x1024xf32, #tpu.memory_space<vmem>>, %arg2: memref<16x72xf32, #tpu.memory_space<vmem>>, %arg3: memref<16x1xf32, #tpu.memory_space<vmem>>, %arg4: memref<8x144xf32, #tpu.memory_space<vmem>>, %arg5: memref<8x1xf32, #tpu.memory_space<vmem>>, %arg6: memref<16x72xf32, #tpu.memory_space<vmem>>, %arg7: memref<16x1xf32, #tpu.memory_space<vmem>>, %arg8: memref<8x144xf32, #tpu.memory_space<vmem>>, %arg9: memref<8x1xf32, #tpu.memory_space<vmem>>, %arg10: memref<9x1x1024xf32, #tpu.memory_space<vmem>>, %arg11: memref<9x1x256xf32, #tpu.memory_space<vmem>>, %arg12: memref<1024x256xf32, #tpu.memory_space<vmem>>, %arg13: memref<256x64xf32, #tpu.memory_space<vmem>>, %arg14: memref<64x256xf32, #tpu.memory_space<vmem>>, %arg15: memref<256x1024xf32, #tpu.memory_space<vmem>>, %arg16: memref<1x1x1024xf32, #tpu.memory_space<vmem>>) attributes {dimension_semantics = [#tpu.dimension_semantics<parallel>], iteration_bounds = array<i64: 2>, scalar_prefetch = 0 : i64, scratch_operands = 0 : i64, tpu.core_type = #tpu.core_type<tc>, window_params = [{transform_indices = @transform_0, window_bounds = array<i64: 1, 8, 1024>}, {pipeline_mode = #tpu.pipeline_mode<synchronous>, transform_indices = @transform_1, window_bounds = array<i64: 16, 72>}, {pipeline_mode = #tpu.pipeline_mode<synchronous>, transform_indices = @transform_2, window_bounds = array<i64: 16, 1>}, {pipeline_mode = #tpu.pipeline_mode<synchronous>, transform_indices = @transform_3, window_bounds = array<i64: 8, 144>}, {pipeline_mode = #tpu.pipeline_mode<synchronous>, transform_indices = @transform_4, window_bounds = array<i64: 8, 1>}, {pipeline_mode = #tpu.pipeline_mode<synchronous>, transform_indices = @transform_5, window_bounds = array<i64: 16, 72>}, {pipeline_mode = #tpu.pipeline_mode<synchronous>, transform_indices = @transform_6, window_bounds = array<i64: 16, 1>}, {pipeline_mode = #tpu.pipeline_mode<synchronous>, transform_indices = @transform_7, window_bounds = array<i64: 8, 144>}, {pipeline_mode = #tpu.pipeline_mode<synchronous>, transform_indices = @transform_8, window_bounds = array<i64: 8, 1>}, {pipeline_mode = #tpu.pipeline_mode<synchronous>, transform_indices = @transform_9, window_bounds = array<i64: 9, 1, 1024>}, {pipeline_mode = #tpu.pipeline_mode<synchronous>, transform_indices = @transform_10, window_bounds = array<i64: 9, 1, 256>}, {pipeline_mode = #tpu.pipeline_mode<synchronous>, transform_indices = @transform_11, window_bounds = array<i64: 1024, 256>}, {pipeline_mode = #tpu.pipeline_mode<synchronous>, transform_indices = @transform_12, window_bounds = array<i64: 256, 64>}, {pipeline_mode = #tpu.pipeline_mode<synchronous>, transform_indices = @transform_13, window_bounds = array<i64: 64, 256>}, {pipeline_mode = #tpu.pipeline_mode<synchronous>, transform_indices = @transform_14, window_bounds = array<i64: 256, 1024>}, {transform_indices = @transform_15, window_bounds = array<i64: 1, 1, 1024>}]} {
    %c0 = arith.constant 0 : index
    %c0_0 = arith.constant 0 : index
    %c0_1 = arith.constant 0 : index
    %0 = vector.load %arg1[%c0, %c0_0, %c0_1] : memref<1x8x1024xf32, #tpu.memory_space<vmem>>, vector<1x8x1024xf32>
    %1 = vector.shape_cast %0 : vector<1x8x1024xf32> to vector<8x1024xf32>
    %c17_i32 = arith.constant 17 : i32
    %2 = tpu.dynamic_rotate %1 by %c17_i32 dim 1 : vector<8x1024xf32>, i32 -> vector<8x1024xf32>
    %c0_2 = arith.constant 0 : index
    %c0_3 = arith.constant 0 : index
    %c0_4 = arith.constant 0 : index
    %3 = vector.load %arg10[%c0_2, %c0_3, %c0_4] : memref<9x1x1024xf32, #tpu.memory_space<vmem>>, vector<1x1x1024xf32>
    %4 = vector.shape_cast %3 : vector<1x1x1024xf32> to vector<1x1024xf32>
    %5 = vector.broadcast %4 : vector<1x1024xf32> to vector<8x1024xf32>
    %6 = arith.mulf %2, %5 : vector<8x1024xf32>
    %c16_i32 = arith.constant 16 : i32
    %7 = tpu.dynamic_rotate %1 by %c16_i32 dim 1 : vector<8x1024xf32>, i32 -> vector<8x1024xf32>
    %c1 = arith.constant 1 : index
    %c0_5 = arith.constant 0 : index
    %c0_6 = arith.constant 0 : index
    %8 = vector.load %arg10[%c1, %c0_5, %c0_6] : memref<9x1x1024xf32, #tpu.memory_space<vmem>>, vector<1x1x1024xf32>
    %9 = vector.shape_cast %8 : vector<1x1x1024xf32> to vector<1x1024xf32>
    %10 = vector.broadcast %9 : vector<1x1024xf32> to vector<8x1024xf32>
    %11 = arith.mulf %7, %10 : vector<8x1024xf32>
    %c15_i32 = arith.constant 15 : i32
    %12 = tpu.dynamic_rotate %1 by %c15_i32 dim 1 : vector<8x1024xf32>, i32 -> vector<8x1024xf32>
    %c2 = arith.constant 2 : index
    %c0_7 = arith.constant 0 : index
    %c0_8 = arith.constant 0 : index
    %13 = vector.load %arg10[%c2, %c0_7, %c0_8] : memref<9x1x1024xf32, #tpu.memory_space<vmem>>, vector<1x1x1024xf32>
    %14 = vector.shape_cast %13 : vector<1x1x1024xf32> to vector<1x1024xf32>
    %15 = vector.broadcast %14 : vector<1x1024xf32> to vector<8x1024xf32>
    %16 = arith.mulf %12, %15 : vector<8x1024xf32>
    %c1_i32 = arith.constant 1 : i32
    %17 = tpu.dynamic_rotate %1 by %c1_i32 dim 1 : vector<8x1024xf32>, i32 -> vector<8x1024xf32>
    %c3 = arith.constant 3 : index
    %c0_9 = arith.constant 0 : index
    %c0_10 = arith.constant 0 : index
    %18 = vector.load %arg10[%c3, %c0_9, %c0_10] : memref<9x1x1024xf32, #tpu.memory_space<vmem>>, vector<1x1x1024xf32>
    %19 = vector.shape_cast %18 : vector<1x1x1024xf32> to vector<1x1024xf32>
    %20 = vector.broadcast %19 : vector<1x1024xf32> to vector<8x1024xf32>
    %21 = arith.mulf %17, %20 : vector<8x1024xf32>
    %c4 = arith.constant 4 : index
    %c0_11 = arith.constant 0 : index
    %c0_12 = arith.constant 0 : index
    %22 = vector.load %arg10[%c4, %c0_11, %c0_12] : memref<9x1x1024xf32, #tpu.memory_space<vmem>>, vector<1x1x1024xf32>
    %23 = vector.shape_cast %22 : vector<1x1x1024xf32> to vector<1x1024xf32>
    %24 = vector.broadcast %23 : vector<1x1024xf32> to vector<8x1024xf32>
    %25 = arith.mulf %1, %24 : vector<8x1024xf32>
    %c1023_i32 = arith.constant 1023 : i32
    %26 = tpu.dynamic_rotate %1 by %c1023_i32 dim 1 : vector<8x1024xf32>, i32 -> vector<8x1024xf32>
    %c5 = arith.constant 5 : index
    %c0_13 = arith.constant 0 : index
    %c0_14 = arith.constant 0 : index
    %27 = vector.load %arg10[%c5, %c0_13, %c0_14] : memref<9x1x1024xf32, #tpu.memory_space<vmem>>, vector<1x1x1024xf32>
    %28 = vector.shape_cast %27 : vector<1x1x1024xf32> to vector<1x1024xf32>
    %29 = vector.broadcast %28 : vector<1x1024xf32> to vector<8x1024xf32>
    %30 = arith.mulf %26, %29 : vector<8x1024xf32>
    %c1009_i32 = arith.constant 1009 : i32
    %31 = tpu.dynamic_rotate %1 by %c1009_i32 dim 1 : vector<8x1024xf32>, i32 -> vector<8x1024xf32>
    %c6 = arith.constant 6 : index
    %c0_15 = arith.constant 0 : index
    %c0_16 = arith.constant 0 : index
    %32 = vector.load %arg10[%c6, %c0_15, %c0_16] : memref<9x1x1024xf32, #tpu.memory_space<vmem>>, vector<1x1x1024xf32>
    %33 = vector.shape_cast %32 : vector<1x1x1024xf32> to vector<1x1024xf32>
    %34 = vector.broadcast %33 : vector<1x1024xf32> to vector<8x1024xf32>
    %35 = arith.mulf %31, %34 : vector<8x1024xf32>
    %c1008_i32 = arith.constant 1008 : i32
    %36 = tpu.dynamic_rotate %1 by %c1008_i32 dim 1 : vector<8x1024xf32>, i32 -> vector<8x1024xf32>
    %c7 = arith.constant 7 : index
    %c0_17 = arith.constant 0 : index
    %c0_18 = arith.constant 0 : index
    %37 = vector.load %arg10[%c7, %c0_17, %c0_18] : memref<9x1x1024xf32, #tpu.memory_space<vmem>>, vector<1x1x1024xf32>
    %38 = vector.shape_cast %37 : vector<1x1x1024xf32> to vector<1x1024xf32>
    %39 = vector.broadcast %38 : vector<1x1024xf32> to vector<8x1024xf32>
    %40 = arith.mulf %36, %39 : vector<8x1024xf32>
    %c1007_i32 = arith.constant 1007 : i32
    %41 = tpu.dynamic_rotate %1 by %c1007_i32 dim 1 : vector<8x1024xf32>, i32 -> vector<8x1024xf32>
    %c8 = arith.constant 8 : index
    %c0_19 = arith.constant 0 : index
    %c0_20 = arith.constant 0 : index
    %42 = vector.load %arg10[%c8, %c0_19, %c0_20] : memref<9x1x1024xf32, #tpu.memory_space<vmem>>, vector<1x1x1024xf32>
    %43 = vector.shape_cast %42 : vector<1x1x1024xf32> to vector<1x1024xf32>
    %44 = vector.broadcast %43 : vector<1x1024xf32> to vector<8x1024xf32>
    %45 = arith.mulf %41, %44 : vector<8x1024xf32>
    %46 = tpu.concatenate %6, %11, %16, %21, %25, %30, %35, %40, %45 in 0 : vector<8x1024xf32>, vector<8x1024xf32>, vector<8x1024xf32>, vector<8x1024xf32>, vector<8x1024xf32>, vector<8x1024xf32>, vector<8x1024xf32>, vector<8x1024xf32>, vector<8x1024xf32> -> vector<72x1024xf32>
    %c0_21 = arith.constant 0 : index
    %c0_22 = arith.constant 0 : index
    %47 = vector.load %arg2[%c0_21, %c0_22] : memref<16x72xf32, #tpu.memory_space<vmem>>, vector<16x72xf32>
    %cst = arith.constant dense<0.000000e+00> : vector<16x1024xf32>
    %48 = tpu.matmul %47, %46, %cst {dimension_numbers = #tpu.dot_dimension_numbers<[1], [0], [0], [1], [0, 0, 1, 1], [], []>} : vector<16x72xf32>, vector<72x1024xf32>, vector<16x1024xf32> -> vector<16x1024xf32>
    %c0_23 = arith.constant 0 : index
    %c0_24 = arith.constant 0 : index
    %49 = vector.load %arg3[%c0_23, %c0_24] : memref<16x1xf32, #tpu.memory_space<vmem>>, vector<16x1xf32>
    %50 = vector.broadcast %49 : vector<16x1xf32> to vector<16x1024xf32>
    %51 = arith.addf %48, %50 : vector<16x1024xf32>
    %cst_25 = arith.constant 0.000000e+00 : f32
    %52 = vector.broadcast %cst_25 : f32 to vector<16x1024xf32>
    %53 = arith.maximumf %51, %52 : vector<16x1024xf32>
    %c1023_i32_26 = arith.constant 1023 : i32
    %54 = tpu.dynamic_rotate %53 by %c1023_i32_26 dim 1 : vector<16x1024xf32>, i32 -> vector<16x1024xf32>
    %c1008_i32_27 = arith.constant 1008 : i32
    %55 = tpu.dynamic_rotate %53 by %c1008_i32_27 dim 1 : vector<16x1024xf32>, i32 -> vector<16x1024xf32>
    %c1007_i32_28 = arith.constant 1007 : i32
    %56 = tpu.dynamic_rotate %53 by %c1007_i32_28 dim 1 : vector<16x1024xf32>, i32 -> vector<16x1024xf32>
    %57 = arith.maximumf %53, %54 : vector<16x1024xf32>
    %58 = arith.maximumf %55, %56 : vector<16x1024xf32>
    %59 = arith.maximumf %57, %58 : vector<16x1024xf32>
    %c0_29 = arith.constant 0 : index
    %c0_30 = arith.constant 0 : index
    %60 = vector.load %arg12[%c0_29, %c0_30] : memref<1024x256xf32, #tpu.memory_space<vmem>>, vector<1024x256xf32>
    %cst_31 = arith.constant dense<0.000000e+00> : vector<16x256xf32>
    %61 = tpu.matmul %59, %60, %cst_31 {dimension_numbers = #tpu.dot_dimension_numbers<[1], [0], [0], [1], [0, 0, 1, 1], [], []>} : vector<16x1024xf32>, vector<1024x256xf32>, vector<16x256xf32> -> vector<16x256xf32>
    %c9_i32 = arith.constant 9 : i32
    %62 = tpu.dynamic_rotate %61 by %c9_i32 dim 1 : vector<16x256xf32>, i32 -> vector<16x256xf32>
    %c0_32 = arith.constant 0 : index
    %c0_33 = arith.constant 0 : index
    %c0_34 = arith.constant 0 : index
    %63 = vector.load %arg11[%c0_32, %c0_33, %c0_34] : memref<9x1x256xf32, #tpu.memory_space<vmem>>, vector<1x1x256xf32>
    %64 = vector.shape_cast %63 : vector<1x1x256xf32> to vector<1x256xf32>
    %65 = vector.broadcast %64 : vector<1x256xf32> to vector<16x256xf32>
    %66 = arith.mulf %62, %65 : vector<16x256xf32>
    %c8_i32 = arith.constant 8 : i32
    %67 = tpu.dynamic_rotate %61 by %c8_i32 dim 1 : vector<16x256xf32>, i32 -> vector<16x256xf32>
    %c1_35 = arith.constant 1 : index
    %c0_36 = arith.constant 0 : index
    %c0_37 = arith.constant 0 : index
    %68 = vector.load %arg11[%c1_35, %c0_36, %c0_37] : memref<9x1x256xf32, #tpu.memory_space<vmem>>, vector<1x1x256xf32>
    %69 = vector.shape_cast %68 : vector<1x1x256xf32> to vector<1x256xf32>
    %70 = vector.broadcast %69 : vector<1x256xf32> to vector<16x256xf32>
    %71 = arith.mulf %67, %70 : vector<16x256xf32>
    %c7_i32 = arith.constant 7 : i32
    %72 = tpu.dynamic_rotate %61 by %c7_i32 dim 1 : vector<16x256xf32>, i32 -> vector<16x256xf32>
    %c2_38 = arith.constant 2 : index
    %c0_39 = arith.constant 0 : index
    %c0_40 = arith.constant 0 : index
    %73 = vector.load %arg11[%c2_38, %c0_39, %c0_40] : memref<9x1x256xf32, #tpu.memory_space<vmem>>, vector<1x1x256xf32>
    %74 = vector.shape_cast %73 : vector<1x1x256xf32> to vector<1x256xf32>
    %75 = vector.broadcast %74 : vector<1x256xf32> to vector<16x256xf32>
    %76 = arith.mulf %72, %75 : vector<16x256xf32>
    %c1_i32_41 = arith.constant 1 : i32
    %77 = tpu.dynamic_rotate %61 by %c1_i32_41 dim 1 : vector<16x256xf32>, i32 -> vector<16x256xf32>
    %c3_42 = arith.constant 3 : index
    %c0_43 = arith.constant 0 : index
    %c0_44 = arith.constant 0 : index
    %78 = vector.load %arg11[%c3_42, %c0_43, %c0_44] : memref<9x1x256xf32, #tpu.memory_space<vmem>>, vector<1x1x256xf32>
    %79 = vector.shape_cast %78 : vector<1x1x256xf32> to vector<1x256xf32>
    %80 = vector.broadcast %79 : vector<1x256xf32> to vector<16x256xf32>
    %81 = arith.mulf %77, %80 : vector<16x256xf32>
    %c4_45 = arith.constant 4 : index
    %c0_46 = arith.constant 0 : index
    %c0_47 = arith.constant 0 : index
    %82 = vector.load %arg11[%c4_45, %c0_46, %c0_47] : memref<9x1x256xf32, #tpu.memory_space<vmem>>, vector<1x1x256xf32>
    %83 = vector.shape_cast %82 : vector<1x1x256xf32> to vector<1x256xf32>
    %84 = vector.broadcast %83 : vector<1x256xf32> to vector<16x256xf32>
    %85 = arith.mulf %61, %84 : vector<16x256xf32>
    %c255_i32 = arith.constant 255 : i32
    %86 = tpu.dynamic_rotate %61 by %c255_i32 dim 1 : vector<16x256xf32>, i32 -> vector<16x256xf32>
    %c5_48 = arith.constant 5 : index
    %c0_49 = arith.constant 0 : index
    %c0_50 = arith.constant 0 : index
    %87 = vector.load %arg11[%c5_48, %c0_49, %c0_50] : memref<9x1x256xf32, #tpu.memory_space<vmem>>, vector<1x1x256xf32>
    %88 = vector.shape_cast %87 : vector<1x1x256xf32> to vector<1x256xf32>
    %89 = vector.broadcast %88 : vector<1x256xf32> to vector<16x256xf32>
    %90 = arith.mulf %86, %89 : vector<16x256xf32>
    %c249_i32 = arith.constant 249 : i32
    %91 = tpu.dynamic_rotate %61 by %c249_i32 dim 1 : vector<16x256xf32>, i32 -> vector<16x256xf32>
    %c6_51 = arith.constant 6 : index
    %c0_52 = arith.constant 0 : index
    %c0_53 = arith.constant 0 : index
    %92 = vector.load %arg11[%c6_51, %c0_52, %c0_53] : memref<9x1x256xf32, #tpu.memory_space<vmem>>, vector<1x1x256xf32>
    %93 = vector.shape_cast %92 : vector<1x1x256xf32> to vector<1x256xf32>
    %94 = vector.broadcast %93 : vector<1x256xf32> to vector<16x256xf32>
    %95 = arith.mulf %91, %94 : vector<16x256xf32>
    %c248_i32 = arith.constant 248 : i32
    %96 = tpu.dynamic_rotate %61 by %c248_i32 dim 1 : vector<16x256xf32>, i32 -> vector<16x256xf32>
    %c7_54 = arith.constant 7 : index
    %c0_55 = arith.constant 0 : index
    %c0_56 = arith.constant 0 : index
    %97 = vector.load %arg11[%c7_54, %c0_55, %c0_56] : memref<9x1x256xf32, #tpu.memory_space<vmem>>, vector<1x1x256xf32>
    %98 = vector.shape_cast %97 : vector<1x1x256xf32> to vector<1x256xf32>
    %99 = vector.broadcast %98 : vector<1x256xf32> to vector<16x256xf32>
    %100 = arith.mulf %96, %99 : vector<16x256xf32>
    %c247_i32 = arith.constant 247 : i32
    %101 = tpu.dynamic_rotate %61 by %c247_i32 dim 1 : vector<16x256xf32>, i32 -> vector<16x256xf32>
    %c8_57 = arith.constant 8 : index
    %c0_58 = arith.constant 0 : index
    %c0_59 = arith.constant 0 : index
    %102 = vector.load %arg11[%c8_57, %c0_58, %c0_59] : memref<9x1x256xf32, #tpu.memory_space<vmem>>, vector<1x1x256xf32>
    %103 = vector.shape_cast %102 : vector<1x1x256xf32> to vector<1x256xf32>
    %104 = vector.broadcast %103 : vector<1x256xf32> to vector<16x256xf32>
    %105 = arith.mulf %101, %104 : vector<16x256xf32>
    %106 = tpu.concatenate %66, %71, %76, %81, %85, %90, %95, %100, %105 in 0 : vector<16x256xf32>, vector<16x256xf32>, vector<16x256xf32>, vector<16x256xf32>, vector<16x256xf32>, vector<16x256xf32>, vector<16x256xf32>, vector<16x256xf32>, vector<16x256xf32> -> vector<144x256xf32>
    %c0_60 = arith.constant 0 : index
    %c0_61 = arith.constant 0 : index
    %107 = vector.load %arg4[%c0_60, %c0_61] : memref<8x144xf32, #tpu.memory_space<vmem>>, vector<8x144xf32>
    %cst_62 = arith.constant dense<0.000000e+00> : vector<8x256xf32>
    %108 = tpu.matmul %107, %106, %cst_62 {dimension_numbers = #tpu.dot_dimension_numbers<[1], [0], [0], [1], [0, 0, 1, 1], [], []>} : vector<8x144xf32>, vector<144x256xf32>, vector<8x256xf32> -> vector<8x256xf32>
    %c0_63 = arith.constant 0 : index
    %c0_64 = arith.constant 0 : index
    %109 = vector.load %arg5[%c0_63, %c0_64] : memref<8x1xf32, #tpu.memory_space<vmem>>, vector<8x1xf32>
    %110 = vector.broadcast %109 : vector<8x1xf32> to vector<8x256xf32>
    %111 = arith.addf %108, %110 : vector<8x256xf32>
    %cst_65 = arith.constant 0.000000e+00 : f32
    %112 = vector.broadcast %cst_65 : f32 to vector<8x256xf32>
    %113 = arith.maximumf %111, %112 : vector<8x256xf32>
    %c255_i32_66 = arith.constant 255 : i32
    %114 = tpu.dynamic_rotate %113 by %c255_i32_66 dim 1 : vector<8x256xf32>, i32 -> vector<8x256xf32>
    %c248_i32_67 = arith.constant 248 : i32
    %115 = tpu.dynamic_rotate %113 by %c248_i32_67 dim 1 : vector<8x256xf32>, i32 -> vector<8x256xf32>
    %c247_i32_68 = arith.constant 247 : i32
    %116 = tpu.dynamic_rotate %113 by %c247_i32_68 dim 1 : vector<8x256xf32>, i32 -> vector<8x256xf32>
    %117 = arith.maximumf %113, %114 : vector<8x256xf32>
    %118 = arith.maximumf %115, %116 : vector<8x256xf32>
    %119 = arith.maximumf %117, %118 : vector<8x256xf32>
    %c0_69 = arith.constant 0 : index
    %c0_70 = arith.constant 0 : index
    %120 = vector.load %arg13[%c0_69, %c0_70] : memref<256x64xf32, #tpu.memory_space<vmem>>, vector<256x64xf32>
    %cst_71 = arith.constant dense<0.000000e+00> : vector<8x64xf32>
    %121 = tpu.matmul %119, %120, %cst_71 {dimension_numbers = #tpu.dot_dimension_numbers<[1], [0], [0], [1], [0, 0, 1, 1], [], []>} : vector<8x256xf32>, vector<256x64xf32>, vector<8x64xf32> -> vector<8x64xf32>
    %c0_72 = arith.constant 0 : index
    %c0_73 = arith.constant 0 : index
    %122 = vector.load %arg14[%c0_72, %c0_73] : memref<64x256xf32, #tpu.memory_space<vmem>>, vector<64x256xf32>
    %cst_74 = arith.constant dense<0.000000e+00> : vector<8x256xf32>
    %123 = tpu.matmul %121, %122, %cst_74 {dimension_numbers = #tpu.dot_dimension_numbers<[1], [0], [0], [1], [0, 0, 1, 1], [], []>} : vector<8x64xf32>, vector<64x256xf32>, vector<8x256xf32> -> vector<8x256xf32>
    %c9_i32_75 = arith.constant 9 : i32
    %124 = tpu.dynamic_rotate %123 by %c9_i32_75 dim 1 : vector<8x256xf32>, i32 -> vector<8x256xf32>
    %c0_76 = arith.constant 0 : index
    %c0_77 = arith.constant 0 : index
    %c0_78 = arith.constant 0 : index
    %125 = vector.load %arg11[%c0_76, %c0_77, %c0_78] : memref<9x1x256xf32, #tpu.memory_space<vmem>>, vector<1x1x256xf32>
    %126 = vector.shape_cast %125 : vector<1x1x256xf32> to vector<1x256xf32>
    %127 = vector.broadcast %126 : vector<1x256xf32> to vector<8x256xf32>
    %128 = arith.mulf %124, %127 : vector<8x256xf32>
    %c8_i32_79 = arith.constant 8 : i32
    %129 = tpu.dynamic_rotate %123 by %c8_i32_79 dim 1 : vector<8x256xf32>, i32 -> vector<8x256xf32>
    %c1_80 = arith.constant 1 : index
    %c0_81 = arith.constant 0 : index
    %c0_82 = arith.constant 0 : index
    %130 = vector.load %arg11[%c1_80, %c0_81, %c0_82] : memref<9x1x256xf32, #tpu.memory_space<vmem>>, vector<1x1x256xf32>
    %131 = vector.shape_cast %130 : vector<1x1x256xf32> to vector<1x256xf32>
    %132 = vector.broadcast %131 : vector<1x256xf32> to vector<8x256xf32>
    %133 = arith.mulf %129, %132 : vector<8x256xf32>
    %c7_i32_83 = arith.constant 7 : i32
    %134 = tpu.dynamic_rotate %123 by %c7_i32_83 dim 1 : vector<8x256xf32>, i32 -> vector<8x256xf32>
    %c2_84 = arith.constant 2 : index
    %c0_85 = arith.constant 0 : index
    %c0_86 = arith.constant 0 : index
    %135 = vector.load %arg11[%c2_84, %c0_85, %c0_86] : memref<9x1x256xf32, #tpu.memory_space<vmem>>, vector<1x1x256xf32>
    %136 = vector.shape_cast %135 : vector<1x1x256xf32> to vector<1x256xf32>
    %137 = vector.broadcast %136 : vector<1x256xf32> to vector<8x256xf32>
    %138 = arith.mulf %134, %137 : vector<8x256xf32>
    %c1_i32_87 = arith.constant 1 : i32
    %139 = tpu.dynamic_rotate %123 by %c1_i32_87 dim 1 : vector<8x256xf32>, i32 -> vector<8x256xf32>
    %c3_88 = arith.constant 3 : index
    %c0_89 = arith.constant 0 : index
    %c0_90 = arith.constant 0 : index
    %140 = vector.load %arg11[%c3_88, %c0_89, %c0_90] : memref<9x1x256xf32, #tpu.memory_space<vmem>>, vector<1x1x256xf32>
    %141 = vector.shape_cast %140 : vector<1x1x256xf32> to vector<1x256xf32>
    %142 = vector.broadcast %141 : vector<1x256xf32> to vector<8x256xf32>
    %143 = arith.mulf %139, %142 : vector<8x256xf32>
    %c4_91 = arith.constant 4 : index
    %c0_92 = arith.constant 0 : index
    %c0_93 = arith.constant 0 : index
    %144 = vector.load %arg11[%c4_91, %c0_92, %c0_93] : memref<9x1x256xf32, #tpu.memory_space<vmem>>, vector<1x1x256xf32>
    %145 = vector.shape_cast %144 : vector<1x1x256xf32> to vector<1x256xf32>
    %146 = vector.broadcast %145 : vector<1x256xf32> to vector<8x256xf32>
    %147 = arith.mulf %123, %146 : vector<8x256xf32>
    %c255_i32_94 = arith.constant 255 : i32
    %148 = tpu.dynamic_rotate %123 by %c255_i32_94 dim 1 : vector<8x256xf32>, i32 -> vector<8x256xf32>
    %c5_95 = arith.constant 5 : index
    %c0_96 = arith.constant 0 : index
    %c0_97 = arith.constant 0 : index
    %149 = vector.load %arg11[%c5_95, %c0_96, %c0_97] : memref<9x1x256xf32, #tpu.memory_space<vmem>>, vector<1x1x256xf32>
    %150 = vector.shape_cast %149 : vector<1x1x256xf32> to vector<1x256xf32>
    %151 = vector.broadcast %150 : vector<1x256xf32> to vector<8x256xf32>
    %152 = arith.mulf %148, %151 : vector<8x256xf32>
    %c249_i32_98 = arith.constant 249 : i32
    %153 = tpu.dynamic_rotate %123 by %c249_i32_98 dim 1 : vector<8x256xf32>, i32 -> vector<8x256xf32>
    %c6_99 = arith.constant 6 : index
    %c0_100 = arith.constant 0 : index
    %c0_101 = arith.constant 0 : index
    %154 = vector.load %arg11[%c6_99, %c0_100, %c0_101] : memref<9x1x256xf32, #tpu.memory_space<vmem>>, vector<1x1x256xf32>
    %155 = vector.shape_cast %154 : vector<1x1x256xf32> to vector<1x256xf32>
    %156 = vector.broadcast %155 : vector<1x256xf32> to vector<8x256xf32>
    %157 = arith.mulf %153, %156 : vector<8x256xf32>
    %c248_i32_102 = arith.constant 248 : i32
    %158 = tpu.dynamic_rotate %123 by %c248_i32_102 dim 1 : vector<8x256xf32>, i32 -> vector<8x256xf32>
    %c7_103 = arith.constant 7 : index
    %c0_104 = arith.constant 0 : index
    %c0_105 = arith.constant 0 : index
    %159 = vector.load %arg11[%c7_103, %c0_104, %c0_105] : memref<9x1x256xf32, #tpu.memory_space<vmem>>, vector<1x1x256xf32>
    %160 = vector.shape_cast %159 : vector<1x1x256xf32> to vector<1x256xf32>
    %161 = vector.broadcast %160 : vector<1x256xf32> to vector<8x256xf32>
    %162 = arith.mulf %158, %161 : vector<8x256xf32>
    %c247_i32_106 = arith.constant 247 : i32
    %163 = tpu.dynamic_rotate %123 by %c247_i32_106 dim 1 : vector<8x256xf32>, i32 -> vector<8x256xf32>
    %c8_107 = arith.constant 8 : index
    %c0_108 = arith.constant 0 : index
    %c0_109 = arith.constant 0 : index
    %164 = vector.load %arg11[%c8_107, %c0_108, %c0_109] : memref<9x1x256xf32, #tpu.memory_space<vmem>>, vector<1x1x256xf32>
    %165 = vector.shape_cast %164 : vector<1x1x256xf32> to vector<1x256xf32>
    %166 = vector.broadcast %165 : vector<1x256xf32> to vector<8x256xf32>
    %167 = arith.mulf %163, %166 : vector<8x256xf32>
    %168 = tpu.concatenate %128, %133, %138, %143, %147, %152, %157, %162, %167 in 0 : vector<8x256xf32>, vector<8x256xf32>, vector<8x256xf32>, vector<8x256xf32>, vector<8x256xf32>, vector<8x256xf32>, vector<8x256xf32>, vector<8x256xf32>, vector<8x256xf32> -> vector<72x256xf32>
    %c0_110 = arith.constant 0 : index
    %c0_111 = arith.constant 0 : index
    %169 = vector.load %arg6[%c0_110, %c0_111] : memref<16x72xf32, #tpu.memory_space<vmem>>, vector<16x72xf32>
    %cst_112 = arith.constant dense<0.000000e+00> : vector<16x256xf32>
    %170 = tpu.matmul %169, %168, %cst_112 {dimension_numbers = #tpu.dot_dimension_numbers<[1], [0], [0], [1], [0, 0, 1, 1], [], []>} : vector<16x72xf32>, vector<72x256xf32>, vector<16x256xf32> -> vector<16x256xf32>
    %c0_113 = arith.constant 0 : index
    %c0_114 = arith.constant 0 : index
    %171 = vector.load %arg7[%c0_113, %c0_114] : memref<16x1xf32, #tpu.memory_space<vmem>>, vector<16x1xf32>
    %172 = vector.broadcast %171 : vector<16x1xf32> to vector<16x256xf32>
    %173 = arith.addf %170, %172 : vector<16x256xf32>
    %cst_115 = arith.constant 0.000000e+00 : f32
    %174 = vector.broadcast %cst_115 : f32 to vector<16x256xf32>
    %175 = arith.maximumf %173, %174 : vector<16x256xf32>
    %c0_116 = arith.constant 0 : index
    %c0_117 = arith.constant 0 : index
    %176 = vector.load %arg15[%c0_116, %c0_117] : memref<256x1024xf32, #tpu.memory_space<vmem>>, vector<256x1024xf32>
    %cst_118 = arith.constant dense<0.000000e+00> : vector<16x1024xf32>
    %177 = tpu.matmul %175, %176, %cst_118 {dimension_numbers = #tpu.dot_dimension_numbers<[1], [0], [0], [1], [0, 0, 1, 1], [], []>} : vector<16x256xf32>, vector<256x1024xf32>, vector<16x1024xf32> -> vector<16x1024xf32>
    %c17_i32_119 = arith.constant 17 : i32
    %178 = tpu.dynamic_rotate %177 by %c17_i32_119 dim 1 : vector<16x1024xf32>, i32 -> vector<16x1024xf32>
    %c0_120 = arith.constant 0 : index
    %c0_121 = arith.constant 0 : index
    %c0_122 = arith.constant 0 : index
    %179 = vector.load %arg10[%c0_120, %c0_121, %c0_122] : memref<9x1x1024xf32, #tpu.memory_space<vmem>>, vector<1x1x1024xf32>
    %180 = vector.shape_cast %179 : vector<1x1x1024xf32> to vector<1x1024xf32>
    %181 = vector.broadcast %180 : vector<1x1024xf32> to vector<16x1024xf32>
    %182 = arith.mulf %178, %181 : vector<16x1024xf32>
    %c16_i32_123 = arith.constant 16 : i32
    %183 = tpu.dynamic_rotate %177 by %c16_i32_123 dim 1 : vector<16x1024xf32>, i32 -> vector<16x1024xf32>
    %c1_124 = arith.constant 1 : index
    %c0_125 = arith.constant 0 : index
    %c0_126 = arith.constant 0 : index
    %184 = vector.load %arg10[%c1_124, %c0_125, %c0_126] : memref<9x1x1024xf32, #tpu.memory_space<vmem>>, vector<1x1x1024xf32>
    %185 = vector.shape_cast %184 : vector<1x1x1024xf32> to vector<1x1024xf32>
    %186 = vector.broadcast %185 : vector<1x1024xf32> to vector<16x1024xf32>
    %187 = arith.mulf %183, %186 : vector<16x1024xf32>
    %c15_i32_127 = arith.constant 15 : i32
    %188 = tpu.dynamic_rotate %177 by %c15_i32_127 dim 1 : vector<16x1024xf32>, i32 -> vector<16x1024xf32>
    %c2_128 = arith.constant 2 : index
    %c0_129 = arith.constant 0 : index
    %c0_130 = arith.constant 0 : index
    %189 = vector.load %arg10[%c2_128, %c0_129, %c0_130] : memref<9x1x1024xf32, #tpu.memory_space<vmem>>, vector<1x1x1024xf32>
    %190 = vector.shape_cast %189 : vector<1x1x1024xf32> to vector<1x1024xf32>
    %191 = vector.broadcast %190 : vector<1x1024xf32> to vector<16x1024xf32>
    %192 = arith.mulf %188, %191 : vector<16x1024xf32>
    %c1_i32_131 = arith.constant 1 : i32
    %193 = tpu.dynamic_rotate %177 by %c1_i32_131 dim 1 : vector<16x1024xf32>, i32 -> vector<16x1024xf32>
    %c3_132 = arith.constant 3 : index
    %c0_133 = arith.constant 0 : index
    %c0_134 = arith.constant 0 : index
    %194 = vector.load %arg10[%c3_132, %c0_133, %c0_134] : memref<9x1x1024xf32, #tpu.memory_space<vmem>>, vector<1x1x1024xf32>
    %195 = vector.shape_cast %194 : vector<1x1x1024xf32> to vector<1x1024xf32>
    %196 = vector.broadcast %195 : vector<1x1024xf32> to vector<16x1024xf32>
    %197 = arith.mulf %193, %196 : vector<16x1024xf32>
    %c4_135 = arith.constant 4 : index
    %c0_136 = arith.constant 0 : index
    %c0_137 = arith.constant 0 : index
    %198 = vector.load %arg10[%c4_135, %c0_136, %c0_137] : memref<9x1x1024xf32, #tpu.memory_space<vmem>>, vector<1x1x1024xf32>
    %199 = vector.shape_cast %198 : vector<1x1x1024xf32> to vector<1x1024xf32>
    %200 = vector.broadcast %199 : vector<1x1024xf32> to vector<16x1024xf32>
    %201 = arith.mulf %177, %200 : vector<16x1024xf32>
    %c1023_i32_138 = arith.constant 1023 : i32
    %202 = tpu.dynamic_rotate %177 by %c1023_i32_138 dim 1 : vector<16x1024xf32>, i32 -> vector<16x1024xf32>
    %c5_139 = arith.constant 5 : index
    %c0_140 = arith.constant 0 : index
    %c0_141 = arith.constant 0 : index
    %203 = vector.load %arg10[%c5_139, %c0_140, %c0_141] : memref<9x1x1024xf32, #tpu.memory_space<vmem>>, vector<1x1x1024xf32>
    %204 = vector.shape_cast %203 : vector<1x1x1024xf32> to vector<1x1024xf32>
    %205 = vector.broadcast %204 : vector<1x1024xf32> to vector<16x1024xf32>
    %206 = arith.mulf %202, %205 : vector<16x1024xf32>
    %c1009_i32_142 = arith.constant 1009 : i32
    %207 = tpu.dynamic_rotate %177 by %c1009_i32_142 dim 1 : vector<16x1024xf32>, i32 -> vector<16x1024xf32>
    %c6_143 = arith.constant 6 : index
    %c0_144 = arith.constant 0 : index
    %c0_145 = arith.constant 0 : index
    %208 = vector.load %arg10[%c6_143, %c0_144, %c0_145] : memref<9x1x1024xf32, #tpu.memory_space<vmem>>, vector<1x1x1024xf32>
    %209 = vector.shape_cast %208 : vector<1x1x1024xf32> to vector<1x1024xf32>
    %210 = vector.broadcast %209 : vector<1x1024xf32> to vector<16x1024xf32>
    %211 = arith.mulf %207, %210 : vector<16x1024xf32>
    %c1008_i32_146 = arith.constant 1008 : i32
    %212 = tpu.dynamic_rotate %177 by %c1008_i32_146 dim 1 : vector<16x1024xf32>, i32 -> vector<16x1024xf32>
    %c7_147 = arith.constant 7 : index
    %c0_148 = arith.constant 0 : index
    %c0_149 = arith.constant 0 : index
    %213 = vector.load %arg10[%c7_147, %c0_148, %c0_149] : memref<9x1x1024xf32, #tpu.memory_space<vmem>>, vector<1x1x1024xf32>
    %214 = vector.shape_cast %213 : vector<1x1x1024xf32> to vector<1x1024xf32>
    %215 = vector.broadcast %214 : vector<1x1024xf32> to vector<16x1024xf32>
    %216 = arith.mulf %212, %215 : vector<16x1024xf32>
    %c1007_i32_150 = arith.constant 1007 : i32
    %217 = tpu.dynamic_rotate %177 by %c1007_i32_150 dim 1 : vector<16x1024xf32>, i32 -> vector<16x1024xf32>
    %c8_151 = arith.constant 8 : index
    %c0_152 = arith.constant 0 : index
    %c0_153 = arith.constant 0 : index
    %218 = vector.load %arg10[%c8_151, %c0_152, %c0_153] : memref<9x1x1024xf32, #tpu.memory_space<vmem>>, vector<1x1x1024xf32>
    %219 = vector.shape_cast %218 : vector<1x1x1024xf32> to vector<1x1024xf32>
    %220 = vector.broadcast %219 : vector<1x1024xf32> to vector<16x1024xf32>
    %221 = arith.mulf %217, %220 : vector<16x1024xf32>
    %222 = tpu.concatenate %182, %187, %192, %197, %201, %206, %211, %216, %221 in 0 : vector<16x1024xf32>, vector<16x1024xf32>, vector<16x1024xf32>, vector<16x1024xf32>, vector<16x1024xf32>, vector<16x1024xf32>, vector<16x1024xf32>, vector<16x1024xf32>, vector<16x1024xf32> -> vector<144x1024xf32>
    %c0_154 = arith.constant 0 : index
    %c0_155 = arith.constant 0 : index
    %223 = vector.load %arg8[%c0_154, %c0_155] : memref<8x144xf32, #tpu.memory_space<vmem>>, vector<8x144xf32>
    %cst_156 = arith.constant dense<0.000000e+00> : vector<8x1024xf32>
    %224 = tpu.matmul %223, %222, %cst_156 {dimension_numbers = #tpu.dot_dimension_numbers<[1], [0], [0], [1], [0, 0, 1, 1], [], []>} : vector<8x144xf32>, vector<144x1024xf32>, vector<8x1024xf32> -> vector<8x1024xf32>
    %c0_157 = arith.constant 0 : index
    %c0_158 = arith.constant 0 : index
    %225 = vector.load %arg9[%c0_157, %c0_158] : memref<8x1xf32, #tpu.memory_space<vmem>>, vector<8x1xf32>
    %226 = vector.broadcast %225 : vector<8x1xf32> to vector<8x1024xf32>
    %227 = arith.addf %224, %226 : vector<8x1024xf32>
    %cst_159 = arith.constant 0.000000e+00 : f32
    %228 = vector.broadcast %cst_159 : f32 to vector<8x1024xf32>
    %229 = arith.maximumf %227, %228 : vector<8x1024xf32>
    %230 = vector.extract_strided_slice %229 {offsets = [0, 0], sizes = [1, 1024], strides = [1, 1]} : vector<8x1024xf32> to vector<1x1024xf32>
    %c0_160 = arith.constant 0 : index
    %c0_161 = arith.constant 0 : index
    %c0_162 = arith.constant 0 : index
    %231 = vector.load %arg16[%c0_160, %c0_161, %c0_162] : memref<1x1x1024xf32, #tpu.memory_space<vmem>>, vector<1x1x1024xf32>
    %232 = vector.shape_cast %231 : vector<1x1x1024xf32> to vector<1x1024xf32>
    %233 = vector.shape_cast %230 : vector<1x1024xf32> to vector<1x1x1024xf32>
    tpu.vector_store %arg16[%c0_160, %c0_161, %c0_162], %233 {strides = array<i32>} : memref<1x1x1024xf32, #tpu.memory_space<vmem>>, vector<1x1x1024xf32>,
    return
  }
  func.func @transform_0(%arg0: i32) -> (i32, i32, i32) {
    %c0_i32 = arith.constant 0 : i32
    %c0_i32_0 = arith.constant 0 : i32
    %c0_i32_1 = arith.constant 0 : i32
    return %arg0, %c0_i32, %c0_i32_0 : i32, i32, i32
  }
  func.func @transform_1(%arg0: i32) -> (i32, i32) {
    %c0_i32 = arith.constant 0 : i32
    %c0_i32_0 = arith.constant 0 : i32
    %c0_i32_1 = arith.constant 0 : i32
    return %c0_i32, %c0_i32_0 : i32, i32
  }
  func.func @transform_2(%arg0: i32) -> (i32, i32) {
    %c0_i32 = arith.constant 0 : i32
    %c0_i32_0 = arith.constant 0 : i32
    %c0_i32_1 = arith.constant 0 : i32
    return %c0_i32, %c0_i32_0 : i32, i32
  }
  func.func @transform_3(%arg0: i32) -> (i32, i32) {
    %c0_i32 = arith.constant 0 : i32
    %c0_i32_0 = arith.constant 0 : i32
    %c0_i32_1 = arith.constant 0 : i32
    return %c0_i32, %c0_i32_0 : i32, i32
  }
  func.func @transform_4(%arg0: i32) -> (i32, i32) {
    %c0_i32 = arith.constant 0 : i32
    %c0_i32_0 = arith.constant 0 : i32
    %c0_i32_1 = arith.constant 0 : i32
    return %c0_i32, %c0_i32_0 : i32, i32
  }
  func.func @transform_5(%arg0: i32) -> (i32, i32) {
    %c0_i32 = arith.constant 0 : i32
    %c0_i32_0 = arith.constant 0 : i32
    %c0_i32_1 = arith.constant 0 : i32
    return %c0_i32, %c0_i32_0 : i32, i32
  }
  func.func @transform_6(%arg0: i32) -> (i32, i32) {
    %c0_i32 = arith.constant 0 : i32
    %c0_i32_0 = arith.constant 0 : i32
    %c0_i32_1 = arith.constant 0 : i32
    return %c0_i32, %c0_i32_0 : i32, i32
  }
  func.func @transform_7(%arg0: i32) -> (i32, i32) {
    %c0_i32 = arith.constant 0 : i32
    %c0_i32_0 = arith.constant 0 : i32
    %c0_i32_1 = arith.constant 0 : i32
    return %c0_i32, %c0_i32_0 : i32, i32
  }
  func.func @transform_8(%arg0: i32) -> (i32, i32) {
    %c0_i32 = arith.constant 0 : i32
    %c0_i32_0 = arith.constant 0 : i32
    %c0_i32_1 = arith.constant 0 : i32
    return %c0_i32, %c0_i32_0 : i32, i32
  }
  func.func @transform_9(%arg0: i32) -> (i32, i32, i32) {
    %c0_i32 = arith.constant 0 : i32
    %c0_i32_0 = arith.constant 0 : i32
    %c0_i32_1 = arith.constant 0 : i32
    %c0_i32_2 = arith.constant 0 : i32
    return %c0_i32, %c0_i32_0, %c0_i32_1 : i32, i32, i32
  }
  func.func @transform_10(%arg0: i32) -> (i32, i32, i32) {
    %c0_i32 = arith.constant 0 : i32
    %c0_i32_0 = arith.constant 0 : i32
    %c0_i32_1 = arith.constant 0 : i32
    %c0_i32_2 = arith.constant 0 : i32
    return %c0_i32, %c0_i32_0, %c0_i32_1 : i32, i32, i32
  }
  func.func @transform_11(%arg0: i32) -> (i32, i32) {
    %c0_i32 = arith.constant 0 : i32
    %c0_i32_0 = arith.constant 0 : i32
    %c0_i32_1 = arith.constant 0 : i32
    return %c0_i32, %c0_i32_0 : i32, i32
  }
  func.func @transform_12(%arg0: i32) -> (i32, i32) {
    %c0_i32 = arith.constant 0 : i32
    %c0_i32_0 = arith.constant 0 : i32
    %c0_i32_1 = arith.constant 0 : i32
    return %c0_i32, %c0_i32_0 : i32, i32
  }
  func.func @transform_13(%arg0: i32) -> (i32, i32) {
    %c0_i32 = arith.constant 0 : i32
    %c0_i32_0 = arith.constant 0 : i32
    %c0_i32_1 = arith.constant 0 : i32
    return %c0_i32, %c0_i32_0 : i32, i32
  }
  func.func @transform_14(%arg0: i32) -> (i32, i32) {
    %c0_i32 = arith.constant 0 : i32
    %c0_i32_0 = arith.constant 0 : i32
    %c0_i32_1 = arith.constant 0 : i32
    return %c0_i32, %c0_i32_0 : i32, i32
  }
  func.func @transform_15(%arg0: i32) -> (i32, i32, i32) {
    %c0_i32 = arith.constant 0 : i32
    %c0_i32_0 = arith.constant 0 : i32
    %c0_i32_1 = arith.constant 0 : i32
    return %arg0, %c0_i32, %c0_i32_0 : i32, i32, i32
  }
}

</mosaic_0001>

<llo_original>
// kernel: autoencoder_forward.1
$region0: #{autoencoder_forward.1}
  #allocation0 [shape = 'u32[]', space=smem, size = 0x4, offset = 0x4, fixed_abs, tag = 'smem constant byte address 0x4 - core index']
  #allocation1 [shape = 'u32[144,128]{1,0:T(1,128)}', space=vmem, size = 0x12000, scoped, tag = 'internal scratch']
  %s0 = inlined_call_operand.vmem [shape: f32[2,8,1024], index: 0, kind: input, shape index: {}]
  %s1 = inlined_call_operand.vmem [shape: f32[16,72], index: 1, kind: input, shape index: {}]
  %s2 = inlined_call_operand.vmem [shape: f32[16,1], index: 2, kind: input, shape index: {}]
  %s3 = inlined_call_operand.vmem [shape: f32[8,144], index: 3, kind: input, shape index: {}]
  %s4 = inlined_call_operand.vmem [shape: f32[8,1], index: 4, kind: input, shape index: {}]
  %s5 = inlined_call_operand.vmem [shape: f32[16,72], index: 5, kind: input, shape index: {}]
  %s6 = inlined_call_operand.vmem [shape: f32[16,1], index: 6, kind: input, shape index: {}]
  %s7 = inlined_call_operand.vmem [shape: f32[8,144], index: 7, kind: input, shape index: {}]
  %s8 = inlined_call_operand.vmem [shape: f32[8,1], index: 8, kind: input, shape index: {}]
  %s9 = inlined_call_operand.vmem [shape: f32[9,1,1024], index: 9, kind: input, shape index: {}]
  %s10 = inlined_call_operand.vmem [shape: f32[9,1,256], index: 10, kind: input, shape index: {}]
  %s11 = inlined_call_operand.vmem [shape: f32[1024,256], index: 11, kind: input, shape index: {}]
  %s12 = inlined_call_operand.vmem [shape: f32[256,64], index: 12, kind: input, shape index: {}]
  %s13 = inlined_call_operand.vmem [shape: f32[64,256], index: 13, kind: input, shape index: {}]
  %s14 = inlined_call_operand.vmem [shape: f32[256,1024], index: 14, kind: input, shape index: {}]
  %s15 = inlined_call_operand.vmem [shape: f32[2,1,1024], index: 15, kind: output, shape index: {}]
  %s16 = sld [smem:[#allocation0]]
  $region93: #{autoencoder_forward.1} parent=0
    _
  %s18 = ssub.s32 1, %s16
  %s19 = scalar_select 0, %s18, %s16
  loop: start=0, step=1, limit=4
  $region2: #{autoencoder_forward.1} parent=0 // loop_pre_header
    _
  $region3: #{autoencoder_forward.1} parent=0 // loop_header
    %s21 = sphi 0, %s25
    %p22 = scmp.ge.s32.totalorder %s21, 4
    %s31 = sphi 0, %s33
    %s34 = sphi 0, %s31
    %s35 = sphi 0, %s34
    %s51 = sphi 0, %s35
    %s55 = sphi 0, %s55
    %s57 = sphi 0, %s55
    %s58 = sphi 0, %s57
    %s72 = sphi 0, %s58
    %s76 = sphi 0, %s76
    %s78 = sphi 0, %s76
    %s79 = sphi 0, %s78
    %s93 = sphi 0, %s79
    %s97 = sphi 0, %s97
    %s99 = sphi 0, %s97
    %s100 = sphi 0, %s99
    %s114 = sphi 0, %s100
    %s118 = sphi 0, %s118
    %s120 = sphi 0, %s118
    %s121 = sphi 0, %s120
    %s135 = sphi 0, %s121
    %s139 = sphi 0, %s139
    %s141 = sphi 0, %s139
    %s142 = sphi 0, %s141
    %s156 = sphi 0, %s142
    %s160 = sphi 0, %s160
    %s162 = sphi 0, %s160
    %s163 = sphi 0, %s162
    %s177 = sphi 0, %s163
    %s181 = sphi 0, %s181
    %s183 = sphi 0, %s181
    %s184 = sphi 0, %s183
    %s198 = sphi 0, %s184
    %s202 = sphi 0, %s202
    %s204 = sphi 0, %s202
    %s205 = sphi 0, %s204
    %s219 = sphi 0, %s205
    %s223 = sphi 0, %s223
    %s225 = sphi 0, %s223
    %s226 = sphi 0, %s225
    %s240 = sphi 0, %s226
    %s244 = sphi 0, %s244
    %s246 = sphi 0, %s244
    %s247 = sphi 0, %s246
    %s261 = sphi 0, %s247
    %s265 = sphi 0, %s265
    %s267 = sphi 0, %s265
    %s268 = sphi 0, %s267
    %s282 = sphi 0, %s268
    %s286 = sphi 0, %s286
    %s288 = sphi 0, %s286
    %s289 = sphi 0, %s288
    %s303 = sphi 0, %s289
    %s307 = sphi 0, %s307
    %s309 = sphi 0, %s307
    %s310 = sphi 0, %s309
    %s324 = sphi 0, %s310
    %s328 = sphi 0, %s328
    %s330 = sphi 0, %s328
    %s331 = sphi 0, %s330
    %s345 = sphi 0, %s331
    %s351 = sphi 0, %s353
    %s354 = sphi 0, %s351
    %s355 = sphi 0, %s354
    %s371 = sphi 0, %s355
  $region4: #{autoencoder_forward.1} parent=0 // loop_header_branch
    %24 = sbr.rel (%p22) target = $region8
  $region5: #{autoencoder_forward.1} parent=0 // loop_body
    %s26 = ssub.s32 %s21, 1
    %s27 = ssub.s32 %s21, 2
    %s28 = sadd.s32 %s21, 1
    %s29 = ssub.s32 %s21, %s28
    %p30 = scmp.eq.s32.totalorder %s29, 0
    %s32 = sadd.s32 %s31, 1
    %s33 = scalar_select %p30, %s31, %s32
    %p36 = pneg %p30
    %p37 = scmp.eq.s32.totalorder %s21, 1
    %p38 = por %p36, %p37
    %p39 = scmp.ne.s32.totalorder %s31, %s34
    %p40 = scmp.eq.s32.totalorder %s21, 0
    %p41 = por %p39, %p40
    %p42 = scmp.ne.s32.totalorder %s31, %s34
    %p43 = scmp.eq.s32.totalorder %s26, 1
    %p44 = por %p42, %p43
    %p45 = scmp.ne.s32.totalorder %s34, %s35
    %p46 = scmp.eq.s32.totalorder %s26, 0
    %p47 = por %p45, %p46
    %p48 = scmp.ne.s32.totalorder %s34, %s35
    %p49 = scmp.eq.s32.totalorder %s27, 1
    %p50 = por %p48, %p49
    %p52 = scmp.ne.s32.totalorder %s35, %s51
    %p53 = scmp.eq.s32.totalorder %s27, 0
    %p54 = por %p52, %p53
    %s56 = sadd.s32 %s55, 1
    %p59 = scmp.eq.s32.totalorder %s21, 1
    %p60 = scmp.ne.s32.totalorder %s55, %s57
    %p61 = scmp.eq.s32.totalorder %s21, 0
    %p62 = por %p60, %p61
    %p63 = scmp.ne.s32.totalorder %s55, %s57
    %p64 = scmp.eq.s32.totalorder %s26, 1
    %p65 = por %p63, %p64
    %p66 = scmp.ne.s32.totalorder %s57, %s58
    %p67 = scmp.eq.s32.totalorder %s26, 0
    %p68 = por %p66, %p67
    %p69 = scmp.ne.s32.totalorder %s57, %s58
    %p70 = scmp.eq.s32.totalorder %s27, 1
    %p71 = por %p69, %p70
    %p73 = scmp.ne.s32.totalorder %s58, %s72
    %p74 = scmp.eq.s32.totalorder %s27, 0
    %p75 = por %p73, %p74
    %s77 = sadd.s32 %s76, 1
    %p80 = scmp.eq.s32.totalorder %s21, 1
    %p81 = scmp.ne.s32.totalorder %s76, %s78
    %p82 = scmp.eq.s32.totalorder %s21, 0
    %p83 = por %p81, %p82
    %p84 = scmp.ne.s32.totalorder %s76, %s78
    %p85 = scmp.eq.s32.totalorder %s26, 1
    %p86 = por %p84, %p85
    %p87 = scmp.ne.s32.totalorder %s78, %s79
    %p88 = scmp.eq.s32.totalorder %s26, 0
    %p89 = por %p87, %p88
    %p90 = scmp.ne.s32.totalorder %s78, %s79
    %p91 = scmp.eq.s32.totalorder %s27, 1
    %p92 = por %p90, %p91
    %p94 = scmp.ne.s32.totalorder %s79, %s93
    %p95 = scmp.eq.s32.totalorder %s27, 0
    %p96 = por %p94, %p95
    %s98 = sadd.s32 %s97, 1
    %p101 = scmp.eq.s32.totalorder %s21, 1
    %p102 = scmp.ne.s32.totalorder %s97, %s99
    %p103 = scmp.eq.s32.totalorder %s21, 0
    %p104 = por %p102, %p103
    %p105 = scmp.ne.s32.totalorder %s97, %s99
    %p106 = scmp.eq.s32.totalorder %s26, 1
    %p107 = por %p105, %p106
    %p108 = scmp.ne.s32.totalorder %s99, %s100
    %p109 = scmp.eq.s32.totalorder %s26, 0
    %p110 = por %p108, %p109
    %p111 = scmp.ne.s32.totalorder %s99, %s100
    %p112 = scmp.eq.s32.totalorder %s27, 1
    %p113 = por %p111, %p112
    %p115 = scmp.ne.s32.totalorder %s100, %s114
    %p116 = scmp.eq.s32.totalorder %s27, 0
    %p117 = por %p115, %p116
    %s119 = sadd.s32 %s118, 1
    %p122 = scmp.eq.s32.totalorder %s21, 1
    %p123 = scmp.ne.s32.totalorder %s118, %s120
    %p124 = scmp.eq.s32.totalorder %s21, 0
    %p125 = por %p123, %p124
    %p126 = scmp.ne.s32.totalorder %s118, %s120
    %p127 = scmp.eq.s32.totalorder %s26, 1
    %p128 = por %p126, %p127
    %p129 = scmp.ne.s32.totalorder %s120, %s121
    %p130 = scmp.eq.s32.totalorder %s26, 0
    %p131 = por %p129, %p130
    %p132 = scmp.ne.s32.totalorder %s120, %s121
    %p133 = scmp.eq.s32.totalorder %s27, 1
    %p134 = por %p132, %p133
    %p136 = scmp.ne.s32.totalorder %s121, %s135
    %p137 = scmp.eq.s32.totalorder %s27, 0
    %p138 = por %p136, %p137
    %s140 = sadd.s32 %s139, 1
    %p143 = scmp.eq.s32.totalorder %s21, 1
    %p144 = scmp.ne.s32.totalorder %s139, %s141
    %p145 = scmp.eq.s32.totalorder %s21, 0
    %p146 = por %p144, %p145
    %p147 = scmp.ne.s32.totalorder %s139, %s141
    %p148 = scmp.eq.s32.totalorder %s26, 1
    %p149 = por %p147, %p148
    %p150 = scmp.ne.s32.totalorder %s141, %s142
    %p151 = scmp.eq.s32.totalorder %s26, 0
    %p152 = por %p150, %p151
    %p153 = scmp.ne.s32.totalorder %s141, %s142
    %p154 = scmp.eq.s32.totalorder %s27, 1
    %p155 = por %p153, %p154
    %p157 = scmp.ne.s32.totalorder %s142, %s156
    %p158 = scmp.eq.s32.totalorder %s27, 0
    %p159 = por %p157, %p158
    %s161 = sadd.s32 %s160, 1
    %p164 = scmp.eq.s32.totalorder %s21, 1
    %p165 = scmp.ne.s32.totalorder %s160, %s162
    %p166 = scmp.eq.s32.totalorder %s21, 0
    %p167 = por %p165, %p166
    %p168 = scmp.ne.s32.totalorder %s160, %s162
    %p169 = scmp.eq.s32.totalorder %s26, 1
    %p170 = por %p168, %p169
    %p171 = scmp.ne.s32.totalorder %s162, %s163
    %p172 = scmp.eq.s32.totalorder %s26, 0
    %p173 = por %p171, %p172
    %p174 = scmp.ne.s32.totalorder %s162, %s163
    %p175 = scmp.eq.s32.totalorder %s27, 1
    %p176 = por %p174, %p175
    %p178 = scmp.ne.s32.totalorder %s163, %s177
    %p179 = scmp.eq.s32.totalorder %s27, 0
    %p180 = por %p178, %p179
    %s182 = sadd.s32 %s181, 1
    %p185 = scmp.eq.s32.totalorder %s21, 1
    %p186 = scmp.ne.s32.totalorder %s181, %s183
    %p187 = scmp.eq.s32.totalorder %s21, 0
    %p188 = por %p186, %p187
    %p189 = scmp.ne.s32.totalorder %s181, %s183
    %p190 = scmp.eq.s32.totalorder %s26, 1
    %p191 = por %p189, %p190
    %p192 = scmp.ne.s32.totalorder %s183, %s184
    %p193 = scmp.eq.s32.totalorder %s26, 0
    %p194 = por %p192, %p193
    %p195 = scmp.ne.s32.totalorder %s183, %s184
    %p196 = scmp.eq.s32.totalorder %s27, 1
    %p197 = por %p195, %p196
    %p199 = scmp.ne.s32.totalorder %s184, %s198
    %p200 = scmp.eq.s32.totalorder %s27, 0
    %p201 = por %p199, %p200
    %s203 = sadd.s32 %s202, 1
    %p206 = scmp.eq.s32.totalorder %s21, 1
    %p207 = scmp.ne.s32.totalorder %s202, %s204
    %p208 = scmp.eq.s32.totalorder %s21, 0
    %p209 = por %p207, %p208
    %p210 = scmp.ne.s32.totalorder %s202, %s204
    %p211 = scmp.eq.s32.totalorder %s26, 1
    %p212 = por %p210, %p211
    %p213 = scmp.ne.s32.totalorder %s204, %s205
    %p214 = scmp.eq.s32.totalorder %s26, 0
    %p215 = por %p213, %p214
    %p216 = scmp.ne.s32.totalorder %s204, %s205
    %p217 = scmp.eq.s32.totalorder %s27, 1
    %p218 = por %p216, %p217
    %p220 = scmp.ne.s32.totalorder %s205, %s219
    %p221 = scmp.eq.s32.totalorder %s27, 0
    %p222 = por %p220, %p221
    %s224 = sadd.s32 %s223, 1
    %p227 = scmp.eq.s32.totalorder %s21, 1
    %p228 = scmp.ne.s32.totalorder %s223, %s225
    %p229 = scmp.eq.s32.totalorder %s21, 0
    %p230 = por %p228, %p229
    %p231 = scmp.ne.s32.totalorder %s223, %s225
    %p232 = scmp.eq.s32.totalorder %s26, 1
    %p233 = por %p231, %p232
    %p234 = scmp.ne.s32.totalorder %s225, %s226
    %p235 = scmp.eq.s32.totalorder %s26, 0
    %p236 = por %p234, %p235
    %p237 = scmp.ne.s32.totalorder %s225, %s226
    %p238 = scmp.eq.s32.totalorder %s27, 1
    %p239 = por %p237, %p238
    %p241 = scmp.ne.s32.totalorder %s226, %s240
    %p242 = scmp.eq.s32.totalorder %s27, 0
    %p243 = por %p241, %p242
    %s245 = sadd.s32 %s244, 1
    %p248 = scmp.eq.s32.totalorder %s21, 1
    %p249 = scmp.ne.s32.totalorder %s244, %s246
    %p250 = scmp.eq.s32.totalorder %s21, 0
    %p251 = por %p249, %p250
    %p252 = scmp.ne.s32.totalorder %s244, %s246
    %p253 = scmp.eq.s32.totalorder %s26, 1
    %p254 = por %p252, %p253
    %p255 = scmp.ne.s32.totalorder %s246, %s247
    %p256 = scmp.eq.s32.totalorder %s26, 0
    %p257 = por %p255, %p256
    %p258 = scmp.ne.s32.totalorder %s246, %s247
    %p259 = scmp.eq.s32.totalorder %s27, 1
    %p260 = por %p258, %p259
    %p262 = scmp.ne.s32.totalorder %s247, %s261
    %p263 = scmp.eq.s32.totalorder %s27, 0
    %p264 = por %p262, %p263
    %s266 = sadd.s32 %s265, 1
    %p269 = scmp.eq.s32.totalorder %s21, 1
    %p270 = scmp.ne.s32.totalorder %s265, %s267
    %p271 = scmp.eq.s32.totalorder %s21, 0
    %p272 = por %p270, %p271
    %p273 = scmp.ne.s32.totalorder %s265, %s267
    %p274 = scmp.eq.s32.totalorder %s26, 1
    %p275 = por %p273, %p274
    %p276 = scmp.ne.s32.totalorder %s267, %s268
    %p277 = scmp.eq.s32.totalorder %s26, 0
    %p278 = por %p276, %p277
    %p279 = scmp.ne.s32.totalorder %s267, %s268
    %p280 = scmp.eq.s32.totalorder %s27, 1
    %p281 = por %p279, %p280
    %p283 = scmp.ne.s32.totalorder %s268, %s282
    %p284 = scmp.eq.s32.totalorder %s27, 0
    %p285 = por %p283, %p284
    %s287 = sadd.s32 %s286, 1
    %p290 = scmp.eq.s32.totalorder %s21, 1
    %p291 = scmp.ne.s32.totalorder %s286, %s288
    %p292 = scmp.eq.s32.totalorder %s21, 0
    %p293 = por %p291, %p292
    %p294 = scmp.ne.s32.totalorder %s286, %s288
    %p295 = scmp.eq.s32.totalorder %s26, 1
    %p296 = por %p294, %p295
    %p297 = scmp.ne.s32.totalorder %s288, %s289
    %p298 = scmp.eq.s32.totalorder %s26, 0
    %p299 = por %p297, %p298
    %p300 = scmp.ne.s32.totalorder %s288, %s289
    %p301 = scmp.eq.s32.totalorder %s27, 1
    %p302 = por %p300, %p301
    %p304 = scmp.ne.s32.totalorder %s289, %s303
    %p305 = scmp.eq.s32.totalorder %s27, 0
    %p306 = por %p304, %p305
    %s308 = sadd.s32 %s307, 1
    %p311 = scmp.eq.s32.totalorder %s21, 1
    %p312 = scmp.ne.s32.totalorder %s307, %s309
    %p313 = scmp.eq.s32.totalorder %s21, 0
    %p314 = por %p312, %p313
    %p315 = scmp.ne.s32.totalorder %s307, %s309
    %p316 = scmp.eq.s32.totalorder %s26, 1
    %p317 = por %p315, %p316
    %p318 = scmp.ne.s32.totalorder %s309, %s310
    %p319 = scmp.eq.s32.totalorder %s26, 0
    %p320 = por %p318, %p319
    %p321 = scmp.ne.s32.totalorder %s309, %s310
    %p322 = scmp.eq.s32.totalorder %s27, 1
    %p323 = por %p321, %p322
    %p325 = scmp.ne.s32.totalorder %s310, %s324
    %p326 = scmp.eq.s32.totalorder %s27, 0
    %p327 = por %p325, %p326
    %s329 = sadd.s32 %s328, 1
    %p332 = scmp.eq.s32.totalorder %s21, 1
    %p333 = scmp.ne.s32.totalorder %s328, %s330
    %p334 = scmp.eq.s32.totalorder %s21, 0
    %p335 = por %p333, %p334
    %p336 = scmp.ne.s32.totalorder %s328, %s330
    %p337 = scmp.eq.s32.totalorder %s26, 1
    %p338 = por %p336, %p337
    %p339 = scmp.ne.s32.totalorder %s330, %s331
    %p340 = scmp.eq.s32.totalorder %s26, 0
    %p341 = por %p339, %p340
    %p342 = scmp.ne.s32.totalorder %s330, %s331
    %p343 = scmp.eq.s32.totalorder %s27, 1
    %p344 = por %p342, %p343
    %p346 = scmp.ne.s32.totalorder %s331, %s345
    %p347 = scmp.eq.s32.totalorder %s27, 0
    %p348 = por %p346, %p347
    %s349 = ssub.s32 %s21, %s28
    %p350 = scmp.eq.s32.totalorder %s349, 0
    %s352 = sadd.s32 %s351, 1
    %s353 = scalar_select %p350, %s351, %s352
    %p356 = pneg %p350
    %p357 = scmp.eq.s32.totalorder %s21, 1
    %p358 = por %p356, %p357
    %p359 = scmp.ne.s32.totalorder %s351, %s354
    %p360 = scmp.eq.s32.totalorder %s21, 0
    %p361 = por %p359, %p360
    %p362 = scmp.ne.s32.totalorder %s351, %s354
    %p363 = scmp.eq.s32.totalorder %s26, 1
    %p364 = por %p362, %p363
    %p365 = scmp.ne.s32.totalorder %s354, %s355
    %p366 = scmp.eq.s32.totalorder %s26, 0
    %p367 = por %p365, %p366
    %p368 = scmp.ne.s32.totalorder %s354, %s355
    %p369 = scmp.eq.s32.totalorder %s27, 1
    %p370 = por %p368, %p369
    %p372 = scmp.ne.s32.totalorder %s355, %s371
    %p373 = scmp.eq.s32.totalorder %s27, 0
    %p374 = por %p372, %p373
    %p375 = scmp.le.s32.totalorder 1, %s21
    %p376 = scmp.lt.s32.totalorder %s21, 3
    %p377 = pnand %p375, %p376
    %p378 = pneg %p377
    // Predicated region
    $region9: #{autoencoder_forward.1} parent=5 // pred_check
      _
    $region10: #{autoencoder_forward.1} parent=5 // pred_check_branch
      %380 = sbr.rel (%p377) target = $region12
    $region11: #{autoencoder_forward.1} parent=5 // pred_region
      %s381 = ssub.s32 %s21, 1
      // Predicated region
      $region13: #{autoencoder_forward.1} parent=11 // pred_check
        %p382 = pneg %p68
      $region14: #{autoencoder_forward.1} parent=11 // pred_check_branch
        %384 = sbr.rel (%p382) target = $region16
      $region15: #{autoencoder_forward.1} parent=11 // pred_region
        _
      $region16: #{autoencoder_forward.1} parent=11 // pred_fallthru
        _
      // Predicated region
      $region17: #{autoencoder_forward.1} parent=11 // pred_check
        %p385 = pneg %p89
      $region18: #{autoencoder_forward.1} parent=11 // pred_check_branch
        %387 = sbr.rel (%p385) target = $region20
      $region19: #{autoencoder_forward.1} parent=11 // pred_region
        _
      $region20: #{autoencoder_forward.1} parent=11 // pred_fallthru
        _
      // Predicated region
      $region21: #{autoencoder_forward.1} parent=11 // pred_check
        %p388 = pneg %p110
      $region22: #{autoencoder_forward.1} parent=11 // pred_check_branch
        %390 = sbr.rel (%p388) target = $region24
      $region23: #{autoencoder_forward.1} parent=11 // pred_region
        _
      $region24: #{autoencoder_forward.1} parent=11 // pred_fallthru
        _
      // Predicated region
      $region25: #{autoencoder_forward.1} parent=11 // pred_check
        %p391 = pneg %p131
      $region26: #{autoencoder_forward.1} parent=11 // pred_check_branch
        %393 = sbr.rel (%p391) target = $region28
      $region27: #{autoencoder_forward.1} parent=11 // pred_region
        _
      $region28: #{autoencoder_forward.1} parent=11 // pred_fallthru
        _
      // Predicated region
      $region29: #{autoencoder_forward.1} parent=11 // pred_check
        %p394 = pneg %p152
      $region30: #{autoencoder_forward.1} parent=11 // pred_check_branch
        %396 = sbr.rel (%p394) target = $region32
      $region31: #{autoencoder_forward.1} parent=11 // pred_region
        _
      $region32: #{autoencoder_forward.1} parent=11 // pred_fallthru
        _
      // Predicated region
      $region33: #{autoencoder_forward.1} parent=11 // pred_check
        %p397 = pneg %p173
      $region34: #{autoencoder_forward.1} parent=11 // pred_check_branch
        %399 = sbr.rel (%p397) target = $region36
      $region35: #{autoencoder_forward.1} parent=11 // pred_region
        _
      $region36: #{autoencoder_forward.1} parent=11 // pred_fallthru
        _
      // Predicated region
      $region37: #{autoencoder_forward.1} parent=11 // pred_check
        %p400 = pneg %p194
      $region38: #{autoencoder_forward.1} parent=11 // pred_check_branch
        %402 = sbr.rel (%p400) target = $region40
      $region39: #{autoencoder_forward.1} parent=11 // pred_region
        _
      $region40: #{autoencoder_forward.1} parent=11 // pred_fallthru
        _
      // Predicated region
      $region41: #{autoencoder_forward.1} parent=11 // pred_check
        %p403 = pneg %p215
      $region42: #{autoencoder_forward.1} parent=11 // pred_check_branch
        %405 = sbr.rel (%p403) target = $region44
      $region43: #{autoencoder_forward.1} parent=11 // pred_region
        _
      $region44: #{autoencoder_forward.1} parent=11 // pred_fallthru
        _
      // Predicated region
      $region45: #{autoencoder_forward.1} parent=11 // pred_check
        %p406 = pneg %p236
      $region46: #{autoencoder_forward.1} parent=11 // pred_check_branch
        %408 = sbr.rel (%p406) target = $region48
      $region47: #{autoencoder_forward.1} parent=11 // pred_region
        _
      $region48: #{autoencoder_forward.1} parent=11 // pred_fallthru
        _
      // Predicated region
      $region49: #{autoencoder_forward.1} parent=11 // pred_check
        %p409 = pneg %p257
      $region50: #{autoencoder_forward.1} parent=11 // pred_check_branch
        %411 = sbr.rel (%p409) target = $region52
      $region51: #{autoencoder_forward.1} parent=11 // pred_region
        _
      $region52: #{autoencoder_forward.1} parent=11 // pred_fallthru
        _
      // Predicated region
      $region53: #{autoencoder_forward.1} parent=11 // pred_check
        %p412 = pneg %p278
      $region54: #{autoencoder_forward.1} parent=11 // pred_check_branch
        %414 = sbr.rel (%p412) target = $region56
      $region55: #{autoencoder_forward.1} parent=11 // pred_region
        _
      $region56: #{autoencoder_forward.1} parent=11 // pred_fallthru
        _
      // Predicated region
      $region57: #{autoencoder_forward.1} parent=11 // pred_check
        %p415 = pneg %p299
      $region58: #{autoencoder_forward.1} parent=11 // pred_check_branch
        %417 = sbr.rel (%p415) target = $region60
      $region59: #{autoencoder_forward.1} parent=11 // pred_region
        _
      $region60: #{autoencoder_forward.1} parent=11 // pred_fallthru
        _
      // Predicated region
      $region61: #{autoencoder_forward.1} parent=11 // pred_check
        %p418 = pneg %p320
      $region62: #{autoencoder_forward.1} parent=11 // pred_check_branch
        %420 = sbr.rel (%p418) target = $region64
      $region63: #{autoencoder_forward.1} parent=11 // pred_region
        _
      $region64: #{autoencoder_forward.1} parent=11 // pred_fallthru
        _
      // Predicated region
      $region65: #{autoencoder_forward.1} parent=11 // pred_check
        %p421 = pneg %p341
      $region66: #{autoencoder_forward.1} parent=11 // pred_check_branch
        %423 = sbr.rel (%p421) target = $region68
      $region67: #{autoencoder_forward.1} parent=11 // pred_region
        _
      $region68: #{autoencoder_forward.1} parent=11 // pred_fallthru
        _
    $region12: #{autoencoder_forward.1} parent=5 // pred_fallthru
      _
    %p424 = scmp.lt.s32.totalorder %s21, 2
    // Predicated region
    $region69: #{autoencoder_forward.1} parent=5 // pred_check
      %p425 = pneg %p424
    $region70: #{autoencoder_forward.1} parent=5 // pred_check_branch
      %427 = sbr.rel (%p425) target = $region72
    $region71: #{autoencoder_forward.1} parent=5 // pred_region
      // Predicated region
      $region73: #{autoencoder_forward.1} parent=71 // pred_check
        %p428 = pneg %p41
      $region74: #{autoencoder_forward.1} parent=71 // pred_check_branch
        %430 = sbr.rel (%p428) target = $region76
      $region75: #{autoencoder_forward.1} parent=71 // pred_region
        %p431 = scmp.lt.s32.totalorder %s21, 1
        %s432 = scalar_select %p431, %s21, 1
        %s433 = smul.addr %s432, 8
        %s434 = smul.addr %s433, 8
        %s435 = scalar_lea.vmem %s0, %s434
      $region76: #{autoencoder_forward.1} parent=71 // pred_fallthru
        _
    $region72: #{autoencoder_forward.1} parent=5 // pred_fallthru
      _
    %p436 = scmp.le.s32.totalorder 1, %s21
    %p437 = scmp.lt.s32.totalorder %s21, 3
    %p438 = pnand %p436, %p437
    %p439 = pneg %p438
    // Predicated region
    $region77: #{autoencoder_forward.1} parent=5 // pred_check
      _
    $region78: #{autoencoder_forward.1} parent=5 // pred_check_branch
      %441 = sbr.rel (%p438) target = $region80
    $region79: #{autoencoder_forward.1} parent=5 // pred_region
      %s442 = ssub.s32 %s21, 1
      %p443 = scmp.lt.s32.totalorder %s26, 1
      %s444 = scalar_select %p443, %s26, 1
      %s445 = smul.addr %s444, 8
      %s446 = smul.addr %s445, 8
      %s447 = scalar_lea.vmem %s0, %s446
      %p448 = pneg %p47
      %p449 = pneg %p44
      %p450 = pneg %p68
      %p451 = pneg %p65
      %p452 = pneg %p89
      %p453 = pneg %p86
      %p454 = pneg %p110
      %p455 = pneg %p107
      %p456 = pneg %p131
      %p457 = pneg %p128
      %p458 = pneg %p152
      %p459 = pneg %p149
      %p460 = pneg %p173
      %p461 = pneg %p170
      %p462 = pneg %p194
      %p463 = pneg %p191
      %p464 = pneg %p215
      %p465 = pneg %p212
      %p466 = pneg %p236
      %p467 = pneg %p233
      %p468 = pneg %p257
      %p469 = pneg %p254
      %p470 = pneg %p278
      %p471 = pneg %p275
      %p472 = pneg %p299
      %p473 = pneg %p296
      %p474 = pneg %p320
      %p475 = pneg %p317
      %p476 = pneg %p341
      %p477 = pneg %p338
      %p478 = pneg %p367
      %p479 = pneg %p364
      %p480 = scmp.lt.s32.totalorder %s26, 1
      %s481 = scalar_select %p480, %s26, 1
      %s482 = smul.addr %s481, 8
      %s483 = scalar_lea.vmem %s15, %s482
      %p484 = scmp.lt.s32.totalorder %s26, 1
      %s485 = scalar_select %p484, %s26, 1
      %s486 = smul.addr %s485, 8
      %s487 = smul.addr %s486, 8
      %s488 = scalar_lea.vmem %s0, %s487
      %p489 = scmp.lt.s32.totalorder %s26, 1
      %s490 = scalar_select %p489, %s26, 1
      %s491 = smul.addr %s490, 8
      %s492 = scalar_lea.vmem %s15, %s491
      %v493 = vld [vmem:[%s488] sm:$0xff]
      %v494 = vld [vmem:[%s488 + $0x8] sm:$0xff]
      %v495 = vld [vmem:[%s488 + $0x10] sm:$0xff]
      %v496 = vld [vmem:[%s488 + $0x18] sm:$0xff]
      %v497 = vld [vmem:[%s488 + $0x20] sm:$0xff]
      %v498 = vld [vmem:[%s488 + $0x28] sm:$0xff]
      %v499 = vld [vmem:[%s488 + $0x30] sm:$0xff]
      %v500 = vld [vmem:[%s488 + $0x38] sm:$0xff]
      %501 = vrot.lane.b32.xlu0 %v493, 17
      %v502 = vpop.permute.xlu0 %501
      %503 = vrot.lane.b32.xlu0 %v494, 17
      %v504 = vpop.permute.xlu0 %503
      %505 = vrot.lane.b32.xlu0 %v495, 17
      %v506 = vpop.permute.xlu0 %505
      %507 = vrot.lane.b32.xlu0 %v496, 17
      %v508 = vpop.permute.xlu0 %507
      %509 = vrot.lane.b32.xlu0 %v497, 17
      %v510 = vpop.permute.xlu0 %509
      %511 = vrot.lane.b32.xlu0 %v498, 17
      %v512 = vpop.permute.xlu0 %511
      %513 = vrot.lane.b32.xlu0 %v499, 17
      %v514 = vpop.permute.xlu0 %513
      %515 = vrot.lane.b32.xlu0 %v500, 17
      %v516 = vpop.permute.xlu0 %515
      %v517 = vlaneseq
      %v518 = vand.u32 %v517, 127
      %vm519 = vcmp.lt.s32.totalorder %v518, 17
      %v520 = vsel %vm519, %v514, %v516
      %v521 = vsel %vm519, %v512, %v514
      %v522 = vsel %vm519, %v510, %v512
      %v523 = vsel %vm519, %v508, %v510
      %v524 = vsel %vm519, %v506, %v508
      %v525 = vsel %vm519, %v504, %v506
      %v526 = vsel %vm519, %v502, %v504
      %v527 = vsel %vm519, %v516, %v502
      %v528 = vld [vmem:[%s9] sm:$0xff]
      %v530 = vlaneseq
      %v531 = vshrl.u32 %v530, 7
      %v532 = vsub.s32 0, %v531
      %v533 = vrot.slane %v528, %v532
      %v534 = vlaneseq
      %v535 = vshrl.u32 %v534, 7
      %v536 = vsub.s32 1, %v535
      %v537 = vrot.slane %v528, %v536
      %v538 = vlaneseq
      %v539 = vshrl.u32 %v538, 7
      %v540 = vsub.s32 2, %v539
      %v541 = vrot.slane %v528, %v540
      %v542 = vlaneseq
      %v543 = vshrl.u32 %v542, 7
      %v544 = vsub.s32 3, %v543
      %v545 = vrot.slane %v528, %v544
      %v546 = vlaneseq
      %v547 = vshrl.u32 %v546, 7
      %v548 = vsub.s32 4, %v547
      %v549 = vrot.slane %v528, %v548
      %v550 = vlaneseq
      %v551 = vshrl.u32 %v550, 7
      %v552 = vsub.s32 5, %v551
      %v553 = vrot.slane %v528, %v552
      %v554 = vlaneseq
      %v555 = vshrl.u32 %v554, 7
      %v556 = vsub.s32 6, %v555
      %v557 = vrot.slane %v528, %v556
      %v558 = vlaneseq
      %v559 = vshrl.u32 %v558, 7
      %v560 = vsub.s32 7, %v559
      %v561 = vrot.slane %v528, %v560
      %v570 = vmul.f32 %v527, %v533
      %v571 = vmul.f32 %v526, %v537
      %v572 = vmul.f32 %v525, %v541
      %v573 = vmul.f32 %v524, %v545
      %v574 = vmul.f32 %v523, %v549
      %v575 = vmul.f32 %v522, %v553
      %v576 = vmul.f32 %v521, %v557
      %v577 = vmul.f32 %v520, %v561
      %578 = vrot.lane.b32.xlu0 %v493, 16
      %v579 = vpop.permute.xlu0 %578
      %580 = vrot.lane.b32.xlu0 %v494, 16
      %v581 = vpop.permute.xlu0 %580
      %582 = vrot.lane.b32.xlu0 %v495, 16
      %v583 = vpop.permute.xlu0 %582
      %584 = vrot.lane.b32.xlu0 %v496, 16
      %v585 = vpop.permute.xlu0 %584
      %586 = vrot.lane.b32.xlu0 %v497, 16
      %v587 = vpop.permute.xlu0 %586
      %588 = vrot.lane.b32.xlu0 %v498, 16
      %v589 = vpop.permute.xlu0 %588
      %590 = vrot.lane.b32.xlu0 %v499, 16
      %v591 = vpop.permute.xlu0 %590
      %592 = vrot.lane.b32.xlu0 %v500, 16
      %v593 = vpop.permute.xlu0 %592
      %vm594 = vcmp.lt.s32.totalorder %v518, 16
      %v595 = vsel %vm594, %v591, %v593
      %v596 = vsel %vm594, %v589, %v591
      %v597 = vsel %vm594, %v587, %v589
      %v598 = vsel %vm594, %v585, %v587
      %v599 = vsel %vm594, %v583, %v585
      %v600 = vsel %vm594, %v581, %v583
      %v601 = vsel %vm594, %v579, %v581
      %v602 = vsel %vm594, %v593, %v579
      %s603 = scalar_lea.vmem %s9, 8
      %v604 = vld [vmem:[%s603] sm:$0xff]
      %v606 = vlaneseq
      %v607 = vshrl.u32 %v606, 7
      %v608 = vsub.s32 0, %v607
      %v609 = vrot.slane %v604, %v608
      %v610 = vlaneseq
      %v611 = vshrl.u32 %v610, 7
      %v612 = vsub.s32 1, %v611
      %v613 = vrot.slane %v604, %v612
      %v614 = vlaneseq
      %v615 = vshrl.u32 %v614, 7
      %v616 = vsub.s32 2, %v615
      %v617 = vrot.slane %v604, %v616
      %v618 = vlaneseq
      %v619 = vshrl.u32 %v618, 7
      %v620 = vsub.s32 3, %v619
      %v621 = vrot.slane %v604, %v620
      %v622 = vlaneseq
      %v623 = vshrl.u32 %v622, 7
      %v624 = vsub.s32 4, %v623
      %v625 = vrot.slane %v604, %v624
      %v626 = vlaneseq
      %v627 = vshrl.u32 %v626, 7
      %v628 = vsub.s32 5, %v627
      %v629 = vrot.slane %v604, %v628
      %v630 = vlaneseq
      %v631 = vshrl.u32 %v630, 7
      %v632 = vsub.s32 6, %v631
      %v633 = vrot.slane %v604, %v632
      %v634 = vlaneseq
      %v635 = vshrl.u32 %v634, 7
      %v636 = vsub.s32 7, %v635
      %v637 = vrot.slane %v604, %v636
      %v646 = vmul.f32 %v602, %v609
      %v647 = vmul.f32 %v601, %v613
      %v648 = vmul.f32 %v600, %v617
      %v649 = vmul.f32 %v599, %v621
      %v650 = vmul.f32 %v598, %v625
      %v651 = vmul.f32 %v597, %v629
      %v652 = vmul.f32 %v596, %v633
      %v653 = vmul.f32 %v595, %v637
      %654 = vrot.lane.b32.xlu0 %v493, 15
      %v655 = vpop.permute.xlu0 %654
      %656 = vrot.lane.b32.xlu0 %v494, 15
      %v657 = vpop.permute.xlu0 %656
      %658 = vrot.lane.b32.xlu0 %v495, 15
      %v659 = vpop.permute.xlu0 %658
      %660 = vrot.lane.b32.xlu0 %v496, 15
      %v661 = vpop.permute.xlu0 %660
      %662 = vrot.lane.b32.xlu0 %v497, 15
      %v663 = vpop.permute.xlu0 %662
      %664 = vrot.lane.b32.xlu0 %v498, 15
      %v665 = vpop.permute.xlu0 %664
      %666 = vrot.lane.b32.xlu0 %v499, 15
      %v667 = vpop.permute.xlu0 %666
      %668 = vrot.lane.b32.xlu0 %v500, 15
      %v669 = vpop.permute.xlu0 %668
      %vm670 = vcmp.lt.s32.totalorder %v518, 15
      %v671 = vsel %vm670, %v667, %v669
      %v672 = vsel %vm670, %v665, %v667
      %v673 = vsel %vm670, %v663, %v665
      %v674 = vsel %vm670, %v661, %v663
      %v675 = vsel %vm670, %v659, %v661
      %v676 = vsel %vm670, %v657, %v659
      %v677 = vsel %vm670, %v655, %v657
      %v678 = vsel %vm670, %v669, %v655
      %s679 = scalar_lea.vmem %s9, 16
      %v680 = vld [vmem:[%s679] sm:$0xff]
      %v682 = vlaneseq
      %v683 = vshrl.u32 %v682, 7
      %v684 = vsub.s32 0, %v683
      %v685 = vrot.slane %v680, %v684
      %v686 = vlaneseq
      %v687 = vshrl.u32 %v686, 7
      %v688 = vsub.s32 1, %v687
      %v689 = vrot.slane %v680, %v688
      %v690 = vlaneseq
      %v691 = vshrl.u32 %v690, 7
      %v692 = vsub.s32 2, %v691
      %v693 = vrot.slane %v680, %v692
      %v694 = vlaneseq
      %v695 = vshrl.u32 %v694, 7
      %v696 = vsub.s32 3, %v695
      %v697 = vrot.slane %v680, %v696
      %v698 = vlaneseq
      %v699 = vshrl.u32 %v698, 7
      %v700 = vsub.s32 4, %v699
      %v701 = vrot.slane %v680, %v700
      %v702 = vlaneseq
      %v703 = vshrl.u32 %v702, 7
      %v704 = vsub.s32 5, %v703
      %v705 = vrot.slane %v680, %v704
      %v706 = vlaneseq
      %v707 = vshrl.u32 %v706, 7
      %v708 = vsub.s32 6, %v707
      %v709 = vrot.slane %v680, %v708
      %v710 = vlaneseq
      %v711 = vshrl.u32 %v710, 7
      %v712 = vsub.s32 7, %v711
      %v713 = vrot.slane %v680, %v712
      %v722 = vmul.f32 %v678, %v685
      %v723 = vmul.f32 %v677, %v689
      %v724 = vmul.f32 %v676, %v693
      %v725 = vmul.f32 %v675, %v697
      %v726 = vmul.f32 %v674, %v701
      %v727 = vmul.f32 %v673, %v705
      %v728 = vmul.f32 %v672, %v709
      %v729 = vmul.f32 %v671, %v713
      %730 = vrot.lane.b32.xlu0 %v493, 1
      %v731 = vpop.permute.xlu0 %730
      %732 = vrot.lane.b32.xlu0 %v494, 1
      %v733 = vpop.permute.xlu0 %732
      %734 = vrot.lane.b32.xlu0 %v495, 1
      %v735 = vpop.permute.xlu0 %734
      %736 = vrot.lane.b32.xlu0 %v496, 1
      %v737 = vpop.permute.xlu0 %736
      %738 = vrot.lane.b32.xlu0 %v497, 1
      %v739 = vpop.permute.xlu0 %738
      %740 = vrot.lane.b32.xlu0 %v498, 1
      %v741 = vpop.permute.xlu0 %740
      %742 = vrot.lane.b32.xlu0 %v499, 1
      %v743 = vpop.permute.xlu0 %742
      %744 = vrot.lane.b32.xlu0 %v500, 1
      %v745 = vpop.permute.xlu0 %744
      %vm746 = vcmp.lt.s32.totalorder %v518, 1
      %v747 = vsel %vm746, %v743, %v745
      %v748 = vsel %vm746, %v741, %v743
      %v749 = vsel %vm746, %v739, %v741
      %v750 = vsel %vm746, %v737, %v739
      %v751 = vsel %vm746, %v735, %v737
      %v752 = vsel %vm746, %v733, %v735
      %v753 = vsel %vm746, %v731, %v733
      %v754 = vsel %vm746, %v745, %v731
      %s755 = scalar_lea.vmem %s9, 24
      %v756 = vld [vmem:[%s755] sm:$0xff]
      %v758 = vlaneseq
      %v759 = vshrl.u32 %v758, 7
      %v760 = vsub.s32 0, %v759
      %v761 = vrot.slane %v756, %v760
      %v762 = vlaneseq
      %v763 = vshrl.u32 %v762, 7
      %v764 = vsub.s32 1, %v763
      %v765 = vrot.slane %v756, %v764
      %v766 = vlaneseq
      %v767 = vshrl.u32 %v766, 7
      %v768 = vsub.s32 2, %v767
      %v769 = vrot.slane %v756, %v768
      %v770 = vlaneseq
      %v771 = vshrl.u32 %v770, 7
      %v772 = vsub.s32 3, %v771
      %v773 = vrot.slane %v756, %v772
      %v774 = vlaneseq
      %v775 = vshrl.u32 %v774, 7
      %v776 = vsub.s32 4, %v775
      %v777 = vrot.slane %v756, %v776
      %v778 = vlaneseq
      %v779 = vshrl.u32 %v778, 7
      %v780 = vsub.s32 5, %v779
      %v781 = vrot.slane %v756, %v780
      %v782 = vlaneseq
      %v783 = vshrl.u32 %v782, 7
      %v784 = vsub.s32 6, %v783
      %v785 = vrot.slane %v756, %v784
      %v786 = vlaneseq
      %v787 = vshrl.u32 %v786, 7
      %v788 = vsub.s32 7, %v787
      %v789 = vrot.slane %v756, %v788
      %v798 = vmul.f32 %v754, %v761
      %v799 = vmul.f32 %v753, %v765
      %v800 = vmul.f32 %v752, %v769
      %v801 = vmul.f32 %v751, %v773
      %v802 = vmul.f32 %v750, %v777
      %v803 = vmul.f32 %v749, %v781
      %v804 = vmul.f32 %v748, %v785
      %v805 = vmul.f32 %v747, %v789
      %s806 = scalar_lea.vmem %s9, 32
      %v807 = vld [vmem:[%s806] sm:$0xff]
      %v809 = vlaneseq
      %v810 = vshrl.u32 %v809, 7
      %v811 = vsub.s32 0, %v810
      %v812 = vrot.slane %v807, %v811
      %v813 = vlaneseq
      %v814 = vshrl.u32 %v813, 7
      %v815 = vsub.s32 1, %v814
      %v816 = vrot.slane %v807, %v815
      %v817 = vlaneseq
      %v818 = vshrl.u32 %v817, 7
      %v819 = vsub.s32 2, %v818
      %v820 = vrot.slane %v807, %v819
      %v821 = vlaneseq
      %v822 = vshrl.u32 %v821, 7
      %v823 = vsub.s32 3, %v822
      %v824 = vrot.slane %v807, %v823
      %v825 = vlaneseq
      %v826 = vshrl.u32 %v825, 7
      %v827 = vsub.s32 4, %v826
      %v828 = vrot.slane %v807, %v827
      %v829 = vlaneseq
      %v830 = vshrl.u32 %v829, 7
      %v831 = vsub.s32 5, %v830
      %v832 = vrot.slane %v807, %v831
      %v833 = vlaneseq
      %v834 = vshrl.u32 %v833, 7
      %v835 = vsub.s32 6, %v834
      %v836 = vrot.slane %v807, %v835
      %v837 = vlaneseq
      %v838 = vshrl.u32 %v837, 7
      %v839 = vsub.s32 7, %v838
      %v840 = vrot.slane %v807, %v839
      %v849 = vmul.f32 %v493, %v812
      %v850 = vmul.f32 %v494, %v816
      %v851 = vmul.f32 %v495, %v820
      %v852 = vmul.f32 %v496, %v824
      %v853 = vmul.f32 %v497, %v828
      %v854 = vmul.f32 %v498, %v832
      %v855 = vmul.f32 %v499, %v836
      %v856 = vmul.f32 %v500, %v840
      %857 = vrot.lane.b32.xlu0 %v493, 127
      %v858 = vpop.permute.xlu0 %857
      %859 = vrot.lane.b32.xlu0 %v494, 127
      %v860 = vpop.permute.xlu0 %859
      %861 = vrot.lane.b32.xlu0 %v495, 127
      %v862 = vpop.permute.xlu0 %861
      %863 = vrot.lane.b32.xlu0 %v496, 127
      %v864 = vpop.permute.xlu0 %863
      %865 = vrot.lane.b32.xlu0 %v497, 127
      %v866 = vpop.permute.xlu0 %865
      %867 = vrot.lane.b32.xlu0 %v498, 127
      %v868 = vpop.permute.xlu0 %867
      %869 = vrot.lane.b32.xlu0 %v499, 127
      %v870 = vpop.permute.xlu0 %869
      %871 = vrot.lane.b32.xlu0 %v500, 127
      %v872 = vpop.permute.xlu0 %871
      %vm873 = vcmp.lt.s32.totalorder %v518, 127
      %v874 = vsel %vm873, %v870, %v872
      %v875 = vsel %vm873, %v868, %v870
      %v876 = vsel %vm873, %v866, %v868
      %v877 = vsel %vm873, %v864, %v866
      %v878 = vsel %vm873, %v862, %v864
      %v879 = vsel %vm873, %v860, %v862
      %v880 = vsel %vm873, %v858, %v860
      %v881 = vsel %vm873, %v872, %v858
      %s882 = scalar_lea.vmem %s9, 40
      %v883 = vld [vmem:[%s882] sm:$0xff]
      %v885 = vlaneseq
      %v886 = vshrl.u32 %v885, 7
      %v887 = vsub.s32 0, %v886
      %v888 = vrot.slane %v883, %v887
      %v889 = vlaneseq
      %v890 = vshrl.u32 %v889, 7
      %v891 = vsub.s32 1, %v890
      %v892 = vrot.slane %v883, %v891
      %v893 = vlaneseq
      %v894 = vshrl.u32 %v893, 7
      %v895 = vsub.s32 2, %v894
      %v896 = vrot.slane %v883, %v895
      %v897 = vlaneseq
      %v898 = vshrl.u32 %v897, 7
      %v899 = vsub.s32 3, %v898
      %v900 = vrot.slane %v883, %v899
      %v901 = vlaneseq
      %v902 = vshrl.u32 %v901, 7
      %v903 = vsub.s32 4, %v902
      %v904 = vrot.slane %v883, %v903
      %v905 = vlaneseq
      %v906 = vshrl.u32 %v905, 7
      %v907 = vsub.s32 5, %v906
      %v908 = vrot.slane %v883, %v907
      %v909 = vlaneseq
      %v910 = vshrl.u32 %v909, 7
      %v911 = vsub.s32 6, %v910
      %v912 = vrot.slane %v883, %v911
      %v913 = vlaneseq
      %v914 = vshrl.u32 %v913, 7
      %v915 = vsub.s32 7, %v914
      %v916 = vrot.slane %v883, %v915
      %v925 = vmul.f32 %v880, %v888
      %v926 = vmul.f32 %v879, %v892
      %v927 = vmul.f32 %v878, %v896
      %v928 = vmul.f32 %v877, %v900
      %v929 = vmul.f32 %v876, %v904
      %v930 = vmul.f32 %v875, %v908
      %v931 = vmul.f32 %v874, %v912
      %v932 = vmul.f32 %v881, %v916
      %933 = vrot.lane.b32.xlu0 %v493, 113
      %v934 = vpop.permute.xlu0 %933
      %935 = vrot.lane.b32.xlu0 %v494, 113
      %v936 = vpop.permute.xlu0 %935
      %937 = vrot.lane.b32.xlu0 %v495, 113
      %v938 = vpop.permute.xlu0 %937
      %939 = vrot.lane.b32.xlu0 %v496, 113
      %v940 = vpop.permute.xlu0 %939
      %941 = vrot.lane.b32.xlu0 %v497, 113
      %v942 = vpop.permute.xlu0 %941
      %943 = vrot.lane.b32.xlu0 %v498, 113
      %v944 = vpop.permute.xlu0 %943
      %945 = vrot.lane.b32.xlu0 %v499, 113
      %v946 = vpop.permute.xlu0 %945
      %947 = vrot.lane.b32.xlu0 %v500, 113
      %v948 = vpop.permute.xlu0 %947
      %vm949 = vcmp.lt.s32.totalorder %v518, 113
      %v950 = vsel %vm949, %v946, %v948
      %v951 = vsel %vm949, %v944, %v946
      %v952 = vsel %vm949, %v942, %v944
      %v953 = vsel %vm949, %v940, %v942
      %v954 = vsel %vm949, %v938, %v940
      %v955 = vsel %vm949, %v936, %v938
      %v956 = vsel %vm949, %v934, %v936
      %v957 = vsel %vm949, %v948, %v934
      %s958 = scalar_lea.vmem %s9, 48
      %v959 = vld [vmem:[%s958] sm:$0xff]
      %v961 = vlaneseq
      %v962 = vshrl.u32 %v961, 7
      %v963 = vsub.s32 0, %v962
      %v964 = vrot.slane %v959, %v963
      %v965 = vlaneseq
      %v966 = vshrl.u32 %v965, 7
      %v967 = vsub.s32 1, %v966
      %v968 = vrot.slane %v959, %v967
      %v969 = vlaneseq
      %v970 = vshrl.u32 %v969, 7
      %v971 = vsub.s32 2, %v970
      %v972 = vrot.slane %v959, %v971
      %v973 = vlaneseq
      %v974 = vshrl.u32 %v973, 7
      %v975 = vsub.s32 3, %v974
      %v976 = vrot.slane %v959, %v975
      %v977 = vlaneseq
      %v978 = vshrl.u32 %v977, 7
      %v979 = vsub.s32 4, %v978
      %v980 = vrot.slane %v959, %v979
      %v981 = vlaneseq
      %v982 = vshrl.u32 %v981, 7
      %v983 = vsub.s32 5, %v982
      %v984 = vrot.slane %v959, %v983
      %v985 = vlaneseq
      %v986 = vshrl.u32 %v985, 7
      %v987 = vsub.s32 6, %v986
      %v988 = vrot.slane %v959, %v987
      %v989 = vlaneseq
      %v990 = vshrl.u32 %v989, 7
      %v991 = vsub.s32 7, %v990
      %v992 = vrot.slane %v959, %v991
      %v1001 = vmul.f32 %v956, %v964
      %v1002 = vmul.f32 %v955, %v968
      %v1003 = vmul.f32 %v954, %v972
      %v1004 = vmul.f32 %v953, %v976
      %v1005 = vmul.f32 %v952, %v980
      %v1006 = vmul.f32 %v951, %v984
      %v1007 = vmul.f32 %v950, %v988
      %v1008 = vmul.f32 %v957, %v992
      %1009 = vrot.lane.b32.xlu0 %v493, 112
      %v1010 = vpop.permute.xlu0 %1009
      %1011 = vrot.lane.b32.xlu0 %v494, 112
      %v1012 = vpop.permute.xlu0 %1011
      %1013 = vrot.lane.b32.xlu0 %v495, 112
      %v1014 = vpop.permute.xlu0 %1013
      %1015 = vrot.lane.b32.xlu0 %v496, 112
      %v1016 = vpop.permute.xlu0 %1015
      %1017 = vrot.lane.b32.xlu0 %v497, 112
      %v1018 = vpop.permute.xlu0 %1017
      %1019 = vrot.lane.b32.xlu0 %v498, 112
      %v1020 = vpop.permute.xlu0 %1019
      %1021 = vrot.lane.b32.xlu0 %v499, 112
      %v1022 = vpop.permute.xlu0 %1021
      %1023 = vrot.lane.b32.xlu0 %v500, 112
      %v1024 = vpop.permute.xlu0 %1023
      %vm1025 = vcmp.lt.s32.totalorder %v518, 112
      %v1026 = vsel %vm1025, %v1022, %v1024
      %v1027 = vsel %vm1025, %v1020, %v1022
      %v1028 = vsel %vm1025, %v1018, %v1020
      %v1029 = vsel %vm1025, %v1016, %v1018
      %v1030 = vsel %vm1025, %v1014, %v1016
      %v1031 = vsel %vm1025, %v1012, %v1014
      %v1032 = vsel %vm1025, %v1010, %v1012
      %v1033 = vsel %vm1025, %v1024, %v1010
      %s1034 = scalar_lea.vmem %s9, 56
      %v1035 = vld [vmem:[%s1034] sm:$0xff]
      %v1037 = vlaneseq
      %v1038 = vshrl.u32 %v1037, 7
      %v1039 = vsub.s32 0, %v1038
      %v1040 = vrot.slane %v1035, %v1039
      %v1041 = vlaneseq
      %v1042 = vshrl.u32 %v1041, 7
      %v1043 = vsub.s32 1, %v1042
      %v1044 = vrot.slane %v1035, %v1043
      %v1045 = vlaneseq
      %v1046 = vshrl.u32 %v1045, 7
      %v1047 = vsub.s32 2, %v1046
      %v1048 = vrot.slane %v1035, %v1047
      %v1049 = vlaneseq
      %v1050 = vshrl.u32 %v1049, 7
      %v1051 = vsub.s32 3, %v1050
      %v1052 = vrot.slane %v1035, %v1051
      %v1053 = vlaneseq
      %v1054 = vshrl.u32 %v1053, 7
      %v1055 = vsub.s32 4, %v1054
      %v1056 = vrot.slane %v1035, %v1055
      %v1057 = vlaneseq
      %v1058 = vshrl.u32 %v1057, 7
      %v1059 = vsub.s32 5, %v1058
      %v1060 = vrot.slane %v1035, %v1059
      %v1061 = vlaneseq
      %v1062 = vshrl.u32 %v1061, 7
      %v1063 = vsub.s32 6, %v1062
      %v1064 = vrot.slane %v1035, %v1063
      %v1065 = vlaneseq
      %v1066 = vshrl.u32 %v1065, 7
      %v1067 = vsub.s32 7, %v1066
      %v1068 = vrot.slane %v1035, %v1067
      %v1077 = vmul.f32 %v1032, %v1040
      %v1078 = vmul.f32 %v1031, %v1044
      %v1079 = vmul.f32 %v1030, %v1048
      %v1080 = vmul.f32 %v1029, %v1052
      %v1081 = vmul.f32 %v1028, %v1056
      %v1082 = vmul.f32 %v1027, %v1060
      %v1083 = vmul.f32 %v1026, %v1064
      %v1084 = vmul.f32 %v1033, %v1068
      %1085 = vrot.lane.b32.xlu0 %v493, 111
      %v1086 = vpop.permute.xlu0 %1085
      %1087 = vrot.lane.b32.xlu0 %v494, 111
      %v1088 = vpop.permute.xlu0 %1087
      %1089 = vrot.lane.b32.xlu0 %v495, 111
      %v1090 = vpop.permute.xlu0 %1089
      %1091 = vrot.lane.b32.xlu0 %v496, 111
      %v1092 = vpop.permute.xlu0 %1091
      %1093 = vrot.lane.b32.xlu0 %v497, 111
      %v1094 = vpop.permute.xlu0 %1093
      %1095 = vrot.lane.b32.xlu0 %v498, 111
      %v1096 = vpop.permute.xlu0 %1095
      %1097 = vrot.lane.b32.xlu0 %v499, 111
      %v1098 = vpop.permute.xlu0 %1097
      %1099 = vrot.lane.b32.xlu0 %v500, 111
      %v1100 = vpop.permute.xlu0 %1099
      %vm1101 = vcmp.lt.s32.totalorder %v518, 111
      %v1102 = vsel %vm1101, %v1098, %v1100
      %v1103 = vsel %vm1101, %v1096, %v1098
      %v1104 = vsel %vm1101, %v1094, %v1096
      %v1105 = vsel %vm1101, %v1092, %v1094
      %v1106 = vsel %vm1101, %v1090, %v1092
      %v1107 = vsel %vm1101, %v1088, %v1090
      %v1108 = vsel %vm1101, %v1086, %v1088
      %v1109 = vsel %vm1101, %v1100, %v1086
      %s1110 = scalar_lea.vmem %s9, 64
      %v1111 = vld [vmem:[%s1110] sm:$0xff]
      %v1113 = vlaneseq
      %v1114 = vshrl.u32 %v1113, 7
      %v1115 = vsub.s32 0, %v1114
      %v1116 = vrot.slane %v1111, %v1115
      %v1117 = vlaneseq
      %v1118 = vshrl.u32 %v1117, 7
      %v1119 = vsub.s32 1, %v1118
      %v1120 = vrot.slane %v1111, %v1119
      %v1121 = vlaneseq
      %v1122 = vshrl.u32 %v1121, 7
      %v1123 = vsub.s32 2, %v1122
      %v1124 = vrot.slane %v1111, %v1123
      %v1125 = vlaneseq
      %v1126 = vshrl.u32 %v1125, 7
      %v1127 = vsub.s32 3, %v1126
      %v1128 = vrot.slane %v1111, %v1127
      %v1129 = vlaneseq
      %v1130 = vshrl.u32 %v1129, 7
      %v1131 = vsub.s32 4, %v1130
      %v1132 = vrot.slane %v1111, %v1131
      %v1133 = vlaneseq
      %v1134 = vshrl.u32 %v1133, 7
      %v1135 = vsub.s32 5, %v1134
      %v1136 = vrot.slane %v1111, %v1135
      %v1137 = vlaneseq
      %v1138 = vshrl.u32 %v1137, 7
      %v1139 = vsub.s32 6, %v1138
      %v1140 = vrot.slane %v1111, %v1139
      %v1141 = vlaneseq
      %v1142 = vshrl.u32 %v1141, 7
      %v1143 = vsub.s32 7, %v1142
      %v1144 = vrot.slane %v1111, %v1143
      %v1153 = vmul.f32 %v1108, %v1116
      %v1154 = vmul.f32 %v1107, %v1120
      %v1155 = vmul.f32 %v1106, %v1124
      %v1156 = vmul.f32 %v1105, %v1128
      %v1157 = vmul.f32 %v1104, %v1132
      %v1158 = vmul.f32 %v1103, %v1136
      %v1159 = vmul.f32 %v1102, %v1140
      %v1160 = vmul.f32 %v1109, %v1144
      %v1161 = vld [vmem:[%s1] sm:$0xff]
      %v1162 = vld [vmem:[%s1 + $0x8] sm:$0xff]
      %v1163 = vld [vmem:[%s2] sm:$0xff]
      %v1164 = vld [vmem:[%s2 + $0x8] sm:$0xff]
      %1166 = vset.pattern.permute.xlu0 0
      %1167 = vperm.xlu0 %1166, %v1163
      %v1168 = vpop.permute.xlu0 %1167
      %1171 = vset.pattern.permute.xlu0 0
      %1172 = vperm.xlu0 %1171, %v1164
      %v1173 = vpop.permute.xlu0 %1172
      %vm1175 = vcmask 588800
      %v1177 = vsel %vm1175, %v1161, 0
      %v1180 = vsel %vm1175, %v1162, 0
      %1182 = vmatprep.subr.mxu0 %v571
      %1183 = vmatpush1.msra.mxu0 %v570
      %1184 = vmatprep.subr.mxu0 %v647
      %1185 = vmatpush1.msra.mxu0 %v646
      %1186 = vmatprep.subr.mxu0 %v723
      %1187 = vmatpush1.msra.mxu0 %v722
      %1188 = vmatprep.subr.mxu0 %v799
      %1189 = vmatpush1.msra.mxu0 %v798
      %1190 = vmatprep.subr.mxu0 %v850
      %1191 = vmatpush1.msra.mxu0 %v849
      %1192 = vmatprep.subr.mxu0 %v926
      %1193 = vmatpush1.msra.mxu0 %v925
      %1194 = vmatprep.subr.mxu0 %v1002
      %1195 = vmatpush1.msra.mxu0 %v1001
      %1196 = vmatprep.subr.mxu0 %v1078
      %1197 = vmatpush1.msra.mxu0 %v1077
      %1198 = vmatprep.subr.mxu0 %v1154
      %1199 = vmatpush1.msra.mxu0 %v1153
      %1200 = vmatprep.subr.mxu0 0.0
      %1201 = vmatpush1.msra.mxu0 0.0
      %1202 = vmatprep.subr.mxu0 0.0
      %1203 = vmatpush1.msra.mxu0 0.0
      %1204 = vmatprep.subr.mxu0 0.0
      %1205 = vmatpush1.msra.mxu0 0.0
      %1206 = vmatprep.subr.mxu0 0.0
      %1207 = vmatpush1.msra.mxu0 0.0
      %1208 = vmatprep.subr.mxu0 0.0
      %1209 = vmatpush1.msra.mxu0 0.0
      %1210 = vmatprep.subr.mxu0 0.0
      %1211 = vmatpush1.msra.mxu0 0.0
      %1212 = vmatprep.subr.mxu0 0.0
      %1213 = vmatpush1.msra.mxu0 0.0
      %1214 = vmatprep.subr.mxu0 0.0
      %1215 = vmatpush1.msra.mxu0 0.0
      %1216 = vmatprep.subr.mxu0 0.0
      %1217 = vmatpush1.msra.mxu0 0.0
      %1218 = vmatprep.subr.mxu0 0.0
      %1219 = vmatpush1.msra.mxu0 0.0
      %1220 = vmatprep.subr.mxu0 0.0
      %1221 = vmatpush1.msra.mxu0 0.0
      %1222 = vmatprep.subr.mxu0 0.0
      %1223 = vmatpush1.msra.mxu0 0.0
      %1224 = vmatprep.subr.mxu0 0.0
      %1225 = vmatpush1.msra.mxu0 0.0
      %1226 = vmatprep.subr.mxu0 0.0
      %1227 = vmatpush1.msra.mxu0 0.0
      %1228 = vmatprep.subr.mxu0 0.0
      %1229 = vmatpush1.msra.mxu0 0.0
      %1230 = vmatprep.subr.mxu0 0.0
      %1231 = vmatpush1.msra.mxu0 0.0
      %1232 = vmatprep.subr.mxu0 0.0
      %1233 = vmatpush1.msra.mxu0 0.0
      %1234 = vmatprep.subr.mxu0 0.0
      %1235 = vmatpush1.msra.mxu0 0.0
      %1236 = vmatprep.subr.mxu0 0.0
      %1237 = vmatpush1.msra.mxu0 0.0
      %1238 = vmatprep.subr.mxu0 0.0
      %1239 = vmatpush1.msra.mxu0 0.0
      %1240 = vmatprep.subr.mxu0 0.0
      %1241 = vmatpush1.msra.mxu0 0.0
      %1242 = vmatprep.subr.mxu0 0.0
      %1243 = vmatpush1.msra.mxu0 0.0
      %1244 = vmatprep.subr.mxu0 0.0
      %1245 = vmatpush1.msra.mxu0 0.0
      %1246 = vmatprep.mubr.f32.mxu0 0.0
      %1247 = vmatmul.mubr.f32.gmra.mrb[0].mxu0 %v1177
      %v1248 = vpop.f32.mrb[0].mxu0
      %v1249 = vadd.f32 %v1168, %v1248
      %v1250 = vpop.f32.mrb[0].mxu0
      %v1251 = vadd.f32 %v1168, %v1250
      %1252 = vmatprep.mubr.f32.mxu0 0.0
      %1253 = vmatmul.mubr.f32.gmra.mrb[0].mxu0 %v1180
      %v1254 = vpop.f32.mrb[0].mxu0
      %v1255 = vadd.f32 %v1173, %v1254
      %v1256 = vpop.f32.mrb[0].mxu0
      %v1257 = vadd.f32 %v1173, %v1256
      %1258 = vdwg.mxu0
      %1259 = vmatprep.subr.mxu0 %v573
      %1260 = vmatpush1.msra.mxu0 %v572
      %1261 = vmatprep.subr.mxu0 %v649
      %1262 = vmatpush1.msra.mxu0 %v648
      %1263 = vmatprep.subr.mxu0 %v725
      %1264 = vmatpush1.msra.mxu0 %v724
      %1265 = vmatprep.subr.mxu0 %v801
      %1266 = vmatpush1.msra.mxu0 %v800
      %1267 = vmatprep.subr.mxu0 %v852
      %1268 = vmatpush1.msra.mxu0 %v851
      %1269 = vmatprep.subr.mxu0 %v928
      %1270 = vmatpush1.msra.mxu0 %v927
      %1271 = vmatprep.subr.mxu0 %v1004
      %1272 = vmatpush1.msra.mxu0 %v1003
      %1273 = vmatprep.subr.mxu0 %v1080
      %1274 = vmatpush1.msra.mxu0 %v1079
      %1275 = vmatprep.subr.mxu0 %v1156
      %1276 = vmatpush1.msra.mxu0 %v1155
      %1277 = vmatprep.subr.mxu0 0.0
      %1278 = vmatpush1.msra.mxu0 0.0
      %1279 = vmatprep.subr.mxu0 0.0
      %1280 = vmatpush1.msra.mxu0 0.0
      %1281 = vmatprep.subr.mxu0 0.0
      %1282 = vmatpush1.msra.mxu0 0.0
      %1283 = vmatprep.subr.mxu0 0.0
      %1284 = vmatpush1.msra.mxu0 0.0
      %1285 = vmatprep.subr.mxu0 0.0
      %1286 = vmatpush1.msra.mxu0 0.0
      %1287 = vmatprep.subr.mxu0 0.0
      %1288 = vmatpush1.msra.mxu0 0.0
      %1289 = vmatprep.subr.mxu0 0.0
      %1290 = vmatpush1.msra.mxu0 0.0
      %1291 = vmatprep.subr.mxu0 0.0
      %1292 = vmatpush1.msra.mxu0 0.0
      %1293 = vmatprep.subr.mxu0 0.0
      %1294 = vmatpush1.msra.mxu0 0.0
      %1295 = vmatprep.subr.mxu0 0.0
      %1296 = vmatpush1.msra.mxu0 0.0
      %1297 = vmatprep.subr.mxu0 0.0
      %1298 = vmatpush1.msra.mxu0 0.0
      %1299 = vmatprep.subr.mxu0 0.0
      %1300 = vmatpush1.msra.mxu0 0.0
      %1301 = vmatprep.subr.mxu0 0.0
      %1302 = vmatpush1.msra.mxu0 0.0
      %1303 = vmatprep.subr.mxu0 0.0
      %1304 = vmatpush1.msra.mxu0 0.0
      %1305 = vmatprep.subr.mxu0 0.0
      %1306 = vmatpush1.msra.mxu0 0.0
      %1307 = vmatprep.subr.mxu0 0.0
      %1308 = vmatpush1.msra.mxu0 0.0
      %1309 = vmatprep.subr.mxu0 0.0
      %1310 = vmatpush1.msra.mxu0 0.0
      %1311 = vmatprep.subr.mxu0 0.0
      %1312 = vmatpush1.msra.mxu0 0.0
      %1313 = vmatprep.subr.mxu0 0.0
      %1314 = vmatpush1.msra.mxu0 0.0
      %1315 = vmatprep.subr.mxu0 0.0
      %1316 = vmatpush1.msra.mxu0 0.0
      %1317 = vmatprep.subr.mxu0 0.0
      %1318 = vmatpush1.msra.mxu0 0.0
      %1319 = vmatprep.subr.mxu0 0.0
      %1320 = vmatpush1.msra.mxu0 0.0
      %1321 = vmatprep.subr.mxu0 0.0
      %1322 = vmatpush1.msra.mxu0 0.0
      %1323 = vmatprep.mubr.f32.mxu0 0.0
      %1324 = vmatmul.mubr.f32.gmra.mrb[0].mxu0 %v1177
      %v1325 = vpop.f32.mrb[0].mxu0
      %v1326 = vadd.f32 %v1168, %v1325
      %v1327 = vpop.f32.mrb[0].mxu0
      %v1328 = vadd.f32 %v1168, %v1327
      %1329 = vmatprep.mubr.f32.mxu0 0.0
      %1330 = vmatmul.mubr.f32.gmra.mrb[0].mxu0 %v1180
      %v1331 = vpop.f32.mrb[0].mxu0
      %v1332 = vadd.f32 %v1173, %v1331
      %v1333 = vpop.f32.mrb[0].mxu0
      %v1334 = vadd.f32 %v1173, %v1333
      %1335 = vdwg.mxu0
      %1336 = vmatprep.subr.mxu0 %v575
      %1337 = vmatpush1.msra.mxu0 %v574
      %1338 = vmatprep.subr.mxu0 %v651
      %1339 = vmatpush1.msra.mxu0 %v650
      %1340 = vmatprep.subr.mxu0 %v727
      %1341 = vmatpush1.msra.mxu0 %v726
      %1342 = vmatprep.subr.mxu0 %v803
      %1343 = vmatpush1.msra.mxu0 %v802
      %1344 = vmatprep.subr.mxu0 %v854
      %1345 = vmatpush1.msra.mxu0 %v853
      %1346 = vmatprep.subr.mxu0 %v930
      %1347 = vmatpush1.msra.mxu0 %v929
      %1348 = vmatprep.subr.mxu0 %v1006
      %1349 = vmatpush1.msra.mxu0 %v1005
      %1350 = vmatprep.subr.mxu0 %v1082
      %1351 = vmatpush1.msra.mxu0 %v1081
      %1352 = vmatprep.subr.mxu0 %v1158
      %1353 = vmatpush1.msra.mxu0 %v1157
      %1354 = vmatprep.subr.mxu0 0.0
      %1355 = vmatpush1.msra.mxu0 0.0
      %1356 = vmatprep.subr.mxu0 0.0
      %1357 = vmatpush1.msra.mxu0 0.0
      %1358 = vmatprep.subr.mxu0 0.0
      %1359 = vmatpush1.msra.mxu0 0.0
      %1360 = vmatprep.subr.mxu0 0.0
      %1361 = vmatpush1.msra.mxu0 0.0
      %1362 = vmatprep.subr.mxu0 0.0
      %1363 = vmatpush1.msra.mxu0 0.0
      %1364 = vmatprep.subr.mxu0 0.0
      %1365 = vmatpush1.msra.mxu0 0.0
      %1366 = vmatprep.subr.mxu0 0.0
      %1367 = vmatpush1.msra.mxu0 0.0
      %1368 = vmatprep.subr.mxu0 0.0
      %1369 = vmatpush1.msra.mxu0 0.0
      %1370 = vmatprep.subr.mxu0 0.0
      %1371 = vmatpush1.msra.mxu0 0.0
      %1372 = vmatprep.subr.mxu0 0.0
      %1373 = vmatpush1.msra.mxu0 0.0
      %1374 = vmatprep.subr.mxu0 0.0
      %1375 = vmatpush1.msra.mxu0 0.0
      %1376 = vmatprep.subr.mxu0 0.0
      %1377 = vmatpush1.msra.mxu0 0.0
      %1378 = vmatprep.subr.mxu0 0.0
      %1379 = vmatpush1.msra.mxu0 0.0
      %1380 = vmatprep.subr.mxu0 0.0
      %1381 = vmatpush1.msra.mxu0 0.0
      %1382 = vmatprep.subr.mxu0 0.0
      %1383 = vmatpush1.msra.mxu0 0.0
      %1384 = vmatprep.subr.mxu0 0.0
      %1385 = vmatpush1.msra.mxu0 0.0
      %1386 = vmatprep.subr.mxu0 0.0
      %1387 = vmatpush1.msra.mxu0 0.0
      %1388 = vmatprep.subr.mxu0 0.0
      %1389 = vmatpush1.msra.mxu0 0.0
      %1390 = vmatprep.subr.mxu0 0.0
      %1391 = vmatpush1.msra.mxu0 0.0
      %1392 = vmatprep.subr.mxu0 0.0
      %1393 = vmatpush1.msra.mxu0 0.0
      %1394 = vmatprep.subr.mxu0 0.0
      %1395 = vmatpush1.msra.mxu0 0.0
      %1396 = vmatprep.subr.mxu0 0.0
      %1397 = vmatpush1.msra.mxu0 0.0
      %1398 = vmatprep.subr.mxu0 0.0
      %1399 = vmatpush1.msra.mxu0 0.0
      %1400 = vmatprep.mubr.f32.mxu0 0.0
      %1401 = vmatmul.mubr.f32.gmra.mrb[0].mxu0 %v1177
      %v1402 = vpop.f32.mrb[0].mxu0
      %v1403 = vadd.f32 %v1168, %v1402
      %v1404 = vpop.f32.mrb[0].mxu0
      %v1405 = vadd.f32 %v1168, %v1404
      %1406 = vmatprep.mubr.f32.mxu0 0.0
      %1407 = vmatmul.mubr.f32.gmra.mrb[0].mxu0 %v1180
      %v1408 = vpop.f32.mrb[0].mxu0
      %v1409 = vadd.f32 %v1173, %v1408
      %v1410 = vpop.f32.mrb[0].mxu0
      %v1411 = vadd.f32 %v1173, %v1410
      %1412 = vdwg.mxu0
      %1413 = vmatprep.subr.mxu0 %v577
      %1414 = vmatpush1.msra.mxu0 %v576
      %1415 = vmatprep.subr.mxu0 %v653
      %1416 = vmatpush1.msra.mxu0 %v652
      %1417 = vmatprep.subr.mxu0 %v729
      %1418 = vmatpush1.msra.mxu0 %v728
      %1419 = vmatprep.subr.mxu0 %v805
      %1420 = vmatpush1.msra.mxu0 %v804
      %1421 = vmatprep.subr.mxu0 %v856
      %1422 = vmatpush1.msra.mxu0 %v855
      %1423 = vmatprep.subr.mxu0 %v932
      %1424 = vmatpush1.msra.mxu0 %v931
      %1425 = vmatprep.subr.mxu0 %v1008
      %1426 = vmatpush1.msra.mxu0 %v1007
      %1427 = vmatprep.subr.mxu0 %v1084
      %1428 = vmatpush1.msra.mxu0 %v1083
      %1429 = vmatprep.subr.mxu0 %v1160
      %1430 = vmatpush1.msra.mxu0 %v1159
      %1431 = vmatprep.subr.mxu0 0.0
      %1432 = vmatpush1.msra.mxu0 0.0
      %1433 = vmatprep.subr.mxu0 0.0
      %1434 = vmatpush1.msra.mxu0 0.0
      %1435 = vmatprep.subr.mxu0 0.0
      %1436 = vmatpush1.msra.mxu0 0.0
      %1437 = vmatprep.subr.mxu0 0.0
      %1438 = vmatpush1.msra.mxu0 0.0
      %1439 = vmatprep.subr.mxu0 0.0
      %1440 = vmatpush1.msra.mxu0 0.0
      %1441 = vmatprep.subr.mxu0 0.0
      %1442 = vmatpush1.msra.mxu0 0.0
      %1443 = vmatprep.subr.mxu0 0.0
      %1444 = vmatpush1.msra.mxu0 0.0
      %1445 = vmatprep.subr.mxu0 0.0
      %1446 = vmatpush1.msra.mxu0 0.0
      %1447 = vmatprep.subr.mxu0 0.0
      %1448 = vmatpush1.msra.mxu0 0.0
      %1449 = vmatprep.subr.mxu0 0.0
      %1450 = vmatpush1.msra.mxu0 0.0
      %1451 = vmatprep.subr.mxu0 0.0
      %1452 = vmatpush1.msra.mxu0 0.0
      %1453 = vmatprep.subr.mxu0 0.0
      %1454 = vmatpush1.msra.mxu0 0.0
      %1455 = vmatprep.subr.mxu0 0.0
      %1456 = vmatpush1.msra.mxu0 0.0
      %1457 = vmatprep.subr.mxu0 0.0
      %1458 = vmatpush1.msra.mxu0 0.0
      %1459 = vmatprep.subr.mxu0 0.0
      %1460 = vmatpush1.msra.mxu0 0.0
      %1461 = vmatprep.subr.mxu0 0.0
      %1462 = vmatpush1.msra.mxu0 0.0
      %1463 = vmatprep.subr.mxu0 0.0
      %1464 = vmatpush1.msra.mxu0 0.0
      %1465 = vmatprep.subr.mxu0 0.0
      %1466 = vmatpush1.msra.mxu0 0.0
      %1467 = vmatprep.subr.mxu0 0.0
      %1468 = vmatpush1.msra.mxu0 0.0
      %1469 = vmatprep.subr.mxu0 0.0
      %1470 = vmatpush1.msra.mxu0 0.0
      %1471 = vmatprep.subr.mxu0 0.0
      %1472 = vmatpush1.msra.mxu0 0.0
      %1473 = vmatprep.subr.mxu0 0.0
      %1474 = vmatpush1.msra.mxu0 0.0
      %1475 = vmatprep.subr.mxu0 0.0
      %1476 = vmatpush1.msra.mxu0 0.0
      %1477 = vmatprep.mubr.f32.mxu0 0.0
      %1478 = vmatmul.mubr.f32.gmra.mrb[0].mxu0 %v1177
      %v1479 = vpop.f32.mrb[0].mxu0
      %v1480 = vadd.f32 %v1168, %v1479
      %v1481 = vpop.f32.mrb[0].mxu0
      %v1482 = vadd.f32 %v1168, %v1481
      %1483 = vmatprep.mubr.f32.mxu0 0.0
      %1484 = vmatmul.mubr.f32.gmra.mrb[0].mxu0 %v1180
      %v1485 = vpop.f32.mrb[0].mxu0
      %v1486 = vadd.f32 %v1173, %v1485
      %v1487 = vpop.f32.mrb[0].mxu0
      %v1488 = vadd.f32 %v1173, %v1487
      %1489 = vdwg.mxu0
      %v1490 = vmax.f32 %v1249, 0.0
      %v1491 = vmax.f32 %v1251, 0.0
      %v1492 = vmax.f32 %v1326, 0.0
      %v1493 = vmax.f32 %v1328, 0.0
      %v1494 = vmax.f32 %v1403, 0.0
      %v1495 = vmax.f32 %v1405, 0.0
      %v1496 = vmax.f32 %v1480, 0.0
      %v1497 = vmax.f32 %v1482, 0.0
      %v1498 = vmax.f32 %v1255, 0.0
      %v1499 = vmax.f32 %v1257, 0.0
      %v1500 = vmax.f32 %v1332, 0.0
      %v1501 = vmax.f32 %v1334, 0.0
      %v1502 = vmax.f32 %v1409, 0.0
      %v1503 = vmax.f32 %v1411, 0.0
      %v1504 = vmax.f32 %v1486, 0.0
      %v1505 = vmax.f32 %v1488, 0.0
      %1506 = vrot.lane.b32.xlu0 %v1490, 127
      %v1507 = vpop.permute.xlu0 %1506
      %1508 = vrot.lane.b32.xlu0 %v1498, 127
      %v1509 = vpop.permute.xlu0 %1508
      %1510 = vrot.lane.b32.xlu0 %v1491, 127
      %v1511 = vpop.permute.xlu0 %1510
      %1512 = vrot.lane.b32.xlu0 %v1499, 127
      %v1513 = vpop.permute.xlu0 %1512
      %1514 = vrot.lane.b32.xlu0 %v1492, 127
      %v1515 = vpop.permute.xlu0 %1514
      %1516 = vrot.lane.b32.xlu0 %v1500, 127
      %v1517 = vpop.permute.xlu0 %1516
      %1518 = vrot.lane.b32.xlu0 %v1493, 127
      %v1519 = vpop.permute.xlu0 %1518
      %1520 = vrot.lane.b32.xlu0 %v1501, 127
      %v1521 = vpop.permute.xlu0 %1520
      %1522 = vrot.lane.b32.xlu0 %v1494, 127
      %v1523 = vpop.permute.xlu0 %1522
      %1524 = vrot.lane.b32.xlu0 %v1502, 127
      %v1525 = vpop.permute.xlu0 %1524
      %1526 = vrot.lane.b32.xlu0 %v1495, 127
      %v1527 = vpop.permute.xlu0 %1526
      %1528 = vrot.lane.b32.xlu0 %v1503, 127
      %v1529 = vpop.permute.xlu0 %1528
      %1530 = vrot.lane.b32.xlu0 %v1496, 127
      %v1531 = vpop.permute.xlu0 %1530
      %1532 = vrot.lane.b32.xlu0 %v1504, 127
      %v1533 = vpop.permute.xlu0 %1532
      %1534 = vrot.lane.b32.xlu0 %v1497, 127
      %v1535 = vpop.permute.xlu0 %1534
      %1536 = vrot.lane.b32.xlu0 %v1505, 127
      %v1537 = vpop.permute.xlu0 %1536
      %v1538 = vsel %vm873, %v1531, %v1535
      %v1539 = vsel %vm873, %v1533, %v1537
      %v1540 = vsel %vm873, %v1527, %v1531
      %v1541 = vsel %vm873, %v1529, %v1533
      %v1542 = vsel %vm873, %v1523, %v1527
      %v1543 = vsel %vm873, %v1525, %v1529
      %v1544 = vsel %vm873, %v1519, %v1523
      %v1545 = vsel %vm873, %v1521, %v1525
      %v1546 = vsel %vm873, %v1515, %v1519
      %v1547 = vsel %vm873, %v1517, %v1521
      %v1548 = vsel %vm873, %v1511, %v1515
      %v1549 = vsel %vm873, %v1513, %v1517
      %v1550 = vsel %vm873, %v1507, %v1511
      %v1551 = vsel %vm873, %v1509, %v1513
      %v1552 = vsel %vm873, %v1535, %v1507
      %v1553 = vsel %vm873, %v1537, %v1509
      %1554 = vrot.lane.b32.xlu0 %v1490, 112
      %v1555 = vpop.permute.xlu0 %1554
      %1556 = vrot.lane.b32.xlu0 %v1498, 112
      %v1557 = vpop.permute.xlu0 %1556
      %1558 = vrot.lane.b32.xlu0 %v1491, 112
      %v1559 = vpop.permute.xlu0 %1558
      %1560 = vrot.lane.b32.xlu0 %v1499, 112
      %v1561 = vpop.permute.xlu0 %1560
      %1562 = vrot.lane.b32.xlu0 %v1492, 112
      %v1563 = vpop.permute.xlu0 %1562
      %1564 = vrot.lane.b32.xlu0 %v1500, 112
      %v1565 = vpop.permute.xlu0 %1564
      %1566 = vrot.lane.b32.xlu0 %v1493, 112
      %v1567 = vpop.permute.xlu0 %1566
      %1568 = vrot.lane.b32.xlu0 %v1501, 112
      %v1569 = vpop.permute.xlu0 %1568
      %1570 = vrot.lane.b32.xlu0 %v1494, 112
      %v1571 = vpop.permute.xlu0 %1570
      %1572 = vrot.lane.b32.xlu0 %v1502, 112
      %v1573 = vpop.permute.xlu0 %1572
      %1574 = vrot.lane.b32.xlu0 %v1495, 112
      %v1575 = vpop.permute.xlu0 %1574
      %1576 = vrot.lane.b32.xlu0 %v1503, 112
      %v1577 = vpop.permute.xlu0 %1576
      %1578 = vrot.lane.b32.xlu0 %v1496, 112
      %v1579 = vpop.permute.xlu0 %1578
      %1580 = vrot.lane.b32.xlu0 %v1504, 112
      %v1581 = vpop.permute.xlu0 %1580
      %1582 = vrot.lane.b32.xlu0 %v1497, 112
      %v1583 = vpop.permute.xlu0 %1582
      %1584 = vrot.lane.b32.xlu0 %v1505, 112
      %v1585 = vpop.permute.xlu0 %1584
      %v1586 = vsel %vm1025, %v1579, %v1583
      %v1587 = vsel %vm1025, %v1581, %v1585
      %v1588 = vsel %vm1025, %v1575, %v1579
      %v1589 = vsel %vm1025, %v1577, %v1581
      %v1590 = vsel %vm1025, %v1571, %v1575
      %v1591 = vsel %vm1025, %v1573, %v1577
      %v1592 = vsel %vm1025, %v1567, %v1571
      %v1593 = vsel %vm1025, %v1569, %v1573
      %v1594 = vsel %vm1025, %v1563, %v1567
      %v1595 = vsel %vm1025, %v1565, %v1569
      %v1596 = vsel %vm1025, %v1559, %v1563
      %v1597 = vsel %vm1025, %v1561, %v1565
      %v1598 = vsel %vm1025, %v1555, %v1559
      %v1599 = vsel %vm1025, %v1557, %v1561
      %v1600 = vsel %vm1025, %v1583, %v1555
      %v1601 = vsel %vm1025, %v1585, %v1557
      %1602 = vrot.lane.b32.xlu0 %v1490, 111
      %v1603 = vpop.permute.xlu0 %1602
      %1604 = vrot.lane.b32.xlu0 %v1498, 111
      %v1605 = vpop.permute.xlu0 %1604
      %1606 = vrot.lane.b32.xlu0 %v1491, 111
      %v1607 = vpop.permute.xlu0 %1606
      %1608 = vrot.lane.b32.xlu0 %v1499, 111
      %v1609 = vpop.permute.xlu0 %1608
      %1610 = vrot.lane.b32.xlu0 %v1492, 111
      %v1611 = vpop.permute.xlu0 %1610
      %1612 = vrot.lane.b32.xlu0 %v1500, 111
      %v1613 = vpop.permute.xlu0 %1612
      %1614 = vrot.lane.b32.xlu0 %v1493, 111
      %v1615 = vpop.permute.xlu0 %1614
      %1616 = vrot.lane.b32.xlu0 %v1501, 111
      %v1617 = vpop.permute.xlu0 %1616
      %1618 = vrot.lane.b32.xlu0 %v1494, 111
      %v1619 = vpop.permute.xlu0 %1618
      %1620 = vrot.lane.b32.xlu0 %v1502, 111
      %v1621 = vpop.permute.xlu0 %1620
      %1622 = vrot.lane.b32.xlu0 %v1495, 111
      %v1623 = vpop.permute.xlu0 %1622
      %1624 = vrot.lane.b32.xlu0 %v1503, 111
      %v1625 = vpop.permute.xlu0 %1624
      %1626 = vrot.lane.b32.xlu0 %v1496, 111
      %v1627 = vpop.permute.xlu0 %1626
      %1628 = vrot.lane.b32.xlu0 %v1504, 111
      %v1629 = vpop.permute.xlu0 %1628
      %1630 = vrot.lane.b32.xlu0 %v1497, 111
      %v1631 = vpop.permute.xlu0 %1630
      %1632 = vrot.lane.b32.xlu0 %v1505, 111
      %v1633 = vpop.permute.xlu0 %1632
      %v1634 = vsel %vm1101, %v1627, %v1631
      %v1635 = vsel %vm1101, %v1629, %v1633
      %v1636 = vsel %vm1101, %v1623, %v1627
      %v1637 = vsel %vm1101, %v1625, %v1629
      %v1638 = vsel %vm1101, %v1619, %v1623
      %v1639 = vsel %vm1101, %v1621, %v1625
      %v1640 = vsel %vm1101, %v1615, %v1619
      %v1641 = vsel %vm1101, %v1617, %v1621
      %v1642 = vsel %vm1101, %v1611, %v1615
      %v1643 = vsel %vm1101, %v1613, %v1617
      %v1644 = vsel %vm1101, %v1607, %v1611
      %v1645 = vsel %vm1101, %v1609, %v1613
      %v1646 = vsel %vm1101, %v1603, %v1607
      %v1647 = vsel %vm1101, %v1605, %v1609
      %v1648 = vsel %vm1101, %v1631, %v1603
      %v1649 = vsel %vm1101, %v1633, %v1605
      %v1650 = vmax.f32 %v1490, %v1550
      %v1651 = vmax.f32 %v1491, %v1548
      %v1652 = vmax.f32 %v1492, %v1546
      %v1653 = vmax.f32 %v1493, %v1544
      %v1654 = vmax.f32 %v1494, %v1542
      %v1655 = vmax.f32 %v1495, %v1540
      %v1656 = vmax.f32 %v1496, %v1538
      %v1657 = vmax.f32 %v1497, %v1552
      %v1658 = vmax.f32 %v1498, %v1551
      %v1659 = vmax.f32 %v1499, %v1549
      %v1660 = vmax.f32 %v1500, %v1547
      %v1661 = vmax.f32 %v1501, %v1545
      %v1662 = vmax.f32 %v1502, %v1543
      %v1663 = vmax.f32 %v1503, %v1541
      %v1664 = vmax.f32 %v1504, %v1539
      %v1665 = vmax.f32 %v1505, %v1553
      %v1666 = vmax.f32 %v1598, %v1646
      %v1667 = vmax.f32 %v1596, %v1644
      %v1668 = vmax.f32 %v1594, %v1642
      %v1669 = vmax.f32 %v1592, %v1640
      %v1670 = vmax.f32 %v1590, %v1638
      %v1671 = vmax.f32 %v1588, %v1636
      %v1672 = vmax.f32 %v1586, %v1634
      %v1673 = vmax.f32 %v1600, %v1648
      %v1674 = vmax.f32 %v1599, %v1647
      %v1675 = vmax.f32 %v1597, %v1645
      %v1676 = vmax.f32 %v1595, %v1643
      %v1677 = vmax.f32 %v1593, %v1641
      %v1678 = vmax.f32 %v1591, %v1639
      %v1679 = vmax.f32 %v1589, %v1637
      %v1680 = vmax.f32 %v1587, %v1635
      %v1681 = vmax.f32 %v1601, %v1649
      %v1682 = vmax.f32 %v1650, %v1666
      %v1683 = vmax.f32 %v1651, %v1667
      %v1684 = vmax.f32 %v1652, %v1668
      %v1685 = vmax.f32 %v1653, %v1669
      %v1686 = vmax.f32 %v1654, %v1670
      %v1687 = vmax.f32 %v1655, %v1671
      %v1688 = vmax.f32 %v1656, %v1672
      %v1689 = vmax.f32 %v1657, %v1673
      %v1690 = vmax.f32 %v1658, %v1674
      %v1691 = vmax.f32 %v1659, %v1675
      %v1692 = vmax.f32 %v1660, %v1676
      %v1693 = vmax.f32 %v1661, %v1677
      %v1694 = vmax.f32 %v1662, %v1678
      %v1695 = vmax.f32 %v1663, %v1679
      %v1696 = vmax.f32 %v1664, %v1680
      %v1697 = vmax.f32 %v1665, %v1681
      %v1698 = vld [vmem:[%s11] sm:$0xff]
      %v1699 = vld [vmem:[%s11 + $0x8] sm:$0xff]
      %v1700 = vld [vmem:[%s11 + $0x10] sm:$0xff]
      %v1701 = vld [vmem:[%s11 + $0x18] sm:$0xff]
      %v1702 = vld [vmem:[%s11 + $0x20] sm:$0xff]
      %v1703 = vld [vmem:[%s11 + $0x28] sm:$0xff]
      %v1704 = vld [vmem:[%s11 + $0x30] sm:$0xff]
      %v1705 = vld [vmem:[%s11 + $0x38] sm:$0xff]
      %v1706 = vld [vmem:[%s11 + $0x40] sm:$0xff]
      %v1707 = vld [vmem:[%s11 + $0x48] sm:$0xff]
      %v1708 = vld [vmem:[%s11 + $0x50] sm:$0xff]
      %v1709 = vld [vmem:[%s11 + $0x58] sm:$0xff]
      %v1710 = vld [vmem:[%s11 + $0x60] sm:$0xff]
      %v1711 = vld [vmem:[%s11 + $0x68] sm:$0xff]
      %v1712 = vld [vmem:[%s11 + $0x70] sm:$0xff]
      %v1713 = vld [vmem:[%s11 + $0x78] sm:$0xff]
      %v1714 = vld [vmem:[%s11 + $0x80] sm:$0xff]
      %v1715 = vld [vmem:[%s11 + $0x88] sm:$0xff]
      %v1716 = vld [vmem:[%s11 + $0x90] sm:$0xff]
      %v1717 = vld [vmem:[%s11 + $0x98] sm:$0xff]
      %v1718 = vld [vmem:[%s11 + $0xa0] sm:$0xff]
      %v1719 = vld [vmem:[%s11 + $0xa8] sm:$0xff]
      %v1720 = vld [vmem:[%s11 + $0xb0] sm:$0xff]
      %v1721 = vld [vmem:[%s11 + $0xb8] sm:$0xff]
      %v1722 = vld [vmem:[%s11 + $0xc0] sm:$0xff]
      %v1723 = vld [vmem:[%s11 + $0xc8] sm:$0xff]
      %v1724 = vld [vmem:[%s11 + $0xd0] sm:$0xff]
      %v1725 = vld [vmem:[%s11 + $0xd8] sm:$0xff]
      %v1726 = vld [vmem:[%s11 + $0xe0] sm:$0xff]
      %v1727 = vld [vmem:[%s11 + $0xe8] sm:$0xff]
      %v1728 = vld [vmem:[%s11 + $0xf0] sm:$0xff]
      %v1729 = vld [vmem:[%s11 + $0xf8] sm:$0xff]
      %v1730 = vld [vmem:[%s11 + $0x100] sm:$0xff]
      %v1731 = vld [vmem:[%s11 + $0x108] sm:$0xff]
      %v1732 = vld [vmem:[%s11 + $0x110] sm:$0xff]
      %v1733 = vld [vmem:[%s11 + $0x118] sm:$0xff]
      %v1734 = vld [vmem:[%s11 + $0x120] sm:$0xff]
      %v1735 = vld [vmem:[%s11 + $0x128] sm:$0xff]
      %v1736 = vld [vmem:[%s11 + $0x130] sm:$0xff]
      %v1737 = vld [vmem:[%s11 + $0x138] sm:$0xff]
      %v1738 = vld [vmem:[%s11 + $0x140] sm:$0xff]
      %v1739 = vld [vmem:[%s11 + $0x148] sm:$0xff]
      %v1740 = vld [vmem:[%s11 + $0x150] sm:$0xff]
      %v1741 = vld [vmem:[%s11 + $0x158] sm:$0xff]
      %v1742 = vld [vmem:[%s11 + $0x160] sm:$0xff]
      %v1743 = vld [vmem:[%s11 + $0x168] sm:$0xff]
      %v1744 = vld [vmem:[%s11 + $0x170] sm:$0xff]
      %v1745 = vld [vmem:[%s11 + $0x178] sm:$0xff]
      %v1746 = vld [vmem:[%s11 + $0x180] sm:$0xff]
      %v1747 = vld [vmem:[%s11 + $0x188] sm:$0xff]
      %v1748 = vld [vmem:[%s11 + $0x190] sm:$0xff]
      %v1749 = vld [vmem:[%s11 + $0x198] sm:$0xff]
      %v1750 = vld [vmem:[%s11 + $0x1a0] sm:$0xff]
      %v1751 = vld [vmem:[%s11 + $0x1a8] sm:$0xff]
      %v1752 = vld [vmem:[%s11 + $0x1b0] sm:$0xff]
      %v1753 = vld [vmem:[%s11 + $0x1b8] sm:$0xff]
      %v1754 = vld [vmem:[%s11 + $0x1c0] sm:$0xff]
      %v1755 = vld [vmem:[%s11 + $0x1c8] sm:$0xff]
      %v1756 = vld [vmem:[%s11 + $0x1d0] sm:$0xff]
      %v1757 = vld [vmem:[%s11 + $0x1d8] sm:$0xff]
      %v1758 = vld [vmem:[%s11 + $0x1e0] sm:$0xff]
      %v1759 = vld [vmem:[%s11 + $0x1e8] sm:$0xff]
      %v1760 = vld [vmem:[%s11 + $0x1f0] sm:$0xff]
      %v1761 = vld [vmem:[%s11 + $0x1f8] sm:$0xff]
      %v1762 = vld [vmem:[%s11 + $0x200] sm:$0xff]
      %v1763 = vld [vmem:[%s11 + $0x208] sm:$0xff]
      %v1764 = vld [vmem:[%s11 + $0x210] sm:$0xff]
      %v1765 = vld [vmem:[%s11 + $0x218] sm:$0xff]
      %v1766 = vld [vmem:[%s11 + $0x220] sm:$0xff]
      %v1767 = vld [vmem:[%s11 + $0x228] sm:$0xff]
      %v1768 = vld [vmem:[%s11 + $0x230] sm:$0xff]
      %v1769 = vld [vmem:[%s11 + $0x238] sm:$0xff]
      %v1770 = vld [vmem:[%s11 + $0x240] sm:$0xff]
      %v1771 = vld [vmem:[%s11 + $0x248] sm:$0xff]
      %v1772 = vld [vmem:[%s11 + $0x250] sm:$0xff]
      %v1773 = vld [vmem:[%s11 + $0x258] sm:$0xff]
      %v1774 = vld [vmem:[%s11 + $0x260] sm:$0xff]
      %v1775 = vld [vmem:[%s11 + $0x268] sm:$0xff]
      %v1776 = vld [vmem:[%s11 + $0x270] sm:$0xff]
      %v1777 = vld [vmem:[%s11 + $0x278] sm:$0xff]
      %v1778 = vld [vmem:[%s11 + $0x280] sm:$0xff]
      %v1779 = vld [vmem:[%s11 + $0x288] sm:$0xff]
      %v1780 = vld [vmem:[%s11 + $0x290] sm:$0xff]
      %v1781 = vld [vmem:[%s11 + $0x298] sm:$0xff]
      %v1782 = vld [vmem:[%s11 + $0x2a0] sm:$0xff]
      %v1783 = vld [vmem:[%s11 + $0x2a8] sm:$0xff]
      %v1784 = vld [vmem:[%s11 + $0x2b0] sm:$0xff]
      %v1785 = vld [vmem:[%s11 + $0x2b8] sm:$0xff]
      %v1786 = vld [vmem:[%s11 + $0x2c0] sm:$0xff]
      %v1787 = vld [vmem:[%s11 + $0x2c8] sm:$0xff]
      %v1788 = vld [vmem:[%s11 + $0x2d0] sm:$0xff]
      %v1789 = vld [vmem:[%s11 + $0x2d8] sm:$0xff]
      %v1790 = vld [vmem:[%s11 + $0x2e0] sm:$0xff]
      %v1791 = vld [vmem:[%s11 + $0x2e8] sm:$0xff]
      %v1792 = vld [vmem:[%s11 + $0x2f0] sm:$0xff]
      %v1793 = vld [vmem:[%s11 + $0x2f8] sm:$0xff]
      %v1794 = vld [vmem:[%s11 + $0x300] sm:$0xff]
      %v1795 = vld [vmem:[%s11 + $0x308] sm:$0xff]
      %v1796 = vld [vmem:[%s11 + $0x310] sm:$0xff]
      %v1797 = vld [vmem:[%s11 + $0x318] sm:$0xff]
      %v1798 = vld [vmem:[%s11 + $0x320] sm:$0xff]
      %v1799 = vld [vmem:[%s11 + $0x328] sm:$0xff]
      %v1800 = vld [vmem:[%s11 + $0x330] sm:$0xff]
      %v1801 = vld [vmem:[%s11 + $0x338] sm:$0xff]
      %v1802 = vld [vmem:[%s11 + $0x340] sm:$0xff]
      %v1803 = vld [vmem:[%s11 + $0x348] sm:$0xff]
      %v1804 = vld [vmem:[%s11 + $0x350] sm:$0xff]
      %v1805 = vld [vmem:[%s11 + $0x358] sm:$0xff]
      %v1806 = vld [vmem:[%s11 + $0x360] sm:$0xff]
      %v1807 = vld [vmem:[%s11 + $0x368] sm:$0xff]
      %v1808 = vld [vmem:[%s11 + $0x370] sm:$0xff]
      %v1809 = vld [vmem:[%s11 + $0x378] sm:$0xff]
      %v1810 = vld [vmem:[%s11 + $0x380] sm:$0xff]
      %v1811 = vld [vmem:[%s11 + $0x388] sm:$0xff]
      %v1812 = vld [vmem:[%s11 + $0x390] sm:$0xff]
      %v1813 = vld [vmem:[%s11 + $0x398] sm:$0xff]
      %v1814 = vld [vmem:[%s11 + $0x3a0] sm:$0xff]
      %v1815 = vld [vmem:[%s11 + $0x3a8] sm:$0xff]
      %v1816 = vld [vmem:[%s11 + $0x3b0] sm:$0xff]
      %v1817 = vld [vmem:[%s11 + $0x3b8] sm:$0xff]
      %v1818 = vld [vmem:[%s11 + $0x3c0] sm:$0xff]
      %v1819 = vld [vmem:[%s11 + $0x3c8] sm:$0xff]
      %v1820 = vld [vmem:[%s11 + $0x3d0] sm:$0xff]
      %v1821 = vld [vmem:[%s11 + $0x3d8] sm:$0xff]
      %v1822 = vld [vmem:[%s11 + $0x3e0] sm:$0xff]
      %v1823 = vld [vmem:[%s11 + $0x3e8] sm:$0xff]
      %v1824 = vld [vmem:[%s11 + $0x3f0] sm:$0xff]
      %v1825 = vld [vmem:[%s11 + $0x3f8] sm:$0xff]
      %v1826 = vld [vmem:[%s11 + $0x400] sm:$0xff]
      %v1827 = vld [vmem:[%s11 + $0x408] sm:$0xff]
      %v1828 = vld [vmem:[%s11 + $0x410] sm:$0xff]
      %v1829 = vld [vmem:[%s11 + $0x418] sm:$0xff]
      %v1830 = vld [vmem:[%s11 + $0x420] sm:$0xff]
      %v1831 = vld [vmem:[%s11 + $0x428] sm:$0xff]
      %v1832 = vld [vmem:[%s11 + $0x430] sm:$0xff]
      %v1833 = vld [vmem:[%s11 + $0x438] sm:$0xff]
      %v1834 = vld [vmem:[%s11 + $0x440] sm:$0xff]
      %v1835 = vld [vmem:[%s11 + $0x448] sm:$0xff]
      %v1836 = vld [vmem:[%s11 + $0x450] sm:$0xff]
      %v1837 = vld [vmem:[%s11 + $0x458] sm:$0xff]
      %v1838 = vld [vmem:[%s11 + $0x460] sm:$0xff]
      %v1839 = vld [vmem:[%s11 + $0x468] sm:$0xff]
      %v1840 = vld [vmem:[%s11 + $0x470] sm:$0xff]
      %v1841 = vld [vmem:[%s11 + $0x478] sm:$0xff]
      %v1842 = vld [vmem:[%s11 + $0x480] sm:$0xff]
      %v1843 = vld [vmem:[%s11 + $0x488] sm:$0xff]
      %v1844 = vld [vmem:[%s11 + $0x490] sm:$0xff]
      %v1845 = vld [vmem:[%s11 + $0x498] sm:$0xff]
      %v1846 = vld [vmem:[%s11 + $0x4a0] sm:$0xff]
      %v1847 = vld [vmem:[%s11 + $0x4a8] sm:$0xff]
      %v1848 = vld [vmem:[%s11 + $0x4b0] sm:$0xff]
      %v1849 = vld [vmem:[%s11 + $0x4b8] sm:$0xff]
      %v1850 = vld [vmem:[%s11 + $0x4c0] sm:$0xff]
      %v1851 = vld [vmem:[%s11 + $0x4c8] sm:$0xff]
      %v1852 = vld [vmem:[%s11 + $0x4d0] sm:$0xff]
      %v1853 = vld [vmem:[%s11 + $0x4d8] sm:$0xff]
      %v1854 = vld [vmem:[%s11 + $0x4e0] sm:$0xff]
      %v1855 = vld [vmem:[%s11 + $0x4e8] sm:$0xff]
      %v1856 = vld [vmem:[%s11 + $0x4f0] sm:$0xff]
      %v1857 = vld [vmem:[%s11 + $0x4f8] sm:$0xff]
      %v1858 = vld [vmem:[%s11 + $0x500] sm:$0xff]
      %v1859 = vld [vmem:[%s11 + $0x508] sm:$0xff]
      %v1860 = vld [vmem:[%s11 + $0x510] sm:$0xff]
      %v1861 = vld [vmem:[%s11 + $0x518] sm:$0xff]
      %v1862 = vld [vmem:[%s11 + $0x520] sm:$0xff]
      %v1863 = vld [vmem:[%s11 + $0x528] sm:$0xff]
      %v1864 = vld [vmem:[%s11 + $0x530] sm:$0xff]
      %v1865 = vld [vmem:[%s11 + $0x538] sm:$0xff]
      %v1866 = vld [vmem:[%s11 + $0x540] sm:$0xff]
      %v1867 = vld [vmem:[%s11 + $0x548] sm:$0xff]
      %v1868 = vld [vmem:[%s11 + $0x550] sm:$0xff]
      %v1869 = vld [vmem:[%s11 + $0x558] sm:$0xff]
      %v1870 = vld [vmem:[%s11 + $0x560] sm:$0xff]
      %v1871 = vld [vmem:[%s11 + $0x568] sm:$0xff]
      %v1872 = vld [vmem:[%s11 + $0x570] sm:$0xff]
      %v1873 = vld [vmem:[%s11 + $0x578] sm:$0xff]
      %v1874 = vld [vmem:[%s11 + $0x580] sm:$0xff]
      %v1875 = vld [vmem:[%s11 + $0x588] sm:$0xff]
      %v1876 = vld [vmem:[%s11 + $0x590] sm:$0xff]
      %v1877 = vld [vmem:[%s11 + $0x598] sm:$0xff]
      %v1878 = vld [vmem:[%s11 + $0x5a0] sm:$0xff]
      %v1879 = vld [vmem:[%s11 + $0x5a8] sm:$0xff]
      %v1880 = vld [vmem:[%s11 + $0x5b0] sm:$0xff]
      %v1881 = vld [vmem:[%s11 + $0x5b8] sm:$0xff]
      %v1882 = vld [vmem:[%s11 + $0x5c0] sm:$0xff]
      %v1883 = vld [vmem:[%s11 + $0x5c8] sm:$0xff]
      %v1884 = vld [vmem:[%s11 + $0x5d0] sm:$0xff]
      %v1885 = vld [vmem:[%s11 + $0x5d8] sm:$0xff]
      %v1886 = vld [vmem:[%s11 + $0x5e0] sm:$0xff]
      %v1887 = vld [vmem:[%s11 + $0x5e8] sm:$0xff]
      %v1888 = vld [vmem:[%s11 + $0x5f0] sm:$0xff]
      %v1889 = vld [vmem:[%s11 + $0x5f8] sm:$0xff]
      %v1890 = vld [vmem:[%s11 + $0x600] sm:$0xff]
      %v1891 = vld [vmem:[%s11 + $0x608] sm:$0xff]
      %v1892 = vld [vmem:[%s11 + $0x610] sm:$0xff]
      %v1893 = vld [vmem:[%s11 + $0x618] sm:$0xff]
      %v1894 = vld [vmem:[%s11 + $0x620] sm:$0xff]
      %v1895 = vld [vmem:[%s11 + $0x628] sm:$0xff]
      %v1896 = vld [vmem:[%s11 + $0x630] sm:$0xff]
      %v1897 = vld [vmem:[%s11 + $0x638] sm:$0xff]
      %v1898 = vld [vmem:[%s11 + $0x640] sm:$0xff]
      %v1899 = vld [vmem:[%s11 + $0x648] sm:$0xff]
      %v1900 = vld [vmem:[%s11 + $0x650] sm:$0xff]
      %v1901 = vld [vmem:[%s11 + $0x658] sm:$0xff]
      %v1902 = vld [vmem:[%s11 + $0x660] sm:$0xff]
      %v1903 = vld [vmem:[%s11 + $0x668] sm:$0xff]
      %v1904 = vld [vmem:[%s11 + $0x670] sm:$0xff]
      %v1905 = vld [vmem:[%s11 + $0x678] sm:$0xff]
      %v1906 = vld [vmem:[%s11 + $0x680] sm:$0xff]
      %v1907 = vld [vmem:[%s11 + $0x688] sm:$0xff]
      %v1908 = vld [vmem:[%s11 + $0x690] sm:$0xff]
      %v1909 = vld [vmem:[%s11 + $0x698] sm:$0xff]
      %v1910 = vld [vmem:[%s11 + $0x6a0] sm:$0xff]
      %v1911 = vld [vmem:[%s11 + $0x6a8] sm:$0xff]
      %v1912 = vld [vmem:[%s11 + $0x6b0] sm:$0xff]
      %v1913 = vld [vmem:[%s11 + $0x6b8] sm:$0xff]
      %v1914 = vld [vmem:[%s11 + $0x6c0] sm:$0xff]
      %v1915 = vld [vmem:[%s11 + $0x6c8] sm:$0xff]
      %v1916 = vld [vmem:[%s11 + $0x6d0] sm:$0xff]
      %v1917 = vld [vmem:[%s11 + $0x6d8] sm:$0xff]
      %v1918 = vld [vmem:[%s11 + $0x6e0] sm:$0xff]
      %v1919 = vld [vmem:[%s11 + $0x6e8] sm:$0xff]
      %v1920 = vld [vmem:[%s11 + $0x6f0] sm:$0xff]
      %v1921 = vld [vmem:[%s11 + $0x6f8] sm:$0xff]
      %v1922 = vld [vmem:[%s11 + $0x700] sm:$0xff]
      %v1923 = vld [vmem:[%s11 + $0x708] sm:$0xff]
      %v1924 = vld [vmem:[%s11 + $0x710] sm:$0xff]
      %v1925 = vld [vmem:[%s11 + $0x718] sm:$0xff]
      %v1926 = vld [vmem:[%s11 + $0x720] sm:$0xff]
      %v1927 = vld [vmem:[%s11 + $0x728] sm:$0xff]
      %v1928 = vld [vmem:[%s11 + $0x730] sm:$0xff]
      %v1929 = vld [vmem:[%s11 + $0x738] sm:$0xff]
      %v1930 = vld [vmem:[%s11 + $0x740] sm:$0xff]
      %v1931 = vld [vmem:[%s11 + $0x748] sm:$0xff]
      %v1932 = vld [vmem:[%s11 + $0x750] sm:$0xff]
      %v1933 = vld [vmem:[%s11 + $0x758] sm:$0xff]
      %v1934 = vld [vmem:[%s11 + $0x760] sm:$0xff]
      %v1935 = vld [vmem:[%s11 + $0x768] sm:$0xff]
      %v1936 = vld [vmem:[%s11 + $0x770] sm:$0xff]
      %v1937 = vld [vmem:[%s11 + $0x778] sm:$0xff]
      %v1938 = vld [vmem:[%s11 + $0x780] sm:$0xff]
      %v1939 = vld [vmem:[%s11 + $0x788] sm:$0xff]
      %v1940 = vld [vmem:[%s11 + $0x790] sm:$0xff]
      %v1941 = vld [vmem:[%s11 + $0x798] sm:$0xff]
      %v1942 = vld [vmem:[%s11 + $0x7a0] sm:$0xff]
      %v1943 = vld [vmem:[%s11 + $0x7a8] sm:$0xff]
      %v1944 = vld [vmem:[%s11 + $0x7b0] sm:$0xff]
      %v1945 = vld [vmem:[%s11 + $0x7b8] sm:$0xff]
      %v1946 = vld [vmem:[%s11 + $0x7c0] sm:$0xff]
      %v1947 = vld [vmem:[%s11 + $0x7c8] sm:$0xff]
      %v1948 = vld [vmem:[%s11 + $0x7d0] sm:$0xff]
      %v1949 = vld [vmem:[%s11 + $0x7d8] sm:$0xff]
      %v1950 = vld [vmem:[%s11 + $0x7e0] sm:$0xff]
      %v1951 = vld [vmem:[%s11 + $0x7e8] sm:$0xff]
      %v1952 = vld [vmem:[%s11 + $0x7f0] sm:$0xff]
      %v1953 = vld [vmem:[%s11 + $0x7f8] sm:$0xff]
      %1954 = vmatprep.subr.mxu0 %v1699
      %1955 = vmatpush1.msra.mxu0 %v1698
      %1956 = vmatprep.subr.mxu0 %v1701
      %1957 = vmatpush1.msra.mxu0 %v1700
      %1958 = vmatprep.subr.mxu0 %v1703
      %1959 = vmatpush1.msra.mxu0 %v1702
      %1960 = vmatprep.subr.mxu0 %v1705
      %1961 = vmatpush1.msra.mxu0 %v1704
      %1962 = vmatprep.subr.mxu0 %v1707
      %1963 = vmatpush1.msra.mxu0 %v1706
      %1964 = vmatprep.subr.mxu0 %v1709
      %1965 = vmatpush1.msra.mxu0 %v1708
      %1966 = vmatprep.subr.mxu0 %v1711
      %1967 = vmatpush1.msra.mxu0 %v1710
      %1968 = vmatprep.subr.mxu0 %v1713
      %1969 = vmatpush1.msra.mxu0 %v1712
      %1970 = vmatprep.subr.mxu0 %v1715
      %1971 = vmatpush1.msra.mxu0 %v1714
      %1972 = vmatprep.subr.mxu0 %v1717
      %1973 = vmatpush1.msra.mxu0 %v1716
      %1974 = vmatprep.subr.mxu0 %v1719
      %1975 = vmatpush1.msra.mxu0 %v1718
      %1976 = vmatprep.subr.mxu0 %v1721
      %1977 = vmatpush1.msra.mxu0 %v1720
      %1978 = vmatprep.subr.mxu0 %v1723
      %1979 = vmatpush1.msra.mxu0 %v1722
      %1980 = vmatprep.subr.mxu0 %v1725
      %1981 = vmatpush1.msra.mxu0 %v1724
      %1982 = vmatprep.subr.mxu0 %v1727
      %1983 = vmatpush1.msra.mxu0 %v1726
      %1984 = vmatprep.subr.mxu0 %v1729
      %1985 = vmatpush1.msra.mxu0 %v1728
      %1986 = vmatprep.subr.mxu0 %v1731
      %1987 = vmatpush1.msra.mxu0 %v1730
      %1988 = vmatprep.subr.mxu0 %v1733
      %1989 = vmatpush1.msra.mxu0 %v1732
      %1990 = vmatprep.subr.mxu0 %v1735
      %1991 = vmatpush1.msra.mxu0 %v1734
      %1992 = vmatprep.subr.mxu0 %v1737
      %1993 = vmatpush1.msra.mxu0 %v1736
      %1994 = vmatprep.subr.mxu0 %v1739
      %1995 = vmatpush1.msra.mxu0 %v1738
      %1996 = vmatprep.subr.mxu0 %v1741
      %1997 = vmatpush1.msra.mxu0 %v1740
      %1998 = vmatprep.subr.mxu0 %v1743
      %1999 = vmatpush1.msra.mxu0 %v1742
      %2000 = vmatprep.subr.mxu0 %v1745
      %2001 = vmatpush1.msra.mxu0 %v1744
      %2002 = vmatprep.subr.mxu0 %v1747
      %2003 = vmatpush1.msra.mxu0 %v1746
      %2004 = vmatprep.subr.mxu0 %v1749
      %2005 = vmatpush1.msra.mxu0 %v1748
      %2006 = vmatprep.subr.mxu0 %v1751
      %2007 = vmatpush1.msra.mxu0 %v1750
      %2008 = vmatprep.subr.mxu0 %v1753
      %2009 = vmatpush1.msra.mxu0 %v1752
      %2010 = vmatprep.subr.mxu0 %v1755
      %2011 = vmatpush1.msra.mxu0 %v1754
      %2012 = vmatprep.subr.mxu0 %v1757
      %2013 = vmatpush1.msra.mxu0 %v1756
      %2014 = vmatprep.subr.mxu0 %v1759
      %2015 = vmatpush1.msra.mxu0 %v1758
      %2016 = vmatprep.subr.mxu0 %v1761
      %2017 = vmatpush1.msra.mxu0 %v1760
      %2018 = vmatprep.mubr.f32.mxu0 %v1683
      %2019 = vmatmul.mubr.f32.gmra.mrb[0].mxu0 %v1682
      %v2020 = vpop.f32.mrb[0].mxu0
      %v2021 = vadd.f32 0.0, %v2020
      %v2022 = vpop.f32.mrb[0].mxu0
      %v2023 = vadd.f32 0.0, %v2022
      %2024 = vmatprep.mubr.f32.mxu0 %v1691
      %2025 = vmatmul.mubr.f32.gmra.mrb[0].mxu0 %v1690
      %v2026 = vpop.f32.mrb[0].mxu0
      %v2027 = vadd.f32 0.0, %v2026
      %v2028 = vpop.f32.mrb[0].mxu0
      %v2029 = vadd.f32 0.0, %v2028
      %2030 = vdwg.mxu0
      %2031 = vmatprep.subr.mxu0 %v1763
      %2032 = vmatpush1.msra.mxu0 %v1762
      %2033 = vmatprep.subr.mxu0 %v1765
      %2034 = vmatpush1.msra.mxu0 %v1764
      %2035 = vmatprep.subr.mxu0 %v1767
      %2036 = vmatpush1.msra.mxu0 %v1766
      %2037 = vmatprep.subr.mxu0 %v1769
      %2038 = vmatpush1.msra.mxu0 %v1768
      %2039 = vmatprep.subr.mxu0 %v1771
      %2040 = vmatpush1.msra.mxu0 %v1770
      %2041 = vmatprep.subr.mxu0 %v1773
      %2042 = vmatpush1.msra.mxu0 %v1772
      %2043 = vmatprep.subr.mxu0 %v1775
      %2044 = vmatpush1.msra.mxu0 %v1774
      %2045 = vmatprep.subr.mxu0 %v1777
      %2046 = vmatpush1.msra.mxu0 %v1776
      %2047 = vmatprep.subr.mxu0 %v1779
      %2048 = vmatpush1.msra.mxu0 %v1778
      %2049 = vmatprep.subr.mxu0 %v1781
      %2050 = vmatpush1.msra.mxu0 %v1780
      %2051 = vmatprep.subr.mxu0 %v1783
      %2052 = vmatpush1.msra.mxu0 %v1782
      %2053 = vmatprep.subr.mxu0 %v1785
      %2054 = vmatpush1.msra.mxu0 %v1784
      %2055 = vmatprep.subr.mxu0 %v1787
      %2056 = vmatpush1.msra.mxu0 %v1786
      %2057 = vmatprep.subr.mxu0 %v1789
      %2058 = vmatpush1.msra.mxu0 %v1788
      %2059 = vmatprep.subr.mxu0 %v1791
      %2060 = vmatpush1.msra.mxu0 %v1790
      %2061 = vmatprep.subr.mxu0 %v1793
      %2062 = vmatpush1.msra.mxu0 %v1792
      %2063 = vmatprep.subr.mxu0 %v1795
      %2064 = vmatpush1.msra.mxu0 %v1794
      %2065 = vmatprep.subr.mxu0 %v1797
      %2066 = vmatpush1.msra.mxu0 %v1796
      %2067 = vmatprep.subr.mxu0 %v1799
      %2068 = vmatpush1.msra.mxu0 %v1798
      %2069 = vmatprep.subr.mxu0 %v1801
      %2070 = vmatpush1.msra.mxu0 %v1800
      %2071 = vmatprep.subr.mxu0 %v1803
      %2072 = vmatpush1.msra.mxu0 %v1802
      %2073 = vmatprep.subr.mxu0 %v1805
      %2074 = vmatpush1.msra.mxu0 %v1804
      %2075 = vmatprep.subr.mxu0 %v1807
      %2076 = vmatpush1.msra.mxu0 %v1806
      %2077 = vmatprep.subr.mxu0 %v1809
      %2078 = vmatpush1.msra.mxu0 %v1808
      %2079 = vmatprep.subr.mxu0 %v1811
      %2080 = vmatpush1.msra.mxu0 %v1810
      %2081 = vmatprep.subr.mxu0 %v1813
      %2082 = vmatpush1.msra.mxu0 %v1812
      %2083 = vmatprep.subr.mxu0 %v1815
      %2084 = vmatpush1.msra.mxu0 %v1814
      %2085 = vmatprep.subr.mxu0 %v1817
      %2086 = vmatpush1.msra.mxu0 %v1816
      %2087 = vmatprep.subr.mxu0 %v1819
      %2088 = vmatpush1.msra.mxu0 %v1818
      %2089 = vmatprep.subr.mxu0 %v1821
      %2090 = vmatpush1.msra.mxu0 %v1820
      %2091 = vmatprep.subr.mxu0 %v1823
      %2092 = vmatpush1.msra.mxu0 %v1822
      %2093 = vmatprep.subr.mxu0 %v1825
      %2094 = vmatpush1.msra.mxu0 %v1824
      %2095 = vmatprep.mubr.f32.mxu0 %v1685
      %2096 = vmatmul.mubr.f32.gmra.mrb[0].mxu0 %v1684
      %v2097 = vpop.f32.mrb[0].mxu0
      %v2098 = vadd.f32 %v2021, %v2097
      %v2099 = vpop.f32.mrb[0].mxu0
      %v2100 = vadd.f32 %v2023, %v2099
      %2101 = vmatprep.mubr.f32.mxu0 %v1693
      %2102 = vmatmul.mubr.f32.gmra.mrb[0].mxu0 %v1692
      %v2103 = vpop.f32.mrb[0].mxu0
      %v2104 = vadd.f32 %v2027, %v2103
      %v2105 = vpop.f32.mrb[0].mxu0
      %v2106 = vadd.f32 %v2029, %v2105
      %2107 = vdwg.mxu0
      %2108 = vmatprep.subr.mxu0 %v1827
      %2109 = vmatpush1.msra.mxu0 %v1826
      %2110 = vmatprep.subr.mxu0 %v1829
      %2111 = vmatpush1.msra.mxu0 %v1828
      %2112 = vmatprep.subr.mxu0 %v1831
      %2113 = vmatpush1.msra.mxu0 %v1830
      %2114 = vmatprep.subr.mxu0 %v1833
      %2115 = vmatpush1.msra.mxu0 %v1832
      %2116 = vmatprep.subr.mxu0 %v1835
      %2117 = vmatpush1.msra.mxu0 %v1834
      %2118 = vmatprep.subr.mxu0 %v1837
      %2119 = vmatpush1.msra.mxu0 %v1836
      %2120 = vmatprep.subr.mxu0 %v1839
      %2121 = vmatpush1.msra.mxu0 %v1838
      %2122 = vmatprep.subr.mxu0 %v1841
      %2123 = vmatpush1.msra.mxu0 %v1840
      %2124 = vmatprep.subr.mxu0 %v1843
      %2125 = vmatpush1.msra.mxu0 %v1842
      %2126 = vmatprep.subr.mxu0 %v1845
      %2127 = vmatpush1.msra.mxu0 %v1844
      %2128 = vmatprep.subr.mxu0 %v1847
      %2129 = vmatpush1.msra.mxu0 %v1846
      %2130 = vmatprep.subr.mxu0 %v1849
      %2131 = vmatpush1.msra.mxu0 %v1848
      %2132 = vmatprep.subr.mxu0 %v1851
      %2133 = vmatpush1.msra.mxu0 %v1850
      %2134 = vmatprep.subr.mxu0 %v1853
      %2135 = vmatpush1.msra.mxu0 %v1852
      %2136 = vmatprep.subr.mxu0 %v1855
      %2137 = vmatpush1.msra.mxu0 %v1854
      %2138 = vmatprep.subr.mxu0 %v1857
      %2139 = vmatpush1.msra.mxu0 %v1856
      %2140 = vmatprep.subr.mxu0 %v1859
      %2141 = vmatpush1.msra.mxu0 %v1858
      %2142 = vmatprep.subr.mxu0 %v1861
      %2143 = vmatpush1.msra.mxu0 %v1860
      %2144 = vmatprep.subr.mxu0 %v1863
      %2145 = vmatpush1.msra.mxu0 %v1862
      %2146 = vmatprep.subr.mxu0 %v1865
      %2147 = vmatpush1.msra.mxu0 %v1864
      %2148 = vmatprep.subr.mxu0 %v1867
      %2149 = vmatpush1.msra.mxu0 %v1866
      %2150 = vmatprep.subr.mxu0 %v1869
      %2151 = vmatpush1.msra.mxu0 %v1868
      %2152 = vmatprep.subr.mxu0 %v1871
      %2153 = vmatpush1.msra.mxu0 %v1870
      %2154 = vmatprep.subr.mxu0 %v1873
      %2155 = vmatpush1.msra.mxu0 %v1872
      %2156 = vmatprep.subr.mxu0 %v1875
      %2157 = vmatpush1.msra.mxu0 %v1874
      %2158 = vmatprep.subr.mxu0 %v1877
      %2159 = vmatpush1.msra.mxu0 %v1876
      %2160 = vmatprep.subr.mxu0 %v1879
      %2161 = vmatpush1.msra.mxu0 %v1878
      %2162 = vmatprep.subr.mxu0 %v1881
      %2163 = vmatpush1.msra.mxu0 %v1880
      %2164 = vmatprep.subr.mxu0 %v1883
      %2165 = vmatpush1.msra.mxu0 %v1882
      %2166 = vmatprep.subr.mxu0 %v1885
      %2167 = vmatpush1.msra.mxu0 %v1884
      %2168 = vmatprep.subr.mxu0 %v1887
      %2169 = vmatpush1.msra.mxu0 %v1886
      %2170 = vmatprep.subr.mxu0 %v1889
      %2171 = vmatpush1.msra.mxu0 %v1888
      %2172 = vmatprep.mubr.f32.mxu0 %v1687
      %2173 = vmatmul.mubr.f32.gmra.mrb[0].mxu0 %v1686
      %v2174 = vpop.f32.mrb[0].mxu0
      %v2175 = vadd.f32 %v2098, %v2174
      %v2176 = vpop.f32.mrb[0].mxu0
      %v2177 = vadd.f32 %v2100, %v2176
      %2178 = vmatprep.mubr.f32.mxu0 %v1695
      %2179 = vmatmul.mubr.f32.gmra.mrb[0].mxu0 %v1694
      %v2180 = vpop.f32.mrb[0].mxu0
      %v2181 = vadd.f32 %v2104, %v2180
      %v2182 = vpop.f32.mrb[0].mxu0
      %v2183 = vadd.f32 %v2106, %v2182
      %2184 = vdwg.mxu0
      %2185 = vmatprep.subr.mxu0 %v1891
      %2186 = vmatpush1.msra.mxu0 %v1890
      %2187 = vmatprep.subr.mxu0 %v1893
      %2188 = vmatpush1.msra.mxu0 %v1892
      %2189 = vmatprep.subr.mxu0 %v1895
      %2190 = vmatpush1.msra.mxu0 %v1894
      %2191 = vmatprep.subr.mxu0 %v1897
      %2192 = vmatpush1.msra.mxu0 %v1896
      %2193 = vmatprep.subr.mxu0 %v1899
      %2194 = vmatpush1.msra.mxu0 %v1898
      %2195 = vmatprep.subr.mxu0 %v1901
      %2196 = vmatpush1.msra.mxu0 %v1900
      %2197 = vmatprep.subr.mxu0 %v1903
      %2198 = vmatpush1.msra.mxu0 %v1902
      %2199 = vmatprep.subr.mxu0 %v1905
      %2200 = vmatpush1.msra.mxu0 %v1904
      %2201 = vmatprep.subr.mxu0 %v1907
      %2202 = vmatpush1.msra.mxu0 %v1906
      %2203 = vmatprep.subr.mxu0 %v1909
      %2204 = vmatpush1.msra.mxu0 %v1908
      %2205 = vmatprep.subr.mxu0 %v1911
      %2206 = vmatpush1.msra.mxu0 %v1910
      %2207 = vmatprep.subr.mxu0 %v1913
      %2208 = vmatpush1.msra.mxu0 %v1912
      %2209 = vmatprep.subr.mxu0 %v1915
      %2210 = vmatpush1.msra.mxu0 %v1914
      %2211 = vmatprep.subr.mxu0 %v1917
      %2212 = vmatpush1.msra.mxu0 %v1916
      %2213 = vmatprep.subr.mxu0 %v1919
      %2214 = vmatpush1.msra.mxu0 %v1918
      %2215 = vmatprep.subr.mxu0 %v1921
      %2216 = vmatpush1.msra.mxu0 %v1920
      %2217 = vmatprep.subr.mxu0 %v1923
      %2218 = vmatpush1.msra.mxu0 %v1922
      %2219 = vmatprep.subr.mxu0 %v1925
      %2220 = vmatpush1.msra.mxu0 %v1924
      %2221 = vmatprep.subr.mxu0 %v1927
      %2222 = vmatpush1.msra.mxu0 %v1926
      %2223 = vmatprep.subr.mxu0 %v1929
      %2224 = vmatpush1.msra.mxu0 %v1928
      %2225 = vmatprep.subr.mxu0 %v1931
      %2226 = vmatpush1.msra.mxu0 %v1930
      %2227 = vmatprep.subr.mxu0 %v1933
      %2228 = vmatpush1.msra.mxu0 %v1932
      %2229 = vmatprep.subr.mxu0 %v1935
      %2230 = vmatpush1.msra.mxu0 %v1934
      %2231 = vmatprep.subr.mxu0 %v1937
      %2232 = vmatpush1.msra.mxu0 %v1936
      %2233 = vmatprep.subr.mxu0 %v1939
      %2234 = vmatpush1.msra.mxu0 %v1938
      %2235 = vmatprep.subr.mxu0 %v1941
      %2236 = vmatpush1.msra.mxu0 %v1940
      %2237 = vmatprep.subr.mxu0 %v1943
      %2238 = vmatpush1.msra.mxu0 %v1942
      %2239 = vmatprep.subr.mxu0 %v1945
      %2240 = vmatpush1.msra.mxu0 %v1944
      %2241 = vmatprep.subr.mxu0 %v1947
      %2242 = vmatpush1.msra.mxu0 %v1946
      %2243 = vmatprep.subr.mxu0 %v1949
      %2244 = vmatpush1.msra.mxu0 %v1948
      %2245 = vmatprep.subr.mxu0 %v1951
      %2246 = vmatpush1.msra.mxu0 %v1950
      %2247 = vmatprep.subr.mxu0 %v1953
      %2248 = vmatpush1.msra.mxu0 %v1952
      %2249 = vmatprep.mubr.f32.mxu0 %v1689
      %2250 = vmatmul.mubr.f32.gmra.mrb[0].mxu0 %v1688
      %v2251 = vpop.f32.mrb[0].mxu0
      %v2252 = vadd.f32 %v2175, %v2251
      %v2253 = vpop.f32.mrb[0].mxu0
      %v2254 = vadd.f32 %v2177, %v2253
      %2255 = vmatprep.mubr.f32.mxu0 %v1697
      %2256 = vmatmul.mubr.f32.gmra.mrb[0].mxu0 %v1696
      %v2257 = vpop.f32.mrb[0].mxu0
      %v2258 = vadd.f32 %v2181, %v2257
      %v2259 = vpop.f32.mrb[0].mxu0
      %v2260 = vadd.f32 %v2183, %v2259
      %2261 = vdwg.mxu0
      %2262 = vrot.lane.b32.xlu0 %v2252, 9
      %v2263 = vpop.permute.xlu0 %2262
      %2264 = vrot.lane.b32.xlu0 %v2258, 9
      %v2265 = vpop.permute.xlu0 %2264
      %2266 = vrot.lane.b32.xlu0 %v2254, 9
      %v2267 = vpop.permute.xlu0 %2266
      %2268 = vrot.lane.b32.xlu0 %v2260, 9
      %v2269 = vpop.permute.xlu0 %2268
      %vm2270 = vcmp.lt.s32.totalorder %v518, 9
      %v2271 = vsel %vm2270, %v2263, %v2267
      %v2272 = vsel %vm2270, %v2265, %v2269
      %v2273 = vsel %vm2270, %v2267, %v2263
      %v2274 = vsel %vm2270, %v2269, %v2265
      %v2275 = vld [vmem:[%s10] sm:$0x3]
      %v2277 = vlaneseq
      %v2278 = vshrl.u32 %v2277, 7
      %v2279 = vsub.s32 0, %v2278
      %v2280 = vrot.slane %v2275, %v2279
      %v2281 = vlaneseq
      %v2282 = vshrl.u32 %v2281, 7
      %v2283 = vsub.s32 1, %v2282
      %v2284 = vrot.slane %v2275, %v2283
      %v2287 = vmul.f32 %v2273, %v2280
      %v2288 = vmul.f32 %v2271, %v2284
      %v2289 = vmul.f32 %v2274, %v2280
      %v2290 = vmul.f32 %v2272, %v2284
      %2291 = vrot.lane.b32.xlu0 %v2252, 8
      %v2292 = vpop.permute.xlu0 %2291
      %2293 = vrot.lane.b32.xlu0 %v2258, 8
      %v2294 = vpop.permute.xlu0 %2293
      %2295 = vrot.lane.b32.xlu0 %v2254, 8
      %v2296 = vpop.permute.xlu0 %2295
      %2297 = vrot.lane.b32.xlu0 %v2260, 8
      %v2298 = vpop.permute.xlu0 %2297
      %vm2299 = vcmp.lt.s32.totalorder %v518, 8
      %v2300 = vsel %vm2299, %v2292, %v2296
      %v2301 = vsel %vm2299, %v2294, %v2298
      %v2302 = vsel %vm2299, %v2296, %v2292
      %v2303 = vsel %vm2299, %v2298, %v2294
      %s2304 = scalar_lea.vmem %s10, 2
      %v2305 = vld [vmem:[%s2304] sm:$0x3]
      %v2307 = vlaneseq
      %v2308 = vshrl.u32 %v2307, 7
      %v2309 = vsub.s32 0, %v2308
      %v2310 = vrot.slane %v2305, %v2309
      %v2311 = vlaneseq
      %v2312 = vshrl.u32 %v2311, 7
      %v2313 = vsub.s32 1, %v2312
      %v2314 = vrot.slane %v2305, %v2313
      %v2317 = vmul.f32 %v2302, %v2310
      %v2318 = vmul.f32 %v2300, %v2314
      %v2319 = vmul.f32 %v2303, %v2310
      %v2320 = vmul.f32 %v2301, %v2314
      %2321 = vrot.lane.b32.xlu0 %v2252, 7
      %v2322 = vpop.permute.xlu0 %2321
      %2323 = vrot.lane.b32.xlu0 %v2258, 7
      %v2324 = vpop.permute.xlu0 %2323
      %2325 = vrot.lane.b32.xlu0 %v2254, 7
      %v2326 = vpop.permute.xlu0 %2325
      %2327 = vrot.lane.b32.xlu0 %v2260, 7
      %v2328 = vpop.permute.xlu0 %2327
      %vm2329 = vcmp.lt.s32.totalorder %v518, 7
      %v2330 = vsel %vm2329, %v2322, %v2326
      %v2331 = vsel %vm2329, %v2324, %v2328
      %v2332 = vsel %vm2329, %v2326, %v2322
      %v2333 = vsel %vm2329, %v2328, %v2324
      %s2334 = scalar_lea.vmem %s10, 4
      %v2335 = vld [vmem:[%s2334] sm:$0x3]
      %v2337 = vlaneseq
      %v2338 = vshrl.u32 %v2337, 7
      %v2339 = vsub.s32 0, %v2338
      %v2340 = vrot.slane %v2335, %v2339
      %v2341 = vlaneseq
      %v2342 = vshrl.u32 %v2341, 7
      %v2343 = vsub.s32 1, %v2342
      %v2344 = vrot.slane %v2335, %v2343
      %v2347 = vmul.f32 %v2332, %v2340
      %v2348 = vmul.f32 %v2330, %v2344
      %v2349 = vmul.f32 %v2333, %v2340
      %v2350 = vmul.f32 %v2331, %v2344
      %2351 = vrot.lane.b32.xlu0 %v2252, 1
      %v2352 = vpop.permute.xlu0 %2351
      %2353 = vrot.lane.b32.xlu0 %v2258, 1
      %v2354 = vpop.permute.xlu0 %2353
      %2355 = vrot.lane.b32.xlu0 %v2254, 1
      %v2356 = vpop.permute.xlu0 %2355
      %2357 = vrot.lane.b32.xlu0 %v2260, 1
      %v2358 = vpop.permute.xlu0 %2357
      %v2359 = vsel %vm746, %v2352, %v2356
      %v2360 = vsel %vm746, %v2354, %v2358
      %v2361 = vsel %vm746, %v2356, %v2352
      %v2362 = vsel %vm746, %v2358, %v2354
      %s2363 = scalar_lea.vmem %s10, 6
      %v2364 = vld [vmem:[%s2363] sm:$0x3]
      %v2366 = vlaneseq
      %v2367 = vshrl.u32 %v2366, 7
      %v2368 = vsub.s32 0, %v2367
      %v2369 = vrot.slane %v2364, %v2368
      %v2370 = vlaneseq
      %v2371 = vshrl.u32 %v2370, 7
      %v2372 = vsub.s32 1, %v2371
      %v2373 = vrot.slane %v2364, %v2372
      %v2376 = vmul.f32 %v2361, %v2369
      %v2377 = vmul.f32 %v2359, %v2373
      %v2378 = vmul.f32 %v2362, %v2369
      %v2379 = vmul.f32 %v2360, %v2373
      %s2380 = scalar_lea.vmem %s10, 8
      %v2381 = vld [vmem:[%s2380] sm:$0x3]
      %v2383 = vlaneseq
      %v2384 = vshrl.u32 %v2383, 7
      %v2385 = vsub.s32 0, %v2384
      %v2386 = vrot.slane %v2381, %v2385
      %v2387 = vlaneseq
      %v2388 = vshrl.u32 %v2387, 7
      %v2389 = vsub.s32 1, %v2388
      %v2390 = vrot.slane %v2381, %v2389
      %v2393 = vmul.f32 %v2252, %v2386
      %v2394 = vmul.f32 %v2254, %v2390
      %v2395 = vmul.f32 %v2258, %v2386
      %v2396 = vmul.f32 %v2260, %v2390
      %2397 = vrot.lane.b32.xlu0 %v2252, 127
      %v2398 = vpop.permute.xlu0 %2397
      %2399 = vrot.lane.b32.xlu0 %v2258, 127
      %v2400 = vpop.permute.xlu0 %2399
      %2401 = vrot.lane.b32.xlu0 %v2254, 127
      %v2402 = vpop.permute.xlu0 %2401
      %2403 = vrot.lane.b32.xlu0 %v2260, 127
      %v2404 = vpop.permute.xlu0 %2403
      %v2405 = vsel %vm873, %v2398, %v2402
      %v2406 = vsel %vm873, %v2400, %v2404
      %v2407 = vsel %vm873, %v2402, %v2398
      %v2408 = vsel %vm873, %v2404, %v2400
      %s2409 = scalar_lea.vmem %s10, 10
      %v2410 = vld [vmem:[%s2409] sm:$0x3]
      %v2412 = vlaneseq
      %v2413 = vshrl.u32 %v2412, 7
      %v2414 = vsub.s32 0, %v2413
      %v2415 = vrot.slane %v2410, %v2414
      %v2416 = vlaneseq
      %v2417 = vshrl.u32 %v2416, 7
      %v2418 = vsub.s32 1, %v2417
      %v2419 = vrot.slane %v2410, %v2418
      %v2422 = vmul.f32 %v2405, %v2415
      %v2423 = vmul.f32 %v2407, %v2419
      %v2424 = vmul.f32 %v2406, %v2415
      %v2425 = vmul.f32 %v2408, %v2419
      %2426 = vrot.lane.b32.xlu0 %v2252, 121
      %v2427 = vpop.permute.xlu0 %2426
      %2428 = vrot.lane.b32.xlu0 %v2258, 121
      %v2429 = vpop.permute.xlu0 %2428
      %2430 = vrot.lane.b32.xlu0 %v2254, 121
      %v2431 = vpop.permute.xlu0 %2430
      %2432 = vrot.lane.b32.xlu0 %v2260, 121
      %v2433 = vpop.permute.xlu0 %2432
      %vm2434 = vcmp.lt.s32.totalorder %v518, 121
      %v2435 = vsel %vm2434, %v2427, %v2431
      %v2436 = vsel %vm2434, %v2429, %v2433
      %v2437 = vsel %vm2434, %v2431, %v2427
      %v2438 = vsel %vm2434, %v2433, %v2429
      %s2439 = scalar_lea.vmem %s10, 12
      %v2440 = vld [vmem:[%s2439] sm:$0x3]
      %v2442 = vlaneseq
      %v2443 = vshrl.u32 %v2442, 7
      %v2444 = vsub.s32 0, %v2443
      %v2445 = vrot.slane %v2440, %v2444
      %v2446 = vlaneseq
      %v2447 = vshrl.u32 %v2446, 7
      %v2448 = vsub.s32 1, %v2447
      %v2449 = vrot.slane %v2440, %v2448
      %v2452 = vmul.f32 %v2435, %v2445
      %v2453 = vmul.f32 %v2437, %v2449
      %v2454 = vmul.f32 %v2436, %v2445
      %v2455 = vmul.f32 %v2438, %v2449
      %2456 = vrot.lane.b32.xlu0 %v2252, 120
      %v2457 = vpop.permute.xlu0 %2456
      %2458 = vrot.lane.b32.xlu0 %v2258, 120
      %v2459 = vpop.permute.xlu0 %2458
      %2460 = vrot.lane.b32.xlu0 %v2254, 120
      %v2461 = vpop.permute.xlu0 %2460
      %2462 = vrot.lane.b32.xlu0 %v2260, 120
      %v2463 = vpop.permute.xlu0 %2462
      %vm2464 = vcmp.lt.s32.totalorder %v518, 120
      %v2465 = vsel %vm2464, %v2457, %v2461
      %v2466 = vsel %vm2464, %v2459, %v2463
      %v2467 = vsel %vm2464, %v2461, %v2457
      %v2468 = vsel %vm2464, %v2463, %v2459
      %s2469 = scalar_lea.vmem %s10, 14
      %v2470 = vld [vmem:[%s2469] sm:$0x3]
      %v2472 = vlaneseq
      %v2473 = vshrl.u32 %v2472, 7
      %v2474 = vsub.s32 0, %v2473
      %v2475 = vrot.slane %v2470, %v2474
      %v2476 = vlaneseq
      %v2477 = vshrl.u32 %v2476, 7
      %v2478 = vsub.s32 1, %v2477
      %v2479 = vrot.slane %v2470, %v2478
      %v2482 = vmul.f32 %v2465, %v2475
      %v2483 = vmul.f32 %v2467, %v2479
      %v2484 = vmul.f32 %v2466, %v2475
      %v2485 = vmul.f32 %v2468, %v2479
      %2486 = vrot.lane.b32.xlu0 %v2252, 119
      %v2487 = vpop.permute.xlu0 %2486
      %2488 = vrot.lane.b32.xlu0 %v2258, 119
      %v2489 = vpop.permute.xlu0 %2488
      %2490 = vrot.lane.b32.xlu0 %v2254, 119
      %v2491 = vpop.permute.xlu0 %2490
      %2492 = vrot.lane.b32.xlu0 %v2260, 119
      %v2493 = vpop.permute.xlu0 %2492
      %vm2494 = vcmp.lt.s32.totalorder %v518, 119
      %v2495 = vsel %vm2494, %v2487, %v2491
      %v2496 = vsel %vm2494, %v2489, %v2493
      %v2497 = vsel %vm2494, %v2491, %v2487
      %v2498 = vsel %vm2494, %v2493, %v2489
      %s2499 = scalar_lea.vmem %s10, 16
      %v2500 = vld [vmem:[%s2499] sm:$0x3]
      %v2502 = vlaneseq
      %v2503 = vshrl.u32 %v2502, 7
      %v2504 = vsub.s32 0, %v2503
      %v2505 = vrot.slane %v2500, %v2504
      %v2506 = vlaneseq
      %v2507 = vshrl.u32 %v2506, 7
      %v2508 = vsub.s32 1, %v2507
      %v2509 = vrot.slane %v2500, %v2508
      %v2512 = vmul.f32 %v2495, %v2505
      %v2513 = vmul.f32 %v2497, %v2509
      %v2514 = vmul.f32 %v2496, %v2505
      %v2515 = vmul.f32 %v2498, %v2509
      %v2516 = vld [vmem:[%s3] sm:$0xff]
      %v2517 = vld [vmem:[%s3 + $0x8] sm:$0xff]
      %v2518 = vld [vmem:[%s4] sm:$0xff]
      %2520 = vset.pattern.permute.xlu0 0
      %2521 = vperm.xlu0 %2520, %v2518
      %v2522 = vpop.permute.xlu0 %2521
      %vm2524 = vcmask 130048
      %v2526 = vsel %vm2524, %v2517, 0
      %2528 = vmatprep.subr.mxu0 %v2288
      %2529 = vmatpush1.msra.mxu0 %v2287
      %2530 = vmatprep.subr.mxu0 %v2290
      %2531 = vmatpush1.msra.mxu0 %v2289
      %2532 = vmatprep.subr.mxu0 %v2318
      %2533 = vmatpush1.msra.mxu0 %v2317
      %2534 = vmatprep.subr.mxu0 %v2320
      %2535 = vmatpush1.msra.mxu0 %v2319
      %2536 = vmatprep.subr.mxu0 %v2348
      %2537 = vmatpush1.msra.mxu0 %v2347
      %2538 = vmatprep.subr.mxu0 %v2350
      %2539 = vmatpush1.msra.mxu0 %v2349
      %2540 = vmatprep.subr.mxu0 %v2377
      %2541 = vmatpush1.msra.mxu0 %v2376
      %2542 = vmatprep.subr.mxu0 %v2379
      %2543 = vmatpush1.msra.mxu0 %v2378
      %2544 = vmatprep.subr.mxu0 %v2394
      %2545 = vmatpush1.msra.mxu0 %v2393
      %2546 = vmatprep.subr.mxu0 %v2396
      %2547 = vmatpush1.msra.mxu0 %v2395
      %2548 = vmatprep.subr.mxu0 %v2423
      %2549 = vmatpush1.msra.mxu0 %v2422
      %2550 = vmatprep.subr.mxu0 %v2425
      %2551 = vmatpush1.msra.mxu0 %v2424
      %2552 = vmatprep.subr.mxu0 %v2453
      %2553 = vmatpush1.msra.mxu0 %v2452
      %2554 = vmatprep.subr.mxu0 %v2455
      %2555 = vmatpush1.msra.mxu0 %v2454
      %2556 = vmatprep.subr.mxu0 %v2483
      %2557 = vmatpush1.msra.mxu0 %v2482
      %2558 = vmatprep.subr.mxu0 %v2485
      %2559 = vmatpush1.msra.mxu0 %v2484
      %2560 = vmatprep.subr.mxu0 %v2513
      %2561 = vmatpush1.msra.mxu0 %v2512
      %2562 = vmatprep.subr.mxu0 %v2515
      %2563 = vmatpush1.msra.mxu0 %v2514
      %2564 = vmatprep.subr.mxu0 0.0
      %2565 = vmatpush1.msra.mxu0 0.0
      %2566 = vmatprep.subr.mxu0 0.0
      %2567 = vmatpush1.msra.mxu0 0.0
      %2568 = vmatprep.subr.mxu0 0.0
      %2569 = vmatpush1.msra.mxu0 0.0
      %2570 = vmatprep.subr.mxu0 0.0
      %2571 = vmatpush1.msra.mxu0 0.0
      %2572 = vmatprep.subr.mxu0 0.0
      %2573 = vmatpush1.msra.mxu0 0.0
      %2574 = vmatprep.subr.mxu0 0.0
      %2575 = vmatpush1.msra.mxu0 0.0
      %2576 = vmatprep.subr.mxu0 0.0
      %2577 = vmatpush1.msra.mxu0 0.0
      %2578 = vmatprep.subr.mxu0 0.0
      %2579 = vmatpush1.msra.mxu0 0.0
      %2580 = vmatprep.subr.mxu0 0.0
      %2581 = vmatpush1.msra.mxu0 0.0
      %2582 = vmatprep.subr.mxu0 0.0
      %2583 = vmatpush1.msra.mxu0 0.0
      %2584 = vmatprep.subr.mxu0 0.0
      %2585 = vmatpush1.msra.mxu0 0.0
      %2586 = vmatprep.subr.mxu0 0.0
      %2587 = vmatpush1.msra.mxu0 0.0
      %2588 = vmatprep.subr.mxu0 0.0
      %2589 = vmatpush1.msra.mxu0 0.0
      %2590 = vmatprep.subr.mxu0 0.0
      %2591 = vmatpush1.msra.mxu0 0.0
      %2592 = vmatprep.mubr.f32.mxu0 %v2526
      %2593 = vmatmul.mubr.f32.gmra.mrb[0].mxu0 %v2516
      %v2594 = vpop.f32.mrb[0].mxu0
      %v2595 = vadd.f32 %v2522, %v2594
      %v2596 = vpop.f32.mrb[0].mxu0
      %v2597 = vadd.f32 %v2522, %v2596
      %2598 = vdwg.mxu0
      %v2599 = vmax.f32 %v2595, 0.0
      %v2600 = vmax.f32 %v2597, 0.0
      %2601 = vrot.lane.b32.xlu0 %v2599, 127
      %v2602 = vpop.permute.xlu0 %2601
      %2603 = vrot.lane.b32.xlu0 %v2600, 127
      %v2604 = vpop.permute.xlu0 %2603
      %v2605 = vsel %vm873, %v2602, %v2604
      %v2606 = vsel %vm873, %v2604, %v2602
      %2607 = vrot.lane.b32.xlu0 %v2599, 120
      %v2608 = vpop.permute.xlu0 %2607
      %2609 = vrot.lane.b32.xlu0 %v2600, 120
      %v2610 = vpop.permute.xlu0 %2609
      %v2611 = vsel %vm2464, %v2608, %v2610
      %v2612 = vsel %vm2464, %v2610, %v2608
      %2613 = vrot.lane.b32.xlu0 %v2599, 119
      %v2614 = vpop.permute.xlu0 %2613
      %2615 = vrot.lane.b32.xlu0 %v2600, 119
      %v2616 = vpop.permute.xlu0 %2615
      %v2617 = vsel %vm2494, %v2614, %v2616
      %v2618 = vsel %vm2494, %v2616, %v2614
      %v2619 = vmax.f32 %v2599, %v2605
      %v2620 = vmax.f32 %v2600, %v2606
      %v2621 = vmax.f32 %v2611, %v2617
      %v2622 = vmax.f32 %v2612, %v2618
      %v2623 = vmax.f32 %v2619, %v2621
      %v2624 = vmax.f32 %v2620, %v2622
      %v2625 = vld [vmem:[%s12] sm:$0xff]
      %v2626 = vld [vmem:[%s12 + $0x8] sm:$0xff]
      %v2627 = vld [vmem:[%s12 + $0x10] sm:$0xff]
      %v2628 = vld [vmem:[%s12 + $0x18] sm:$0xff]
      %v2629 = vld [vmem:[%s12 + $0x20] sm:$0xff]
      %v2630 = vld [vmem:[%s12 + $0x28] sm:$0xff]
      %v2631 = vld [vmem:[%s12 + $0x30] sm:$0xff]
      %v2632 = vld [vmem:[%s12 + $0x38] sm:$0xff]
      %v2633 = vld [vmem:[%s12 + $0x40] sm:$0xff]
      %v2634 = vld [vmem:[%s12 + $0x48] sm:$0xff]
      %v2635 = vld [vmem:[%s12 + $0x50] sm:$0xff]
      %v2636 = vld [vmem:[%s12 + $0x58] sm:$0xff]
      %v2637 = vld [vmem:[%s12 + $0x60] sm:$0xff]
      %v2638 = vld [vmem:[%s12 + $0x68] sm:$0xff]
      %v2639 = vld [vmem:[%s12 + $0x70] sm:$0xff]
      %v2640 = vld [vmem:[%s12 + $0x78] sm:$0xff]
      %v2641 = vld [vmem:[%s12 + $0x80] sm:$0xff]
      %v2642 = vld [vmem:[%s12 + $0x88] sm:$0xff]
      %v2643 = vld [vmem:[%s12 + $0x90] sm:$0xff]
      %v2644 = vld [vmem:[%s12 + $0x98] sm:$0xff]
      %v2645 = vld [vmem:[%s12 + $0xa0] sm:$0xff]
      %v2646 = vld [vmem:[%s12 + $0xa8] sm:$0xff]
      %v2647 = vld [vmem:[%s12 + $0xb0] sm:$0xff]
      %v2648 = vld [vmem:[%s12 + $0xb8] sm:$0xff]
      %v2649 = vld [vmem:[%s12 + $0xc0] sm:$0xff]
      %v2650 = vld [vmem:[%s12 + $0xc8] sm:$0xff]
      %v2651 = vld [vmem:[%s12 + $0xd0] sm:$0xff]
      %v2652 = vld [vmem:[%s12 + $0xd8] sm:$0xff]
      %v2653 = vld [vmem:[%s12 + $0xe0] sm:$0xff]
      %v2654 = vld [vmem:[%s12 + $0xe8] sm:$0xff]
      %v2655 = vld [vmem:[%s12 + $0xf0] sm:$0xff]
      %v2656 = vld [vmem:[%s12 + $0xf8] sm:$0xff]
      %2657 = vmatprep.subr.mxu0 0.0
      %2658 = vmatpush1.msra.mxu0 %v2625
      %2659 = vmatprep.subr.mxu0 0.0
      %2660 = vmatpush1.msra.mxu0 %v2626
      %2661 = vmatprep.subr.mxu0 0.0
      %2662 = vmatpush1.msra.mxu0 %v2627
      %2663 = vmatprep.subr.mxu0 0.0
      %2664 = vmatpush1.msra.mxu0 %v2628
      %2665 = vmatprep.subr.mxu0 0.0
      %2666 = vmatpush1.msra.mxu0 %v2629
      %2667 = vmatprep.subr.mxu0 0.0
      %2668 = vmatpush1.msra.mxu0 %v2630
      %2669 = vmatprep.subr.mxu0 0.0
      %2670 = vmatpush1.msra.mxu0 %v2631
      %2671 = vmatprep.subr.mxu0 0.0
      %2672 = vmatpush1.msra.mxu0 %v2632
      %2673 = vmatprep.subr.mxu0 0.0
      %2674 = vmatpush1.msra.mxu0 %v2633
      %2675 = vmatprep.subr.mxu0 0.0
      %2676 = vmatpush1.msra.mxu0 %v2634
      %2677 = vmatprep.subr.mxu0 0.0
      %2678 = vmatpush1.msra.mxu0 %v2635
      %2679 = vmatprep.subr.mxu0 0.0
      %2680 = vmatpush1.msra.mxu0 %v2636
      %2681 = vmatprep.subr.mxu0 0.0
      %2682 = vmatpush1.msra.mxu0 %v2637
      %2683 = vmatprep.subr.mxu0 0.0
      %2684 = vmatpush1.msra.mxu0 %v2638
      %2685 = vmatprep.subr.mxu0 0.0
      %2686 = vmatpush1.msra.mxu0 %v2639
      %2687 = vmatprep.subr.mxu0 0.0
      %2688 = vmatpush1.msra.mxu0 %v2640
      %2689 = vmatprep.subr.mxu0 0.0
      %2690 = vmatpush1.msra.mxu0 %v2641
      %2691 = vmatprep.subr.mxu0 0.0
      %2692 = vmatpush1.msra.mxu0 %v2642
      %2693 = vmatprep.subr.mxu0 0.0
      %2694 = vmatpush1.msra.mxu0 %v2643
      %2695 = vmatprep.subr.mxu0 0.0
      %2696 = vmatpush1.msra.mxu0 %v2644
      %2697 = vmatprep.subr.mxu0 0.0
      %2698 = vmatpush1.msra.mxu0 %v2645
      %2699 = vmatprep.subr.mxu0 0.0
      %2700 = vmatpush1.msra.mxu0 %v2646
      %2701 = vmatprep.subr.mxu0 0.0
      %2702 = vmatpush1.msra.mxu0 %v2647
      %2703 = vmatprep.subr.mxu0 0.0
      %2704 = vmatpush1.msra.mxu0 %v2648
      %2705 = vmatprep.subr.mxu0 0.0
      %2706 = vmatpush1.msra.mxu0 %v2649
      %2707 = vmatprep.subr.mxu0 0.0
      %2708 = vmatpush1.msra.mxu0 %v2650
      %2709 = vmatprep.subr.mxu0 0.0
      %2710 = vmatpush1.msra.mxu0 %v2651
      %2711 = vmatprep.subr.mxu0 0.0
      %2712 = vmatpush1.msra.mxu0 %v2652
      %2713 = vmatprep.subr.mxu0 0.0
      %2714 = vmatpush1.msra.mxu0 %v2653
      %2715 = vmatprep.subr.mxu0 0.0
      %2716 = vmatpush1.msra.mxu0 %v2654
      %2717 = vmatprep.subr.mxu0 0.0
      %2718 = vmatpush1.msra.mxu0 %v2655
      %2719 = vmatprep.subr.mxu0 0.0
      %2720 = vmatpush1.msra.mxu0 %v2656
      %2721 = vmatprep.mubr.f32.mxu0 %v2624
      %2722 = vmatmul.mubr.f32.gmra.mrb[0].mxu0 %v2623
      %v2723 = vpop.f32.mrb[0].mxu0
      %v2724 = vadd.f32 0.0, %v2723
      %v2725 = vpop.f32.mrb[0].mxu0
      %2726 = vdwg.mxu0
      %v2727 = vld [vmem:[%s13] sm:$0xff]
      %v2728 = vld [vmem:[%s13 + $0x8] sm:$0xff]
      %v2729 = vld [vmem:[%s13 + $0x10] sm:$0xff]
      %v2730 = vld [vmem:[%s13 + $0x18] sm:$0xff]
      %v2731 = vld [vmem:[%s13 + $0x20] sm:$0xff]
      %v2732 = vld [vmem:[%s13 + $0x28] sm:$0xff]
      %v2733 = vld [vmem:[%s13 + $0x30] sm:$0xff]
      %v2734 = vld [vmem:[%s13 + $0x38] sm:$0xff]
      %v2735 = vld [vmem:[%s13 + $0x40] sm:$0xff]
      %v2736 = vld [vmem:[%s13 + $0x48] sm:$0xff]
      %v2737 = vld [vmem:[%s13 + $0x50] sm:$0xff]
      %v2738 = vld [vmem:[%s13 + $0x58] sm:$0xff]
      %v2739 = vld [vmem:[%s13 + $0x60] sm:$0xff]
      %v2740 = vld [vmem:[%s13 + $0x68] sm:$0xff]
      %v2741 = vld [vmem:[%s13 + $0x70] sm:$0xff]
      %v2742 = vld [vmem:[%s13 + $0x78] sm:$0xff]
      %vm2743 = vcmask 523264
      %v2745 = vsel %vm2743, %v2724, 0
      %2747 = vmatprep.subr.mxu0 %v2728
      %2748 = vmatpush1.msra.mxu0 %v2727
      %2749 = vmatprep.subr.mxu0 %v2730
      %2750 = vmatpush1.msra.mxu0 %v2729
      %2751 = vmatprep.subr.mxu0 %v2732
      %2752 = vmatpush1.msra.mxu0 %v2731
      %2753 = vmatprep.subr.mxu0 %v2734
      %2754 = vmatpush1.msra.mxu0 %v2733
      %2755 = vmatprep.subr.mxu0 %v2736
      %2756 = vmatpush1.msra.mxu0 %v2735
      %2757 = vmatprep.subr.mxu0 %v2738
      %2758 = vmatpush1.msra.mxu0 %v2737
      %2759 = vmatprep.subr.mxu0 %v2740
      %2760 = vmatpush1.msra.mxu0 %v2739
      %2761 = vmatprep.subr.mxu0 %v2742
      %2762 = vmatpush1.msra.mxu0 %v2741
      %2763 = vmatprep.subr.mxu0 0.0
      %2764 = vmatpush1.msra.mxu0 0.0
      %2765 = vmatprep.subr.mxu0 0.0
      %2766 = vmatpush1.msra.mxu0 0.0
      %2767 = vmatprep.subr.mxu0 0.0
      %2768 = vmatpush1.msra.mxu0 0.0
      %2769 = vmatprep.subr.mxu0 0.0
      %2770 = vmatpush1.msra.mxu0 0.0
      %2771 = vmatprep.subr.mxu0 0.0
      %2772 = vmatpush1.msra.mxu0 0.0
      %2773 = vmatprep.subr.mxu0 0.0
      %2774 = vmatpush1.msra.mxu0 0.0
      %2775 = vmatprep.subr.mxu0 0.0
      %2776 = vmatpush1.msra.mxu0 0.0
      %2777 = vmatprep.subr.mxu0 0.0
      %2778 = vmatpush1.msra.mxu0 0.0
      %2779 = vmatprep.subr.mxu0 0.0
      %2780 = vmatpush1.msra.mxu0 0.0
      %2781 = vmatprep.subr.mxu0 0.0
      %2782 = vmatpush1.msra.mxu0 0.0
      %2783 = vmatprep.subr.mxu0 0.0
      %2784 = vmatpush1.msra.mxu0 0.0
      %2785 = vmatprep.subr.mxu0 0.0
      %2786 = vmatpush1.msra.mxu0 0.0
      %2787 = vmatprep.subr.mxu0 0.0
      %2788 = vmatpush1.msra.mxu0 0.0
      %2789 = vmatprep.subr.mxu0 0.0
      %2790 = vmatpush1.msra.mxu0 0.0
      %2791 = vmatprep.subr.mxu0 0.0
      %2792 = vmatpush1.msra.mxu0 0.0
      %2793 = vmatprep.subr.mxu0 0.0
      %2794 = vmatpush1.msra.mxu0 0.0
      %2795 = vmatprep.subr.mxu0 0.0
      %2796 = vmatpush1.msra.mxu0 0.0
      %2797 = vmatprep.subr.mxu0 0.0
      %2798 = vmatpush1.msra.mxu0 0.0
      %2799 = vmatprep.subr.mxu0 0.0
      %2800 = vmatpush1.msra.mxu0 0.0
      %2801 = vmatprep.subr.mxu0 0.0
      %2802 = vmatpush1.msra.mxu0 0.0
      %2803 = vmatprep.subr.mxu0 0.0
      %2804 = vmatpush1.msra.mxu0 0.0
      %2805 = vmatprep.subr.mxu0 0.0
      %2806 = vmatpush1.msra.mxu0 0.0
      %2807 = vmatprep.subr.mxu0 0.0
      %2808 = vmatpush1.msra.mxu0 0.0
      %2809 = vmatprep.subr.mxu0 0.0
      %2810 = vmatpush1.msra.mxu0 0.0
      %2811 = vmatprep.mubr.f32.mxu0 0.0
      %2812 = vmatmul.mubr.f32.gmra.mrb[0].mxu0 %v2745
      %v2813 = vpop.f32.mrb[0].mxu0
      %v2814 = vadd.f32 0.0, %v2813
      %v2815 = vpop.f32.mrb[0].mxu0
      %v2816 = vadd.f32 0.0, %v2815
      %2817 = vdwg.mxu0
      %2818 = vrot.lane.b32.xlu0 %v2814, 9
      %v2819 = vpop.permute.xlu0 %2818
      %2820 = vrot.lane.b32.xlu0 %v2816, 9
      %v2821 = vpop.permute.xlu0 %2820
      %v2822 = vsel %vm2270, %v2819, %v2821
      %v2823 = vsel %vm2270, %v2821, %v2819
      %v2824 = vmul.f32 %v2823, %v2280
      %v2825 = vmul.f32 %v2822, %v2284
      %2826 = vrot.lane.b32.xlu0 %v2814, 8
      %v2827 = vpop.permute.xlu0 %2826
      %2828 = vrot.lane.b32.xlu0 %v2816, 8
      %v2829 = vpop.permute.xlu0 %2828
      %v2830 = vsel %vm2299, %v2827, %v2829
      %v2831 = vsel %vm2299, %v2829, %v2827
      %v2832 = vmul.f32 %v2831, %v2310
      %v2833 = vmul.f32 %v2830, %v2314
      %2834 = vrot.lane.b32.xlu0 %v2814, 7
      %v2835 = vpop.permute.xlu0 %2834
      %2836 = vrot.lane.b32.xlu0 %v2816, 7
      %v2837 = vpop.permute.xlu0 %2836
      %v2838 = vsel %vm2329, %v2835, %v2837
      %v2839 = vsel %vm2329, %v2837, %v2835
      %v2840 = vmul.f32 %v2839, %v2340
      %v2841 = vmul.f32 %v2838, %v2344
      %2842 = vrot.lane.b32.xlu0 %v2814, 1
      %v2843 = vpop.permute.xlu0 %2842
      %2844 = vrot.lane.b32.xlu0 %v2816, 1
      %v2845 = vpop.permute.xlu0 %2844
      %v2846 = vsel %vm746, %v2843, %v2845
      %v2847 = vsel %vm746, %v2845, %v2843
      %v2848 = vmul.f32 %v2847, %v2369
      %v2849 = vmul.f32 %v2846, %v2373
      %v2850 = vmul.f32 %v2814, %v2386
      %v2851 = vmul.f32 %v2816, %v2390
      %2852 = vrot.lane.b32.xlu0 %v2814, 127
      %v2853 = vpop.permute.xlu0 %2852
      %2854 = vrot.lane.b32.xlu0 %v2816, 127
      %v2855 = vpop.permute.xlu0 %2854
      %v2856 = vsel %vm873, %v2853, %v2855
      %v2857 = vsel %vm873, %v2855, %v2853
      %v2858 = vmul.f32 %v2856, %v2415
      %v2859 = vmul.f32 %v2857, %v2419
      %2860 = vrot.lane.b32.xlu0 %v2814, 121
      %v2861 = vpop.permute.xlu0 %2860
      %2862 = vrot.lane.b32.xlu0 %v2816, 121
      %v2863 = vpop.permute.xlu0 %2862
      %v2864 = vsel %vm2434, %v2861, %v2863
      %v2865 = vsel %vm2434, %v2863, %v2861
      %v2866 = vmul.f32 %v2864, %v2445
      %v2867 = vmul.f32 %v2865, %v2449
      %2868 = vrot.lane.b32.xlu0 %v2814, 120
      %v2869 = vpop.permute.xlu0 %2868
      %2870 = vrot.lane.b32.xlu0 %v2816, 120
      %v2871 = vpop.permute.xlu0 %2870
      %v2872 = vsel %vm2464, %v2869, %v2871
      %v2873 = vsel %vm2464, %v2871, %v2869
      %v2874 = vmul.f32 %v2872, %v2475
      %v2875 = vmul.f32 %v2873, %v2479
      %2876 = vrot.lane.b32.xlu0 %v2814, 119
      %v2877 = vpop.permute.xlu0 %2876
      %2878 = vrot.lane.b32.xlu0 %v2816, 119
      %v2879 = vpop.permute.xlu0 %2878
      %v2880 = vsel %vm2494, %v2877, %v2879
      %v2881 = vsel %vm2494, %v2879, %v2877
      %v2882 = vmul.f32 %v2880, %v2505
      %v2883 = vmul.f32 %v2881, %v2509
      %v2884 = vld [vmem:[%s5] sm:$0xff]
      %v2885 = vld [vmem:[%s5 + $0x8] sm:$0xff]
      %v2886 = vld [vmem:[%s6] sm:$0xff]
      %v2887 = vld [vmem:[%s6 + $0x8] sm:$0xff]
      %2889 = vset.pattern.permute.xlu0 0
      %2890 = vperm.xlu0 %2889, %v2886
      %v2891 = vpop.permute.xlu0 %2890
      %2894 = vset.pattern.permute.xlu0 0
      %2895 = vperm.xlu0 %2894, %v2887
      %v2896 = vpop.permute.xlu0 %2895
      %v2899 = vsel %vm1175, %v2884, 0
      %v2902 = vsel %vm1175, %v2885, 0
      %2904 = vmatprep.subr.mxu0 %v2825
      %2905 = vmatpush1.msra.mxu0 %v2824
      %2906 = vmatprep.subr.mxu0 %v2833
      %2907 = vmatpush1.msra.mxu0 %v2832
      %2908 = vmatprep.subr.mxu0 %v2841
      %2909 = vmatpush1.msra.mxu0 %v2840
      %2910 = vmatprep.subr.mxu0 %v2849
      %2911 = vmatpush1.msra.mxu0 %v2848
      %2912 = vmatprep.subr.mxu0 %v2851
      %2913 = vmatpush1.msra.mxu0 %v2850
      %2914 = vmatprep.subr.mxu0 %v2859
      %2915 = vmatpush1.msra.mxu0 %v2858
      %2916 = vmatprep.subr.mxu0 %v2867
      %2917 = vmatpush1.msra.mxu0 %v2866
      %2918 = vmatprep.subr.mxu0 %v2875
      %2919 = vmatpush1.msra.mxu0 %v2874
      %2920 = vmatprep.subr.mxu0 %v2883
      %2921 = vmatpush1.msra.mxu0 %v2882
      %2922 = vmatprep.subr.mxu0 0.0
      %2923 = vmatpush1.msra.mxu0 0.0
      %2924 = vmatprep.subr.mxu0 0.0
      %2925 = vmatpush1.msra.mxu0 0.0
      %2926 = vmatprep.subr.mxu0 0.0
      %2927 = vmatpush1.msra.mxu0 0.0
      %2928 = vmatprep.subr.mxu0 0.0
      %2929 = vmatpush1.msra.mxu0 0.0
      %2930 = vmatprep.subr.mxu0 0.0
      %2931 = vmatpush1.msra.mxu0 0.0
      %2932 = vmatprep.subr.mxu0 0.0
      %2933 = vmatpush1.msra.mxu0 0.0
      %2934 = vmatprep.subr.mxu0 0.0
      %2935 = vmatpush1.msra.mxu0 0.0
      %2936 = vmatprep.subr.mxu0 0.0
      %2937 = vmatpush1.msra.mxu0 0.0
      %2938 = vmatprep.subr.mxu0 0.0
      %2939 = vmatpush1.msra.mxu0 0.0
      %2940 = vmatprep.subr.mxu0 0.0
      %2941 = vmatpush1.msra.mxu0 0.0
      %2942 = vmatprep.subr.mxu0 0.0
      %2943 = vmatpush1.msra.mxu0 0.0
      %2944 = vmatprep.subr.mxu0 0.0
      %2945 = vmatpush1.msra.mxu0 0.0
      %2946 = vmatprep.subr.mxu0 0.0
      %2947 = vmatpush1.msra.mxu0 0.0
      %2948 = vmatprep.subr.mxu0 0.0
      %2949 = vmatpush1.msra.mxu0 0.0
      %2950 = vmatprep.subr.mxu0 0.0
      %2951 = vmatpush1.msra.mxu0 0.0
      %2952 = vmatprep.subr.mxu0 0.0
      %2953 = vmatpush1.msra.mxu0 0.0
      %2954 = vmatprep.subr.mxu0 0.0
      %2955 = vmatpush1.msra.mxu0 0.0
      %2956 = vmatprep.subr.mxu0 0.0
      %2957 = vmatpush1.msra.mxu0 0.0
      %2958 = vmatprep.subr.mxu0 0.0
      %2959 = vmatpush1.msra.mxu0 0.0
      %2960 = vmatprep.subr.mxu0 0.0
      %2961 = vmatpush1.msra.mxu0 0.0
      %2962 = vmatprep.subr.mxu0 0.0
      %2963 = vmatpush1.msra.mxu0 0.0
      %2964 = vmatprep.subr.mxu0 0.0
      %2965 = vmatpush1.msra.mxu0 0.0
      %2966 = vmatprep.subr.mxu0 0.0
      %2967 = vmatpush1.msra.mxu0 0.0
      %2968 = vmatprep.mubr.f32.mxu0 0.0
      %2969 = vmatmul.mubr.f32.gmra.mrb[0].mxu0 %v2899
      %v2970 = vpop.f32.mrb[0].mxu0
      %v2971 = vadd.f32 %v2891, %v2970
      %v2972 = vpop.f32.mrb[0].mxu0
      %v2973 = vadd.f32 %v2891, %v2972
      %2974 = vmatprep.mubr.f32.mxu0 0.0
      %2975 = vmatmul.mubr.f32.gmra.mrb[0].mxu0 %v2902
      %v2976 = vpop.f32.mrb[0].mxu0
      %v2977 = vadd.f32 %v2896, %v2976
      %v2978 = vpop.f32.mrb[0].mxu0
      %v2979 = vadd.f32 %v2896, %v2978
      %2980 = vdwg.mxu0
      %v2981 = vmax.f32 %v2971, 0.0
      %v2982 = vmax.f32 %v2973, 0.0
      %v2983 = vmax.f32 %v2977, 0.0
      %v2984 = vmax.f32 %v2979, 0.0
      %v2985 = vld [vmem:[%s14] sm:$0xff]
      %v2986 = vld [vmem:[%s14 + $0x8] sm:$0xff]
      %v2987 = vld [vmem:[%s14 + $0x10] sm:$0xff]
      %v2988 = vld [vmem:[%s14 + $0x18] sm:$0xff]
      %v2989 = vld [vmem:[%s14 + $0x20] sm:$0xff]
      %v2990 = vld [vmem:[%s14 + $0x28] sm:$0xff]
      %v2991 = vld [vmem:[%s14 + $0x30] sm:$0xff]
      %v2992 = vld [vmem:[%s14 + $0x38] sm:$0xff]
      %v2993 = vld [vmem:[%s14 + $0x40] sm:$0xff]
      %v2994 = vld [vmem:[%s14 + $0x48] sm:$0xff]
      %v2995 = vld [vmem:[%s14 + $0x50] sm:$0xff]
      %v2996 = vld [vmem:[%s14 + $0x58] sm:$0xff]
      %v2997 = vld [vmem:[%s14 + $0x60] sm:$0xff]
      %v2998 = vld [vmem:[%s14 + $0x68] sm:$0xff]
      %v2999 = vld [vmem:[%s14 + $0x70] sm:$0xff]
      %v3000 = vld [vmem:[%s14 + $0x78] sm:$0xff]
      %v3001 = vld [vmem:[%s14 + $0x80] sm:$0xff]
      %v3002 = vld [vmem:[%s14 + $0x88] sm:$0xff]
      %v3003 = vld [vmem:[%s14 + $0x90] sm:$0xff]
      %v3004 = vld [vmem:[%s14 + $0x98] sm:$0xff]
      %v3005 = vld [vmem:[%s14 + $0xa0] sm:$0xff]
      %v3006 = vld [vmem:[%s14 + $0xa8] sm:$0xff]
      %v3007 = vld [vmem:[%s14 + $0xb0] sm:$0xff]
      %v3008 = vld [vmem:[%s14 + $0xb8] sm:$0xff]
      %v3009 = vld [vmem:[%s14 + $0xc0] sm:$0xff]
      %v3010 = vld [vmem:[%s14 + $0xc8] sm:$0xff]
      %v3011 = vld [vmem:[%s14 + $0xd0] sm:$0xff]
      %v3012 = vld [vmem:[%s14 + $0xd8] sm:$0xff]
      %v3013 = vld [vmem:[%s14 + $0xe0] sm:$0xff]
      %v3014 = vld [vmem:[%s14 + $0xe8] sm:$0xff]
      %v3015 = vld [vmem:[%s14 + $0xf0] sm:$0xff]
      %v3016 = vld [vmem:[%s14 + $0xf8] sm:$0xff]
      %v3017 = vld [vmem:[%s14 + $0x100] sm:$0xff]
      %v3018 = vld [vmem:[%s14 + $0x108] sm:$0xff]
      %v3019 = vld [vmem:[%s14 + $0x110] sm:$0xff]
      %v3020 = vld [vmem:[%s14 + $0x118] sm:$0xff]
      %v3021 = vld [vmem:[%s14 + $0x120] sm:$0xff]
      %v3022 = vld [vmem:[%s14 + $0x128] sm:$0xff]
      %v3023 = vld [vmem:[%s14 + $0x130] sm:$0xff]
      %v3024 = vld [vmem:[%s14 + $0x138] sm:$0xff]
      %v3025 = vld [vmem:[%s14 + $0x140] sm:$0xff]
      %v3026 = vld [vmem:[%s14 + $0x148] sm:$0xff]
      %v3027 = vld [vmem:[%s14 + $0x150] sm:$0xff]
      %v3028 = vld [vmem:[%s14 + $0x158] sm:$0xff]
      %v3029 = vld [vmem:[%s14 + $0x160] sm:$0xff]
      %v3030 = vld [vmem:[%s14 + $0x168] sm:$0xff]
      %v3031 = vld [vmem:[%s14 + $0x170] sm:$0xff]
      %v3032 = vld [vmem:[%s14 + $0x178] sm:$0xff]
      %v3033 = vld [vmem:[%s14 + $0x180] sm:$0xff]
      %v3034 = vld [vmem:[%s14 + $0x188] sm:$0xff]
      %v3035 = vld [vmem:[%s14 + $0x190] sm:$0xff]
      %v3036 = vld [vmem:[%s14 + $0x198] sm:$0xff]
      %v3037 = vld [vmem:[%s14 + $0x1a0] sm:$0xff]
      %v3038 = vld [vmem:[%s14 + $0x1a8] sm:$0xff]
      %v3039 = vld [vmem:[%s14 + $0x1b0] sm:$0xff]
      %v3040 = vld [vmem:[%s14 + $0x1b8] sm:$0xff]
      %v3041 = vld [vmem:[%s14 + $0x1c0] sm:$0xff]
      %v3042 = vld [vmem:[%s14 + $0x1c8] sm:$0xff]
      %v3043 = vld [vmem:[%s14 + $0x1d0] sm:$0xff]
      %v3044 = vld [vmem:[%s14 + $0x1d8] sm:$0xff]
      %v3045 = vld [vmem:[%s14 + $0x1e0] sm:$0xff]
      %v3046 = vld [vmem:[%s14 + $0x1e8] sm:$0xff]
      %v3047 = vld [vmem:[%s14 + $0x1f0] sm:$0xff]
      %v3048 = vld [vmem:[%s14 + $0x1f8] sm:$0xff]
      %v3049 = vld [vmem:[%s14 + $0x200] sm:$0xff]
      %v3050 = vld [vmem:[%s14 + $0x208] sm:$0xff]
      %v3051 = vld [vmem:[%s14 + $0x210] sm:$0xff]
      %v3052 = vld [vmem:[%s14 + $0x218] sm:$0xff]
      %v3053 = vld [vmem:[%s14 + $0x220] sm:$0xff]
      %v3054 = vld [vmem:[%s14 + $0x228] sm:$0xff]
      %v3055 = vld [vmem:[%s14 + $0x230] sm:$0xff]
      %v3056 = vld [vmem:[%s14 + $0x238] sm:$0xff]
      %v3057 = vld [vmem:[%s14 + $0x240] sm:$0xff]
      %v3058 = vld [vmem:[%s14 + $0x248] sm:$0xff]
      %v3059 = vld [vmem:[%s14 + $0x250] sm:$0xff]
      %v3060 = vld [vmem:[%s14 + $0x258] sm:$0xff]
      %v3061 = vld [vmem:[%s14 + $0x260] sm:$0xff]
      %v3062 = vld [vmem:[%s14 + $0x268] sm:$0xff]
      %v3063 = vld [vmem:[%s14 + $0x270] sm:$0xff]
      %v3064 = vld [vmem:[%s14 + $0x278] sm:$0xff]
      %v3065 = vld [vmem:[%s14 + $0x280] sm:$0xff]
      %v3066 = vld [vmem:[%s14 + $0x288] sm:$0xff]
      %v3067 = vld [vmem:[%s14 + $0x290] sm:$0xff]
      %v3068 = vld [vmem:[%s14 + $0x298] sm:$0xff]
      %v3069 = vld [vmem:[%s14 + $0x2a0] sm:$0xff]
      %v3070 = vld [vmem:[%s14 + $0x2a8] sm:$0xff]
      %v3071 = vld [vmem:[%s14 + $0x2b0] sm:$0xff]
      %v3072 = vld [vmem:[%s14 + $0x2b8] sm:$0xff]
      %v3073 = vld [vmem:[%s14 + $0x2c0] sm:$0xff]
      %v3074 = vld [vmem:[%s14 + $0x2c8] sm:$0xff]
      %v3075 = vld [vmem:[%s14 + $0x2d0] sm:$0xff]
      %v3076 = vld [vmem:[%s14 + $0x2d8] sm:$0xff]
      %v3077 = vld [vmem:[%s14 + $0x2e0] sm:$0xff]
      %v3078 = vld [vmem:[%s14 + $0x2e8] sm:$0xff]
      %v3079 = vld [vmem:[%s14 + $0x2f0] sm:$0xff]
      %v3080 = vld [vmem:[%s14 + $0x2f8] sm:$0xff]
      %v3081 = vld [vmem:[%s14 + $0x300] sm:$0xff]
      %v3082 = vld [vmem:[%s14 + $0x308] sm:$0xff]
      %v3083 = vld [vmem:[%s14 + $0x310] sm:$0xff]
      %v3084 = vld [vmem:[%s14 + $0x318] sm:$0xff]
      %v3085 = vld [vmem:[%s14 + $0x320] sm:$0xff]
      %v3086 = vld [vmem:[%s14 + $0x328] sm:$0xff]
      %v3087 = vld [vmem:[%s14 + $0x330] sm:$0xff]
      %v3088 = vld [vmem:[%s14 + $0x338] sm:$0xff]
      %v3089 = vld [vmem:[%s14 + $0x340] sm:$0xff]
      %v3090 = vld [vmem:[%s14 + $0x348] sm:$0xff]
      %v3091 = vld [vmem:[%s14 + $0x350] sm:$0xff]
      %v3092 = vld [vmem:[%s14 + $0x358] sm:$0xff]
      %v3093 = vld [vmem:[%s14 + $0x360] sm:$0xff]
      %v3094 = vld [vmem:[%s14 + $0x368] sm:$0xff]
      %v3095 = vld [vmem:[%s14 + $0x370] sm:$0xff]
      %v3096 = vld [vmem:[%s14 + $0x378] sm:$0xff]
      %v3097 = vld [vmem:[%s14 + $0x380] sm:$0xff]
      %v3098 = vld [vmem:[%s14 + $0x388] sm:$0xff]
      %v3099 = vld [vmem:[%s14 + $0x390] sm:$0xff]
      %v3100 = vld [vmem:[%s14 + $0x398] sm:$0xff]
      %v3101 = vld [vmem:[%s14 + $0x3a0] sm:$0xff]
      %v3102 = vld [vmem:[%s14 + $0x3a8] sm:$0xff]
      %v3103 = vld [vmem:[%s14 + $0x3b0] sm:$0xff]
      %v3104 = vld [vmem:[%s14 + $0x3b8] sm:$0xff]
      %v3105 = vld [vmem:[%s14 + $0x3c0] sm:$0xff]
      %v3106 = vld [vmem:[%s14 + $0x3c8] sm:$0xff]
      %v3107 = vld [vmem:[%s14 + $0x3d0] sm:$0xff]
      %v3108 = vld [vmem:[%s14 + $0x3d8] sm:$0xff]
      %v3109 = vld [vmem:[%s14 + $0x3e0] sm:$0xff]
      %v3110 = vld [vmem:[%s14 + $0x3e8] sm:$0xff]
      %v3111 = vld [vmem:[%s14 + $0x3f0] sm:$0xff]
      %v3112 = vld [vmem:[%s14 + $0x3f8] sm:$0xff]
      %v3113 = vld [vmem:[%s14 + $0x400] sm:$0xff]
      %v3114 = vld [vmem:[%s14 + $0x408] sm:$0xff]
      %v3115 = vld [vmem:[%s14 + $0x410] sm:$0xff]
      %v3116 = vld [vmem:[%s14 + $0x418] sm:$0xff]
      %v3117 = vld [vmem:[%s14 + $0x420] sm:$0xff]
      %v3118 = vld [vmem:[%s14 + $0x428] sm:$0xff]
      %v3119 = vld [vmem:[%s14 + $0x430] sm:$0xff]
      %v3120 = vld [vmem:[%s14 + $0x438] sm:$0xff]
      %v3121 = vld [vmem:[%s14 + $0x440] sm:$0xff]
      %v3122 = vld [vmem:[%s14 + $0x448] sm:$0xff]
      %v3123 = vld [vmem:[%s14 + $0x450] sm:$0xff]
      %v3124 = vld [vmem:[%s14 + $0x458] sm:$0xff]
      %v3125 = vld [vmem:[%s14 + $0x460] sm:$0xff]
      %v3126 = vld [vmem:[%s14 + $0x468] sm:$0xff]
      %v3127 = vld [vmem:[%s14 + $0x470] sm:$0xff]
      %v3128 = vld [vmem:[%s14 + $0x478] sm:$0xff]
      %v3129 = vld [vmem:[%s14 + $0x480] sm:$0xff]
      %v3130 = vld [vmem:[%s14 + $0x488] sm:$0xff]
      %v3131 = vld [vmem:[%s14 + $0x490] sm:$0xff]
      %v3132 = vld [vmem:[%s14 + $0x498] sm:$0xff]
      %v3133 = vld [vmem:[%s14 + $0x4a0] sm:$0xff]
      %v3134 = vld [vmem:[%s14 + $0x4a8] sm:$0xff]
      %v3135 = vld [vmem:[%s14 + $0x4b0] sm:$0xff]
      %v3136 = vld [vmem:[%s14 + $0x4b8] sm:$0xff]
      %v3137 = vld [vmem:[%s14 + $0x4c0] sm:$0xff]
      %v3138 = vld [vmem:[%s14 + $0x4c8] sm:$0xff]
      %v3139 = vld [vmem:[%s14 + $0x4d0] sm:$0xff]
      %v3140 = vld [vmem:[%s14 + $0x4d8] sm:$0xff]
      %v3141 = vld [vmem:[%s14 + $0x4e0] sm:$0xff]
      %v3142 = vld [vmem:[%s14 + $0x4e8] sm:$0xff]
      %v3143 = vld [vmem:[%s14 + $0x4f0] sm:$0xff]
      %v3144 = vld [vmem:[%s14 + $0x4f8] sm:$0xff]
      %v3145 = vld [vmem:[%s14 + $0x500] sm:$0xff]
      %v3146 = vld [vmem:[%s14 + $0x508] sm:$0xff]
      %v3147 = vld [vmem:[%s14 + $0x510] sm:$0xff]
      %v3148 = vld [vmem:[%s14 + $0x518] sm:$0xff]
      %v3149 = vld [vmem:[%s14 + $0x520] sm:$0xff]
      %v3150 = vld [vmem:[%s14 + $0x528] sm:$0xff]
      %v3151 = vld [vmem:[%s14 + $0x530] sm:$0xff]
      %v3152 = vld [vmem:[%s14 + $0x538] sm:$0xff]
      %v3153 = vld [vmem:[%s14 + $0x540] sm:$0xff]
      %v3154 = vld [vmem:[%s14 + $0x548] sm:$0xff]
      %v3155 = vld [vmem:[%s14 + $0x550] sm:$0xff]
      %v3156 = vld [vmem:[%s14 + $0x558] sm:$0xff]
      %v3157 = vld [vmem:[%s14 + $0x560] sm:$0xff]
      %v3158 = vld [vmem:[%s14 + $0x568] sm:$0xff]
      %v3159 = vld [vmem:[%s14 + $0x570] sm:$0xff]
      %v3160 = vld [vmem:[%s14 + $0x578] sm:$0xff]
      %v3161 = vld [vmem:[%s14 + $0x580] sm:$0xff]
      %v3162 = vld [vmem:[%s14 + $0x588] sm:$0xff]
      %v3163 = vld [vmem:[%s14 + $0x590] sm:$0xff]
      %v3164 = vld [vmem:[%s14 + $0x598] sm:$0xff]
      %v3165 = vld [vmem:[%s14 + $0x5a0] sm:$0xff]
      %v3166 = vld [vmem:[%s14 + $0x5a8] sm:$0xff]
      %v3167 = vld [vmem:[%s14 + $0x5b0] sm:$0xff]
      %v3168 = vld [vmem:[%s14 + $0x5b8] sm:$0xff]
      %v3169 = vld [vmem:[%s14 + $0x5c0] sm:$0xff]
      %v3170 = vld [vmem:[%s14 + $0x5c8] sm:$0xff]
      %v3171 = vld [vmem:[%s14 + $0x5d0] sm:$0xff]
      %v3172 = vld [vmem:[%s14 + $0x5d8] sm:$0xff]
      %v3173 = vld [vmem:[%s14 + $0x5e0] sm:$0xff]
      %v3174 = vld [vmem:[%s14 + $0x5e8] sm:$0xff]
      %v3175 = vld [vmem:[%s14 + $0x5f0] sm:$0xff]
      %v3176 = vld [vmem:[%s14 + $0x5f8] sm:$0xff]
      %v3177 = vld [vmem:[%s14 + $0x600] sm:$0xff]
      %v3178 = vld [vmem:[%s14 + $0x608] sm:$0xff]
      %v3179 = vld [vmem:[%s14 + $0x610] sm:$0xff]
      %v3180 = vld [vmem:[%s14 + $0x618] sm:$0xff]
      %v3181 = vld [vmem:[%s14 + $0x620] sm:$0xff]
      %v3182 = vld [vmem:[%s14 + $0x628] sm:$0xff]
      %v3183 = vld [vmem:[%s14 + $0x630] sm:$0xff]
      %v3184 = vld [vmem:[%s14 + $0x638] sm:$0xff]
      %v3185 = vld [vmem:[%s14 + $0x640] sm:$0xff]
      %v3186 = vld [vmem:[%s14 + $0x648] sm:$0xff]
      %v3187 = vld [vmem:[%s14 + $0x650] sm:$0xff]
      %v3188 = vld [vmem:[%s14 + $0x658] sm:$0xff]
      %v3189 = vld [vmem:[%s14 + $0x660] sm:$0xff]
      %v3190 = vld [vmem:[%s14 + $0x668] sm:$0xff]
      %v3191 = vld [vmem:[%s14 + $0x670] sm:$0xff]
      %v3192 = vld [vmem:[%s14 + $0x678] sm:$0xff]
      %v3193 = vld [vmem:[%s14 + $0x680] sm:$0xff]
      %v3194 = vld [vmem:[%s14 + $0x688] sm:$0xff]
      %v3195 = vld [vmem:[%s14 + $0x690] sm:$0xff]
      %v3196 = vld [vmem:[%s14 + $0x698] sm:$0xff]
      %v3197 = vld [vmem:[%s14 + $0x6a0] sm:$0xff]
      %v3198 = vld [vmem:[%s14 + $0x6a8] sm:$0xff]
      %v3199 = vld [vmem:[%s14 + $0x6b0] sm:$0xff]
      %v3200 = vld [vmem:[%s14 + $0x6b8] sm:$0xff]
      %v3201 = vld [vmem:[%s14 + $0x6c0] sm:$0xff]
      %v3202 = vld [vmem:[%s14 + $0x6c8] sm:$0xff]
      %v3203 = vld [vmem:[%s14 + $0x6d0] sm:$0xff]
      %v3204 = vld [vmem:[%s14 + $0x6d8] sm:$0xff]
      %v3205 = vld [vmem:[%s14 + $0x6e0] sm:$0xff]
      %v3206 = vld [vmem:[%s14 + $0x6e8] sm:$0xff]
      %v3207 = vld [vmem:[%s14 + $0x6f0] sm:$0xff]
      %v3208 = vld [vmem:[%s14 + $0x6f8] sm:$0xff]
      %v3209 = vld [vmem:[%s14 + $0x700] sm:$0xff]
      %v3210 = vld [vmem:[%s14 + $0x708] sm:$0xff]
      %v3211 = vld [vmem:[%s14 + $0x710] sm:$0xff]
      %v3212 = vld [vmem:[%s14 + $0x718] sm:$0xff]
      %v3213 = vld [vmem:[%s14 + $0x720] sm:$0xff]
      %v3214 = vld [vmem:[%s14 + $0x728] sm:$0xff]
      %v3215 = vld [vmem:[%s14 + $0x730] sm:$0xff]
      %v3216 = vld [vmem:[%s14 + $0x738] sm:$0xff]
      %v3217 = vld [vmem:[%s14 + $0x740] sm:$0xff]
      %v3218 = vld [vmem:[%s14 + $0x748] sm:$0xff]
      %v3219 = vld [vmem:[%s14 + $0x750] sm:$0xff]
      %v3220 = vld [vmem:[%s14 + $0x758] sm:$0xff]
      %v3221 = vld [vmem:[%s14 + $0x760] sm:$0xff]
      %v3222 = vld [vmem:[%s14 + $0x768] sm:$0xff]
      %v3223 = vld [vmem:[%s14 + $0x770] sm:$0xff]
      %v3224 = vld [vmem:[%s14 + $0x778] sm:$0xff]
      %v3225 = vld [vmem:[%s14 + $0x780] sm:$0xff]
      %v3226 = vld [vmem:[%s14 + $0x788] sm:$0xff]
      %v3227 = vld [vmem:[%s14 + $0x790] sm:$0xff]
      %v3228 = vld [vmem:[%s14 + $0x798] sm:$0xff]
      %v3229 = vld [vmem:[%s14 + $0x7a0] sm:$0xff]
      %v3230 = vld [vmem:[%s14 + $0x7a8] sm:$0xff]
      %v3231 = vld [vmem:[%s14 + $0x7b0] sm:$0xff]
      %v3232 = vld [vmem:[%s14 + $0x7b8] sm:$0xff]
      %v3233 = vld [vmem:[%s14 + $0x7c0] sm:$0xff]
      %v3234 = vld [vmem:[%s14 + $0x7c8] sm:$0xff]
      %v3235 = vld [vmem:[%s14 + $0x7d0] sm:$0xff]
      %v3236 = vld [vmem:[%s14 + $0x7d8] sm:$0xff]
      %v3237 = vld [vmem:[%s14 + $0x7e0] sm:$0xff]
      %v3238 = vld [vmem:[%s14 + $0x7e8] sm:$0xff]
      %v3239 = vld [vmem:[%s14 + $0x7f0] sm:$0xff]
      %v3240 = vld [vmem:[%s14 + $0x7f8] sm:$0xff]
      %3241 = vmatprep.subr.mxu0 %v2986
      %3242 = vmatpush1.msra.mxu0 %v2985
      %3243 = vmatprep.subr.mxu0 %v2994
      %3244 = vmatpush1.msra.mxu0 %v2993
      %3245 = vmatprep.subr.mxu0 %v3002
      %3246 = vmatpush1.msra.mxu0 %v3001
      %3247 = vmatprep.subr.mxu0 %v3010
      %3248 = vmatpush1.msra.mxu0 %v3009
      %3249 = vmatprep.subr.mxu0 %v3018
      %3250 = vmatpush1.msra.mxu0 %v3017
      %3251 = vmatprep.subr.mxu0 %v3026
      %3252 = vmatpush1.msra.mxu0 %v3025
      %3253 = vmatprep.subr.mxu0 %v3034
      %3254 = vmatpush1.msra.mxu0 %v3033
      %3255 = vmatprep.subr.mxu0 %v3042
      %3256 = vmatpush1.msra.mxu0 %v3041
      %3257 = vmatprep.subr.mxu0 %v3050
      %3258 = vmatpush1.msra.mxu0 %v3049
      %3259 = vmatprep.subr.mxu0 %v3058
      %3260 = vmatpush1.msra.mxu0 %v3057
      %3261 = vmatprep.subr.mxu0 %v3066
      %3262 = vmatpush1.msra.mxu0 %v3065
      %3263 = vmatprep.subr.mxu0 %v3074
      %3264 = vmatpush1.msra.mxu0 %v3073
      %3265 = vmatprep.subr.mxu0 %v3082
      %3266 = vmatpush1.msra.mxu0 %v3081
      %3267 = vmatprep.subr.mxu0 %v3090
      %3268 = vmatpush1.msra.mxu0 %v3089
      %3269 = vmatprep.subr.mxu0 %v3098
      %3270 = vmatpush1.msra.mxu0 %v3097
      %3271 = vmatprep.subr.mxu0 %v3106
      %3272 = vmatpush1.msra.mxu0 %v3105
      %3273 = vmatprep.subr.mxu0 %v3114
      %3274 = vmatpush1.msra.mxu0 %v3113
      %3275 = vmatprep.subr.mxu0 %v3122
      %3276 = vmatpush1.msra.mxu0 %v3121
      %3277 = vmatprep.subr.mxu0 %v3130
      %3278 = vmatpush1.msra.mxu0 %v3129
      %3279 = vmatprep.subr.mxu0 %v3138
      %3280 = vmatpush1.msra.mxu0 %v3137
      %3281 = vmatprep.subr.mxu0 %v3146
      %3282 = vmatpush1.msra.mxu0 %v3145
      %3283 = vmatprep.subr.mxu0 %v3154
      %3284 = vmatpush1.msra.mxu0 %v3153
      %3285 = vmatprep.subr.mxu0 %v3162
      %3286 = vmatpush1.msra.mxu0 %v3161
      %3287 = vmatprep.subr.mxu0 %v3170
      %3288 = vmatpush1.msra.mxu0 %v3169
      %3289 = vmatprep.subr.mxu0 %v3178
      %3290 = vmatpush1.msra.mxu0 %v3177
      %3291 = vmatprep.subr.mxu0 %v3186
      %3292 = vmatpush1.msra.mxu0 %v3185
      %3293 = vmatprep.subr.mxu0 %v3194
      %3294 = vmatpush1.msra.mxu0 %v3193
      %3295 = vmatprep.subr.mxu0 %v3202
      %3296 = vmatpush1.msra.mxu0 %v3201
      %3297 = vmatprep.subr.mxu0 %v3210
      %3298 = vmatpush1.msra.mxu0 %v3209
      %3299 = vmatprep.subr.mxu0 %v3218
      %3300 = vmatpush1.msra.mxu0 %v3217
      %3301 = vmatprep.subr.mxu0 %v3226
      %3302 = vmatpush1.msra.mxu0 %v3225
      %3303 = vmatprep.subr.mxu0 %v3234
      %3304 = vmatpush1.msra.mxu0 %v3233
      %3305 = vmatprep.mubr.f32.mxu0 %v2982
      %3306 = vmatmul.mubr.f32.gmra.mrb[0].mxu0 %v2981
      %v3307 = vpop.f32.mrb[0].mxu0
      %v3308 = vadd.f32 0.0, %v3307
      %v3309 = vpop.f32.mrb[0].mxu0
      %v3310 = vadd.f32 0.0, %v3309
      %3311 = vmatprep.mubr.f32.mxu0 %v2984
      %3312 = vmatmul.mubr.f32.gmra.mrb[0].mxu0 %v2983
      %v3313 = vpop.f32.mrb[0].mxu0
      %v3314 = vadd.f32 0.0, %v3313
      %v3315 = vpop.f32.mrb[0].mxu0
      %v3316 = vadd.f32 0.0, %v3315
      %3317 = vdwg.mxu0
      %3318 = vmatprep.subr.mxu0 %v2988
      %3319 = vmatpush1.msra.mxu0 %v2987
      %3320 = vmatprep.subr.mxu0 %v2996
      %3321 = vmatpush1.msra.mxu0 %v2995
      %3322 = vmatprep.subr.mxu0 %v3004
      %3323 = vmatpush1.msra.mxu0 %v3003
      %3324 = vmatprep.subr.mxu0 %v3012
      %3325 = vmatpush1.msra.mxu0 %v3011
      %3326 = vmatprep.subr.mxu0 %v3020
      %3327 = vmatpush1.msra.mxu0 %v3019
      %3328 = vmatprep.subr.mxu0 %v3028
      %3329 = vmatpush1.msra.mxu0 %v3027
      %3330 = vmatprep.subr.mxu0 %v3036
      %3331 = vmatpush1.msra.mxu0 %v3035
      %3332 = vmatprep.subr.mxu0 %v3044
      %3333 = vmatpush1.msra.mxu0 %v3043
      %3334 = vmatprep.subr.mxu0 %v3052
      %3335 = vmatpush1.msra.mxu0 %v3051
      %3336 = vmatprep.subr.mxu0 %v3060
      %3337 = vmatpush1.msra.mxu0 %v3059
      %3338 = vmatprep.subr.mxu0 %v3068
      %3339 = vmatpush1.msra.mxu0 %v3067
      %3340 = vmatprep.subr.mxu0 %v3076
      %3341 = vmatpush1.msra.mxu0 %v3075
      %3342 = vmatprep.subr.mxu0 %v3084
      %3343 = vmatpush1.msra.mxu0 %v3083
      %3344 = vmatprep.subr.mxu0 %v3092
      %3345 = vmatpush1.msra.mxu0 %v3091
      %3346 = vmatprep.subr.mxu0 %v3100
      %3347 = vmatpush1.msra.mxu0 %v3099
      %3348 = vmatprep.subr.mxu0 %v3108
      %3349 = vmatpush1.msra.mxu0 %v3107
      %3350 = vmatprep.subr.mxu0 %v3116
      %3351 = vmatpush1.msra.mxu0 %v3115
      %3352 = vmatprep.subr.mxu0 %v3124
      %3353 = vmatpush1.msra.mxu0 %v3123
      %3354 = vmatprep.subr.mxu0 %v3132
      %3355 = vmatpush1.msra.mxu0 %v3131
      %3356 = vmatprep.subr.mxu0 %v3140
      %3357 = vmatpush1.msra.mxu0 %v3139
      %3358 = vmatprep.subr.mxu0 %v3148
      %3359 = vmatpush1.msra.mxu0 %v3147
      %3360 = vmatprep.subr.mxu0 %v3156
      %3361 = vmatpush1.msra.mxu0 %v3155
      %3362 = vmatprep.subr.mxu0 %v3164
      %3363 = vmatpush1.msra.mxu0 %v3163
      %3364 = vmatprep.subr.mxu0 %v3172
      %3365 = vmatpush1.msra.mxu0 %v3171
      %3366 = vmatprep.subr.mxu0 %v3180
      %3367 = vmatpush1.msra.mxu0 %v3179
      %3368 = vmatprep.subr.mxu0 %v3188
      %3369 = vmatpush1.msra.mxu0 %v3187
      %3370 = vmatprep.subr.mxu0 %v3196
      %3371 = vmatpush1.msra.mxu0 %v3195
      %3372 = vmatprep.subr.mxu0 %v3204
      %3373 = vmatpush1.msra.mxu0 %v3203
      %3374 = vmatprep.subr.mxu0 %v3212
      %3375 = vmatpush1.msra.mxu0 %v3211
      %3376 = vmatprep.subr.mxu0 %v3220
      %3377 = vmatpush1.msra.mxu0 %v3219
      %3378 = vmatprep.subr.mxu0 %v3228
      %3379 = vmatpush1.msra.mxu0 %v3227
      %3380 = vmatprep.subr.mxu0 %v3236
      %3381 = vmatpush1.msra.mxu0 %v3235
      %3382 = vmatprep.mubr.f32.mxu0 %v2982
      %3383 = vmatmul.mubr.f32.gmra.mrb[0].mxu0 %v2981
      %v3384 = vpop.f32.mrb[0].mxu0
      %v3385 = vadd.f32 0.0, %v3384
      %v3386 = vpop.f32.mrb[0].mxu0
      %v3387 = vadd.f32 0.0, %v3386
      %3388 = vmatprep.mubr.f32.mxu0 %v2984
      %3389 = vmatmul.mubr.f32.gmra.mrb[0].mxu0 %v2983
      %v3390 = vpop.f32.mrb[0].mxu0
      %v3391 = vadd.f32 0.0, %v3390
      %v3392 = vpop.f32.mrb[0].mxu0
      %v3393 = vadd.f32 0.0, %v3392
      %3394 = vdwg.mxu0
      %3395 = vmatprep.subr.mxu0 %v2990
      %3396 = vmatpush1.msra.mxu0 %v2989
      %3397 = vmatprep.subr.mxu0 %v2998
      %3398 = vmatpush1.msra.mxu0 %v2997
      %3399 = vmatprep.subr.mxu0 %v3006
      %3400 = vmatpush1.msra.mxu0 %v3005
      %3401 = vmatprep.subr.mxu0 %v3014
      %3402 = vmatpush1.msra.mxu0 %v3013
      %3403 = vmatprep.subr.mxu0 %v3022
      %3404 = vmatpush1.msra.mxu0 %v3021
      %3405 = vmatprep.subr.mxu0 %v3030
      %3406 = vmatpush1.msra.mxu0 %v3029
      %3407 = vmatprep.subr.mxu0 %v3038
      %3408 = vmatpush1.msra.mxu0 %v3037
      %3409 = vmatprep.subr.mxu0 %v3046
      %3410 = vmatpush1.msra.mxu0 %v3045
      %3411 = vmatprep.subr.mxu0 %v3054
      %3412 = vmatpush1.msra.mxu0 %v3053
      %3413 = vmatprep.subr.mxu0 %v3062
      %3414 = vmatpush1.msra.mxu0 %v3061
      %3415 = vmatprep.subr.mxu0 %v3070
      %3416 = vmatpush1.msra.mxu0 %v3069
      %3417 = vmatprep.subr.mxu0 %v3078
      %3418 = vmatpush1.msra.mxu0 %v3077
      %3419 = vmatprep.subr.mxu0 %v3086
      %3420 = vmatpush1.msra.mxu0 %v3085
      %3421 = vmatprep.subr.mxu0 %v3094
      %3422 = vmatpush1.msra.mxu0 %v3093
      %3423 = vmatprep.subr.mxu0 %v3102
      %3424 = vmatpush1.msra.mxu0 %v3101
      %3425 = vmatprep.subr.mxu0 %v3110
      %3426 = vmatpush1.msra.mxu0 %v3109
      %3427 = vmatprep.subr.mxu0 %v3118
      %3428 = vmatpush1.msra.mxu0 %v3117
      %3429 = vmatprep.subr.mxu0 %v3126
      %3430 = vmatpush1.msra.mxu0 %v3125
      %3431 = vmatprep.subr.mxu0 %v3134
      %3432 = vmatpush1.msra.mxu0 %v3133
      %3433 = vmatprep.subr.mxu0 %v3142
      %3434 = vmatpush1.msra.mxu0 %v3141
      %3435 = vmatprep.subr.mxu0 %v3150
      %3436 = vmatpush1.msra.mxu0 %v3149
      %3437 = vmatprep.subr.mxu0 %v3158
      %3438 = vmatpush1.msra.mxu0 %v3157
      %3439 = vmatprep.subr.mxu0 %v3166
      %3440 = vmatpush1.msra.mxu0 %v3165
      %3441 = vmatprep.subr.mxu0 %v3174
      %3442 = vmatpush1.msra.mxu0 %v3173
      %3443 = vmatprep.subr.mxu0 %v3182
      %3444 = vmatpush1.msra.mxu0 %v3181
      %3445 = vmatprep.subr.mxu0 %v3190
      %3446 = vmatpush1.msra.mxu0 %v3189
      %3447 = vmatprep.subr.mxu0 %v3198
      %3448 = vmatpush1.msra.mxu0 %v3197
      %3449 = vmatprep.subr.mxu0 %v3206
      %3450 = vmatpush1.msra.mxu0 %v3205
      %3451 = vmatprep.subr.mxu0 %v3214
      %3452 = vmatpush1.msra.mxu0 %v3213
      %3453 = vmatprep.subr.mxu0 %v3222
      %3454 = vmatpush1.msra.mxu0 %v3221
      %3455 = vmatprep.subr.mxu0 %v3230
      %3456 = vmatpush1.msra.mxu0 %v3229
      %3457 = vmatprep.subr.mxu0 %v3238
      %3458 = vmatpush1.msra.mxu0 %v3237
      %3459 = vmatprep.mubr.f32.mxu0 %v2982
      %3460 = vmatmul.mubr.f32.gmra.mrb[0].mxu0 %v2981
      %v3461 = vpop.f32.mrb[0].mxu0
      %v3462 = vadd.f32 0.0, %v3461
      %v3463 = vpop.f32.mrb[0].mxu0
      %v3464 = vadd.f32 0.0, %v3463
      %3465 = vmatprep.mubr.f32.mxu0 %v2984
      %3466 = vmatmul.mubr.f32.gmra.mrb[0].mxu0 %v2983
      %v3467 = vpop.f32.mrb[0].mxu0
      %v3468 = vadd.f32 0.0, %v3467
      %v3469 = vpop.f32.mrb[0].mxu0
      %v3470 = vadd.f32 0.0, %v3469
      %3471 = vdwg.mxu0
      %3472 = vmatprep.subr.mxu0 %v2992
      %3473 = vmatpush1.msra.mxu0 %v2991
      %3474 = vmatprep.subr.mxu0 %v3000
      %3475 = vmatpush1.msra.mxu0 %v2999
      %3476 = vmatprep.subr.mxu0 %v3008
      %3477 = vmatpush1.msra.mxu0 %v3007
      %3478 = vmatprep.subr.mxu0 %v3016
      %3479 = vmatpush1.msra.mxu0 %v3015
      %3480 = vmatprep.subr.mxu0 %v3024
      %3481 = vmatpush1.msra.mxu0 %v3023
      %3482 = vmatprep.subr.mxu0 %v3032
      %3483 = vmatpush1.msra.mxu0 %v3031
      %3484 = vmatprep.subr.mxu0 %v3040
      %3485 = vmatpush1.msra.mxu0 %v3039
      %3486 = vmatprep.subr.mxu0 %v3048
      %3487 = vmatpush1.msra.mxu0 %v3047
      %3488 = vmatprep.subr.mxu0 %v3056
      %3489 = vmatpush1.msra.mxu0 %v3055
      %3490 = vmatprep.subr.mxu0 %v3064
      %3491 = vmatpush1.msra.mxu0 %v3063
      %3492 = vmatprep.subr.mxu0 %v3072
      %3493 = vmatpush1.msra.mxu0 %v3071
      %3494 = vmatprep.subr.mxu0 %v3080
      %3495 = vmatpush1.msra.mxu0 %v3079
      %3496 = vmatprep.subr.mxu0 %v3088
      %3497 = vmatpush1.msra.mxu0 %v3087
      %3498 = vmatprep.subr.mxu0 %v3096
      %3499 = vmatpush1.msra.mxu0 %v3095
      %3500 = vmatprep.subr.mxu0 %v3104
      %3501 = vmatpush1.msra.mxu0 %v3103
      %3502 = vmatprep.subr.mxu0 %v3112
      %3503 = vmatpush1.msra.mxu0 %v3111
      %3504 = vmatprep.subr.mxu0 %v3120
      %3505 = vmatpush1.msra.mxu0 %v3119
      %3506 = vmatprep.subr.mxu0 %v3128
      %3507 = vmatpush1.msra.mxu0 %v3127
      %3508 = vmatprep.subr.mxu0 %v3136
      %3509 = vmatpush1.msra.mxu0 %v3135
      %3510 = vmatprep.subr.mxu0 %v3144
      %3511 = vmatpush1.msra.mxu0 %v3143
      %3512 = vmatprep.subr.mxu0 %v3152
      %3513 = vmatpush1.msra.mxu0 %v3151
      %3514 = vmatprep.subr.mxu0 %v3160
      %3515 = vmatpush1.msra.mxu0 %v3159
      %3516 = vmatprep.subr.mxu0 %v3168
      %3517 = vmatpush1.msra.mxu0 %v3167
      %3518 = vmatprep.subr.mxu0 %v3176
      %3519 = vmatpush1.msra.mxu0 %v3175
      %3520 = vmatprep.subr.mxu0 %v3184
      %3521 = vmatpush1.msra.mxu0 %v3183
      %3522 = vmatprep.subr.mxu0 %v3192
      %3523 = vmatpush1.msra.mxu0 %v3191
      %3524 = vmatprep.subr.mxu0 %v3200
      %3525 = vmatpush1.msra.mxu0 %v3199
      %3526 = vmatprep.subr.mxu0 %v3208
      %3527 = vmatpush1.msra.mxu0 %v3207
      %3528 = vmatprep.subr.mxu0 %v3216
      %3529 = vmatpush1.msra.mxu0 %v3215
      %3530 = vmatprep.subr.mxu0 %v3224
      %3531 = vmatpush1.msra.mxu0 %v3223
      %3532 = vmatprep.subr.mxu0 %v3232
      %3533 = vmatpush1.msra.mxu0 %v3231
      %3534 = vmatprep.subr.mxu0 %v3240
      %3535 = vmatpush1.msra.mxu0 %v3239
      %3536 = vmatprep.mubr.f32.mxu0 %v2982
      %3537 = vmatmul.mubr.f32.gmra.mrb[0].mxu0 %v2981
      %v3538 = vpop.f32.mrb[0].mxu0
      %v3539 = vadd.f32 0.0, %v3538
      %v3540 = vpop.f32.mrb[0].mxu0
      %v3541 = vadd.f32 0.0, %v3540
      %3542 = vmatprep.mubr.f32.mxu0 %v2984
      %3543 = vmatmul.mubr.f32.gmra.mrb[0].mxu0 %v2983
      %v3544 = vpop.f32.mrb[0].mxu0
      %v3545 = vadd.f32 0.0, %v3544
      %v3546 = vpop.f32.mrb[0].mxu0
      %v3547 = vadd.f32 0.0, %v3546
      %3548 = vdwg.mxu0
      %3549 = vrot.lane.b32.xlu0 %v3308, 17
      %v3550 = vpop.permute.xlu0 %3549
      %3551 = vrot.lane.b32.xlu0 %v3314, 17
      %v3552 = vpop.permute.xlu0 %3551
      %3553 = vrot.lane.b32.xlu0 %v3310, 17
      %v3554 = vpop.permute.xlu0 %3553
      %3555 = vrot.lane.b32.xlu0 %v3316, 17
      %v3556 = vpop.permute.xlu0 %3555
      %3557 = vrot.lane.b32.xlu0 %v3385, 17
      %v3558 = vpop.permute.xlu0 %3557
      %3559 = vrot.lane.b32.xlu0 %v3391, 17
      %v3560 = vpop.permute.xlu0 %3559
      %3561 = vrot.lane.b32.xlu0 %v3387, 17
      %v3562 = vpop.permute.xlu0 %3561
      %3563 = vrot.lane.b32.xlu0 %v3393, 17
      %v3564 = vpop.permute.xlu0 %3563
      %3565 = vrot.lane.b32.xlu0 %v3462, 17
      %v3566 = vpop.permute.xlu0 %3565
      %3567 = vrot.lane.b32.xlu0 %v3468, 17
      %v3568 = vpop.permute.xlu0 %3567
      %3569 = vrot.lane.b32.xlu0 %v3464, 17
      %v3570 = vpop.permute.xlu0 %3569
      %3571 = vrot.lane.b32.xlu0 %v3470, 17
      %v3572 = vpop.permute.xlu0 %3571
      %3573 = vrot.lane.b32.xlu0 %v3539, 17
      %v3574 = vpop.permute.xlu0 %3573
      %3575 = vrot.lane.b32.xlu0 %v3545, 17
      %v3576 = vpop.permute.xlu0 %3575
      %3577 = vrot.lane.b32.xlu0 %v3541, 17
      %v3578 = vpop.permute.xlu0 %3577
      %3579 = vrot.lane.b32.xlu0 %v3547, 17
      %v3580 = vpop.permute.xlu0 %3579
      %v3581 = vsel %vm519, %v3574, %v3578
      %v3582 = vsel %vm519, %v3576, %v3580
      %v3583 = vsel %vm519, %v3570, %v3574
      %v3584 = vsel %vm519, %v3572, %v3576
      %v3585 = vsel %vm519, %v3566, %v3570
      %v3586 = vsel %vm519, %v3568, %v3572
      %v3587 = vsel %vm519, %v3562, %v3566
      %v3588 = vsel %vm519, %v3564, %v3568
      %v3589 = vsel %vm519, %v3558, %v3562
      %v3590 = vsel %vm519, %v3560, %v3564
      %v3591 = vsel %vm519, %v3554, %v3558
      %v3592 = vsel %vm519, %v3556, %v3560
      %v3593 = vsel %vm519, %v3550, %v3554
      %v3594 = vsel %vm519, %v3552, %v3556
      %v3595 = vsel %vm519, %v3578, %v3550
      %v3596 = vsel %vm519, %v3580, %v3552
      %v3597 = vmul.f32 %v3595, %v533
      %v3598 = vmul.f32 %v3593, %v537
      %v3599 = vmul.f32 %v3591, %v541
      %v3600 = vmul.f32 %v3589, %v545
      %v3601 = vmul.f32 %v3587, %v549
      %v3602 = vmul.f32 %v3585, %v553
      %v3603 = vmul.f32 %v3583, %v557
      %v3604 = vmul.f32 %v3581, %v561
      %v3605 = vmul.f32 %v3596, %v533
      %v3606 = vmul.f32 %v3594, %v537
      %v3607 = vmul.f32 %v3592, %v541
      %v3608 = vmul.f32 %v3590, %v545
      %v3609 = vmul.f32 %v3588, %v549
      %v3610 = vmul.f32 %v3586, %v553
      %v3611 = vmul.f32 %v3584, %v557
      %v3612 = vmul.f32 %v3582, %v561
      %3613 = vrot.lane.b32.xlu0 %v3308, 16
      %v3614 = vpop.permute.xlu0 %3613
      %3615 = vrot.lane.b32.xlu0 %v3314, 16
      %v3616 = vpop.permute.xlu0 %3615
      %3617 = vrot.lane.b32.xlu0 %v3310, 16
      %v3618 = vpop.permute.xlu0 %3617
      %3619 = vrot.lane.b32.xlu0 %v3316, 16
      %v3620 = vpop.permute.xlu0 %3619
      %3621 = vrot.lane.b32.xlu0 %v3385, 16
      %v3622 = vpop.permute.xlu0 %3621
      %3623 = vrot.lane.b32.xlu0 %v3391, 16
      %v3624 = vpop.permute.xlu0 %3623
      %3625 = vrot.lane.b32.xlu0 %v3387, 16
      %v3626 = vpop.permute.xlu0 %3625
      %3627 = vrot.lane.b32.xlu0 %v3393, 16
      %v3628 = vpop.permute.xlu0 %3627
      %3629 = vrot.lane.b32.xlu0 %v3462, 16
      %v3630 = vpop.permute.xlu0 %3629
      %3631 = vrot.lane.b32.xlu0 %v3468, 16
      %v3632 = vpop.permute.xlu0 %3631
      %3633 = vrot.lane.b32.xlu0 %v3464, 16
      %v3634 = vpop.permute.xlu0 %3633
      %3635 = vrot.lane.b32.xlu0 %v3470, 16
      %v3636 = vpop.permute.xlu0 %3635
      %3637 = vrot.lane.b32.xlu0 %v3539, 16
      %v3638 = vpop.permute.xlu0 %3637
      %3639 = vrot.lane.b32.xlu0 %v3545, 16
      %v3640 = vpop.permute.xlu0 %3639
      %3641 = vrot.lane.b32.xlu0 %v3541, 16
      %v3642 = vpop.permute.xlu0 %3641
      %3643 = vrot.lane.b32.xlu0 %v3547, 16
      %v3644 = vpop.permute.xlu0 %3643
      %v3645 = vsel %vm594, %v3638, %v3642
      %v3646 = vsel %vm594, %v3640, %v3644
      %v3647 = vsel %vm594, %v3634, %v3638
      %v3648 = vsel %vm594, %v3636, %v3640
      %v3649 = vsel %vm594, %v3630, %v3634
      %v3650 = vsel %vm594, %v3632, %v3636
      %v3651 = vsel %vm594, %v3626, %v3630
      %v3652 = vsel %vm594, %v3628, %v3632
      %v3653 = vsel %vm594, %v3622, %v3626
      %v3654 = vsel %vm594, %v3624, %v3628
      %v3655 = vsel %vm594, %v3618, %v3622
      %v3656 = vsel %vm594, %v3620, %v3624
      %v3657 = vsel %vm594, %v3614, %v3618
      %v3658 = vsel %vm594, %v3616, %v3620
      %v3659 = vsel %vm594, %v3642, %v3614
      %v3660 = vsel %vm594, %v3644, %v3616
      %v3661 = vmul.f32 %v3659, %v609
      %v3662 = vmul.f32 %v3657, %v613
      %v3663 = vmul.f32 %v3655, %v617
      %v3664 = vmul.f32 %v3653, %v621
      %v3665 = vmul.f32 %v3651, %v625
      %v3666 = vmul.f32 %v3649, %v629
      %v3667 = vmul.f32 %v3647, %v633
      %v3668 = vmul.f32 %v3645, %v637
      %v3669 = vmul.f32 %v3660, %v609
      %v3670 = vmul.f32 %v3658, %v613
      %v3671 = vmul.f32 %v3656, %v617
      %v3672 = vmul.f32 %v3654, %v621
      %v3673 = vmul.f32 %v3652, %v625
      %v3674 = vmul.f32 %v3650, %v629
      %v3675 = vmul.f32 %v3648, %v633
      %v3676 = vmul.f32 %v3646, %v637
      %3677 = vrot.lane.b32.xlu0 %v3308, 15
      %v3678 = vpop.permute.xlu0 %3677
      %3679 = vrot.lane.b32.xlu0 %v3314, 15
      %v3680 = vpop.permute.xlu0 %3679
      %3681 = vrot.lane.b32.xlu0 %v3310, 15
      %v3682 = vpop.permute.xlu0 %3681
      %3683 = vrot.lane.b32.xlu0 %v3316, 15
      %v3684 = vpop.permute.xlu0 %3683
      %3685 = vrot.lane.b32.xlu0 %v3385, 15
      %v3686 = vpop.permute.xlu0 %3685
      %3687 = vrot.lane.b32.xlu0 %v3391, 15
      %v3688 = vpop.permute.xlu0 %3687
      %3689 = vrot.lane.b32.xlu0 %v3387, 15
      %v3690 = vpop.permute.xlu0 %3689
      %3691 = vrot.lane.b32.xlu0 %v3393, 15
      %v3692 = vpop.permute.xlu0 %3691
      %3693 = vrot.lane.b32.xlu0 %v3462, 15
      %v3694 = vpop.permute.xlu0 %3693
      %3695 = vrot.lane.b32.xlu0 %v3468, 15
      %v3696 = vpop.permute.xlu0 %3695
      %3697 = vrot.lane.b32.xlu0 %v3464, 15
      %v3698 = vpop.permute.xlu0 %3697
      %3699 = vrot.lane.b32.xlu0 %v3470, 15
      %v3700 = vpop.permute.xlu0 %3699
      %3701 = vrot.lane.b32.xlu0 %v3539, 15
      %v3702 = vpop.permute.xlu0 %3701
      %3703 = vrot.lane.b32.xlu0 %v3545, 15
      %v3704 = vpop.permute.xlu0 %3703
      %3705 = vrot.lane.b32.xlu0 %v3541, 15
      %v3706 = vpop.permute.xlu0 %3705
      %3707 = vrot.lane.b32.xlu0 %v3547, 15
      %v3708 = vpop.permute.xlu0 %3707
      %v3709 = vsel %vm670, %v3702, %v3706
      %v3710 = vsel %vm670, %v3704, %v3708
      %v3711 = vsel %vm670, %v3698, %v3702
      %v3712 = vsel %vm670, %v3700, %v3704
      %v3713 = vsel %vm670, %v3694, %v3698
      %v3714 = vsel %vm670, %v3696, %v3700
      %v3715 = vsel %vm670, %v3690, %v3694
      %v3716 = vsel %vm670, %v3692, %v3696
      %v3717 = vsel %vm670, %v3686, %v3690
      %v3718 = vsel %vm670, %v3688, %v3692
      %v3719 = vsel %vm670, %v3682, %v3686
      %v3720 = vsel %vm670, %v3684, %v3688
      %v3721 = vsel %vm670, %v3678, %v3682
      %v3722 = vsel %vm670, %v3680, %v3684
      %v3723 = vsel %vm670, %v3706, %v3678
      %v3724 = vsel %vm670, %v3708, %v3680
      %v3725 = vmul.f32 %v3723, %v685
      %v3726 = vmul.f32 %v3721, %v689
      %v3727 = vmul.f32 %v3719, %v693
      %v3728 = vmul.f32 %v3717, %v697
      %v3729 = vmul.f32 %v3715, %v701
      %v3730 = vmul.f32 %v3713, %v705
      %v3731 = vmul.f32 %v3711, %v709
      %v3732 = vmul.f32 %v3709, %v713
      %v3733 = vmul.f32 %v3724, %v685
      %v3734 = vmul.f32 %v3722, %v689
      %v3735 = vmul.f32 %v3720, %v693
      %v3736 = vmul.f32 %v3718, %v697
      %v3737 = vmul.f32 %v3716, %v701
      %v3738 = vmul.f32 %v3714, %v705
      %v3739 = vmul.f32 %v3712, %v709
      %v3740 = vmul.f32 %v3710, %v713
      %3741 = vrot.lane.b32.xlu0 %v3308, 1
      %v3742 = vpop.permute.xlu0 %3741
      %3743 = vrot.lane.b32.xlu0 %v3314, 1
      %v3744 = vpop.permute.xlu0 %3743
      %3745 = vrot.lane.b32.xlu0 %v3310, 1
      %v3746 = vpop.permute.xlu0 %3745
      %3747 = vrot.lane.b32.xlu0 %v3316, 1
      %v3748 = vpop.permute.xlu0 %3747
      %3749 = vrot.lane.b32.xlu0 %v3385, 1
      %v3750 = vpop.permute.xlu0 %3749
      %3751 = vrot.lane.b32.xlu0 %v3391, 1
      %v3752 = vpop.permute.xlu0 %3751
      %3753 = vrot.lane.b32.xlu0 %v3387, 1
      %v3754 = vpop.permute.xlu0 %3753
      %3755 = vrot.lane.b32.xlu0 %v3393, 1
      %v3756 = vpop.permute.xlu0 %3755
      %3757 = vrot.lane.b32.xlu0 %v3462, 1
      %v3758 = vpop.permute.xlu0 %3757
      %3759 = vrot.lane.b32.xlu0 %v3468, 1
      %v3760 = vpop.permute.xlu0 %3759
      %3761 = vrot.lane.b32.xlu0 %v3464, 1
      %v3762 = vpop.permute.xlu0 %3761
      %3763 = vrot.lane.b32.xlu0 %v3470, 1
      %v3764 = vpop.permute.xlu0 %3763
      %3765 = vrot.lane.b32.xlu0 %v3539, 1
      %v3766 = vpop.permute.xlu0 %3765
      %3767 = vrot.lane.b32.xlu0 %v3545, 1
      %v3768 = vpop.permute.xlu0 %3767
      %3769 = vrot.lane.b32.xlu0 %v3541, 1
      %v3770 = vpop.permute.xlu0 %3769
      %3771 = vrot.lane.b32.xlu0 %v3547, 1
      %v3772 = vpop.permute.xlu0 %3771
      %v3773 = vsel %vm746, %v3766, %v3770
      %v3774 = vsel %vm746, %v3768, %v3772
      %v3775 = vsel %vm746, %v3762, %v3766
      %v3776 = vsel %vm746, %v3764, %v3768
      %v3777 = vsel %vm746, %v3758, %v3762
      %v3778 = vsel %vm746, %v3760, %v3764
      %v3779 = vsel %vm746, %v3754, %v3758
      %v3780 = vsel %vm746, %v3756, %v3760
      %v3781 = vsel %vm746, %v3750, %v3754
      %v3782 = vsel %vm746, %v3752, %v3756
      %v3783 = vsel %vm746, %v3746, %v3750
      %v3784 = vsel %vm746, %v3748, %v3752
      %v3785 = vsel %vm746, %v3742, %v3746
      %v3786 = vsel %vm746, %v3744, %v3748
      %v3787 = vsel %vm746, %v3770, %v3742
      %v3788 = vsel %vm746, %v3772, %v3744
      %v3789 = vmul.f32 %v3787, %v761
      %v3790 = vmul.f32 %v3785, %v765
      %v3791 = vmul.f32 %v3783, %v769
      %v3792 = vmul.f32 %v3781, %v773
      %v3793 = vmul.f32 %v3779, %v777
      %v3794 = vmul.f32 %v3777, %v781
      %v3795 = vmul.f32 %v3775, %v785
      %v3796 = vmul.f32 %v3773, %v789
      %v3797 = vmul.f32 %v3788, %v761
      %v3798 = vmul.f32 %v3786, %v765
      %v3799 = vmul.f32 %v3784, %v769
      %v3800 = vmul.f32 %v3782, %v773
      %v3801 = vmul.f32 %v3780, %v777
      %v3802 = vmul.f32 %v3778, %v781
      %v3803 = vmul.f32 %v3776, %v785
      %v3804 = vmul.f32 %v3774, %v789
      %v3805 = vmul.f32 %v3308, %v812
      %v3806 = vmul.f32 %v3310, %v816
      %v3807 = vmul.f32 %v3385, %v820
      %v3808 = vmul.f32 %v3387, %v824
      %v3809 = vmul.f32 %v3462, %v828
      %v3810 = vmul.f32 %v3464, %v832
      %v3811 = vmul.f32 %v3539, %v836
      %v3812 = vmul.f32 %v3541, %v840
      %v3813 = vmul.f32 %v3314, %v812
      %v3814 = vmul.f32 %v3316, %v816
      %v3815 = vmul.f32 %v3391, %v820
      %v3816 = vmul.f32 %v3393, %v824
      %v3817 = vmul.f32 %v3468, %v828
      %v3818 = vmul.f32 %v3470, %v832
      %v3819 = vmul.f32 %v3545, %v836
      %v3820 = vmul.f32 %v3547, %v840
      %3821 = vrot.lane.b32.xlu0 %v3308, 127
      %v3822 = vpop.permute.xlu0 %3821
      %3823 = vrot.lane.b32.xlu0 %v3314, 127
      %v3824 = vpop.permute.xlu0 %3823
      %3825 = vrot.lane.b32.xlu0 %v3310, 127
      %v3826 = vpop.permute.xlu0 %3825
      %3827 = vrot.lane.b32.xlu0 %v3316, 127
      %v3828 = vpop.permute.xlu0 %3827
      %3829 = vrot.lane.b32.xlu0 %v3385, 127
      %v3830 = vpop.permute.xlu0 %3829
      %3831 = vrot.lane.b32.xlu0 %v3391, 127
      %v3832 = vpop.permute.xlu0 %3831
      %3833 = vrot.lane.b32.xlu0 %v3387, 127
      %v3834 = vpop.permute.xlu0 %3833
      %3835 = vrot.lane.b32.xlu0 %v3393, 127
      %v3836 = vpop.permute.xlu0 %3835
      %3837 = vrot.lane.b32.xlu0 %v3462, 127
      %v3838 = vpop.permute.xlu0 %3837
      %3839 = vrot.lane.b32.xlu0 %v3468, 127
      %v3840 = vpop.permute.xlu0 %3839
      %3841 = vrot.lane.b32.xlu0 %v3464, 127
      %v3842 = vpop.permute.xlu0 %3841
      %3843 = vrot.lane.b32.xlu0 %v3470, 127
      %v3844 = vpop.permute.xlu0 %3843
      %3845 = vrot.lane.b32.xlu0 %v3539, 127
      %v3846 = vpop.permute.xlu0 %3845
      %3847 = vrot.lane.b32.xlu0 %v3545, 127
      %v3848 = vpop.permute.xlu0 %3847
      %3849 = vrot.lane.b32.xlu0 %v3541, 127
      %v3850 = vpop.permute.xlu0 %3849
      %3851 = vrot.lane.b32.xlu0 %v3547, 127
      %v3852 = vpop.permute.xlu0 %3851
      %v3853 = vsel %vm873, %v3846, %v3850
      %v3854 = vsel %vm873, %v3848, %v3852
      %v3855 = vsel %vm873, %v3842, %v3846
      %v3856 = vsel %vm873, %v3844, %v3848
      %v3857 = vsel %vm873, %v3838, %v3842
      %v3858 = vsel %vm873, %v3840, %v3844
      %v3859 = vsel %vm873, %v3834, %v3838
      %v3860 = vsel %vm873, %v3836, %v3840
      %v3861 = vsel %vm873, %v3830, %v3834
      %v3862 = vsel %vm873, %v3832, %v3836
      %v3863 = vsel %vm873, %v3826, %v3830
      %v3864 = vsel %vm873, %v3828, %v3832
      %v3865 = vsel %vm873, %v3822, %v3826
      %v3866 = vsel %vm873, %v3824, %v3828
      %v3867 = vsel %vm873, %v3850, %v3822
      %v3868 = vsel %vm873, %v3852, %v3824
      %v3869 = vmul.f32 %v3865, %v888
      %v3870 = vmul.f32 %v3863, %v892
      %v3871 = vmul.f32 %v3861, %v896
      %v3872 = vmul.f32 %v3859, %v900
      %v3873 = vmul.f32 %v3857, %v904
      %v3874 = vmul.f32 %v3855, %v908
      %v3875 = vmul.f32 %v3853, %v912
      %v3876 = vmul.f32 %v3867, %v916
      %v3877 = vmul.f32 %v3866, %v888
      %v3878 = vmul.f32 %v3864, %v892
      %v3879 = vmul.f32 %v3862, %v896
      %v3880 = vmul.f32 %v3860, %v900
      %v3881 = vmul.f32 %v3858, %v904
      %v3882 = vmul.f32 %v3856, %v908
      %v3883 = vmul.f32 %v3854, %v912
      %v3884 = vmul.f32 %v3868, %v916
      %3885 = vrot.lane.b32.xlu0 %v3308, 113
      %v3886 = vpop.permute.xlu0 %3885
      %3887 = vrot.lane.b32.xlu0 %v3314, 113
      %v3888 = vpop.permute.xlu0 %3887
      %3889 = vrot.lane.b32.xlu0 %v3310, 113
      %v3890 = vpop.permute.xlu0 %3889
      %3891 = vrot.lane.b32.xlu0 %v3316, 113
      %v3892 = vpop.permute.xlu0 %3891
      %3893 = vrot.lane.b32.xlu0 %v3385, 113
      %v3894 = vpop.permute.xlu0 %3893
      %3895 = vrot.lane.b32.xlu0 %v3391, 113
      %v3896 = vpop.permute.xlu0 %3895
      %3897 = vrot.lane.b32.xlu0 %v3387, 113
      %v3898 = vpop.permute.xlu0 %3897
      %3899 = vrot.lane.b32.xlu0 %v3393, 113
      %v3900 = vpop.permute.xlu0 %3899
      %3901 = vrot.lane.b32.xlu0 %v3462, 113
      %v3902 = vpop.permute.xlu0 %3901
      %3903 = vrot.lane.b32.xlu0 %v3468, 113
      %v3904 = vpop.permute.xlu0 %3903
      %3905 = vrot.lane.b32.xlu0 %v3464, 113
      %v3906 = vpop.permute.xlu0 %3905
      %3907 = vrot.lane.b32.xlu0 %v3470, 113
      %v3908 = vpop.permute.xlu0 %3907
      %3909 = vrot.lane.b32.xlu0 %v3539, 113
      %v3910 = vpop.permute.xlu0 %3909
      %3911 = vrot.lane.b32.xlu0 %v3545, 113
      %v3912 = vpop.permute.xlu0 %3911
      %3913 = vrot.lane.b32.xlu0 %v3541, 113
      %v3914 = vpop.permute.xlu0 %3913
      %3915 = vrot.lane.b32.xlu0 %v3547, 113
      %v3916 = vpop.permute.xlu0 %3915
      %v3917 = vsel %vm949, %v3910, %v3914
      %v3918 = vsel %vm949, %v3912, %v3916
      %v3919 = vsel %vm949, %v3906, %v3910
      %v3920 = vsel %vm949, %v3908, %v3912
      %v3921 = vsel %vm949, %v3902, %v3906
      %v3922 = vsel %vm949, %v3904, %v3908
      %v3923 = vsel %vm949, %v3898, %v3902
      %v3924 = vsel %vm949, %v3900, %v3904
      %v3925 = vsel %vm949, %v3894, %v3898
      %v3926 = vsel %vm949, %v3896, %v3900
      %v3927 = vsel %vm949, %v3890, %v3894
      %v3928 = vsel %vm949, %v3892, %v3896
      %v3929 = vsel %vm949, %v3886, %v3890
      %v3930 = vsel %vm949, %v3888, %v3892
      %v3931 = vsel %vm949, %v3914, %v3886
      %v3932 = vsel %vm949, %v3916, %v3888
      %v3933 = vmul.f32 %v3929, %v964
      %v3934 = vmul.f32 %v3927, %v968
      %v3935 = vmul.f32 %v3925, %v972
      %v3936 = vmul.f32 %v3923, %v976
      %v3937 = vmul.f32 %v3921, %v980
      %v3938 = vmul.f32 %v3919, %v984
      %v3939 = vmul.f32 %v3917, %v988
      %v3940 = vmul.f32 %v3931, %v992
      %v3941 = vmul.f32 %v3930, %v964
      %v3942 = vmul.f32 %v3928, %v968
      %v3943 = vmul.f32 %v3926, %v972
      %v3944 = vmul.f32 %v3924, %v976
      %v3945 = vmul.f32 %v3922, %v980
      %v3946 = vmul.f32 %v3920, %v984
      %v3947 = vmul.f32 %v3918, %v988
      %v3948 = vmul.f32 %v3932, %v992
      %3949 = vrot.lane.b32.xlu0 %v3308, 112
      %v3950 = vpop.permute.xlu0 %3949
      %3951 = vrot.lane.b32.xlu0 %v3314, 112
      %v3952 = vpop.permute.xlu0 %3951
      %3953 = vrot.lane.b32.xlu0 %v3310, 112
      %v3954 = vpop.permute.xlu0 %3953
      %3955 = vrot.lane.b32.xlu0 %v3316, 112
      %v3956 = vpop.permute.xlu0 %3955
      %3957 = vrot.lane.b32.xlu0 %v3385, 112
      %v3958 = vpop.permute.xlu0 %3957
      %3959 = vrot.lane.b32.xlu0 %v3391, 112
      %v3960 = vpop.permute.xlu0 %3959
      %3961 = vrot.lane.b32.xlu0 %v3387, 112
      %v3962 = vpop.permute.xlu0 %3961
      %3963 = vrot.lane.b32.xlu0 %v3393, 112
      %v3964 = vpop.permute.xlu0 %3963
      %3965 = vrot.lane.b32.xlu0 %v3462, 112
      %v3966 = vpop.permute.xlu0 %3965
      %3967 = vrot.lane.b32.xlu0 %v3468, 112
      %v3968 = vpop.permute.xlu0 %3967
      %3969 = vrot.lane.b32.xlu0 %v3464, 112
      %v3970 = vpop.permute.xlu0 %3969
      %3971 = vrot.lane.b32.xlu0 %v3470, 112
      %v3972 = vpop.permute.xlu0 %3971
      %3973 = vrot.lane.b32.xlu0 %v3539, 112
      %v3974 = vpop.permute.xlu0 %3973
      %3975 = vrot.lane.b32.xlu0 %v3545, 112
      %v3976 = vpop.permute.xlu0 %3975
      %3977 = vrot.lane.b32.xlu0 %v3541, 112
      %v3978 = vpop.permute.xlu0 %3977
      %3979 = vrot.lane.b32.xlu0 %v3547, 112
      %v3980 = vpop.permute.xlu0 %3979
      %v3981 = vsel %vm1025, %v3974, %v3978
      %v3982 = vsel %vm1025, %v3976, %v3980
      %v3983 = vsel %vm1025, %v3970, %v3974
      %v3984 = vsel %vm1025, %v3972, %v3976
      %v3985 = vsel %vm1025, %v3966, %v3970
      %v3986 = vsel %vm1025, %v3968, %v3972
      %v3987 = vsel %vm1025, %v3962, %v3966
      %v3988 = vsel %vm1025, %v3964, %v3968
      %v3989 = vsel %vm1025, %v3958, %v3962
      %v3990 = vsel %vm1025, %v3960, %v3964
      %v3991 = vsel %vm1025, %v3954, %v3958
      %v3992 = vsel %vm1025, %v3956, %v3960
      %v3993 = vsel %vm1025, %v3950, %v3954
      %v3994 = vsel %vm1025, %v3952, %v3956
      %v3995 = vsel %vm1025, %v3978, %v3950
      %v3996 = vsel %vm1025, %v3980, %v3952
      %v3997 = vmul.f32 %v3993, %v1040
      %v3998 = vmul.f32 %v3991, %v1044
      %v3999 = vmul.f32 %v3989, %v1048
      %v4000 = vmul.f32 %v3987, %v1052
      %v4001 = vmul.f32 %v3985, %v1056
      %v4002 = vmul.f32 %v3983, %v1060
      %v4003 = vmul.f32 %v3981, %v1064
      %v4004 = vmul.f32 %v3995, %v1068
      %v4005 = vmul.f32 %v3994, %v1040
      %v4006 = vmul.f32 %v3992, %v1044
      %v4007 = vmul.f32 %v3990, %v1048
      %v4008 = vmul.f32 %v3988, %v1052
      %v4009 = vmul.f32 %v3986, %v1056
      %v4010 = vmul.f32 %v3984, %v1060
      %v4011 = vmul.f32 %v3982, %v1064
      %v4012 = vmul.f32 %v3996, %v1068
      %4013 = vrot.lane.b32.xlu0 %v3308, 111
      %v4014 = vpop.permute.xlu0 %4013
      %4015 = vrot.lane.b32.xlu0 %v3314, 111
      %v4016 = vpop.permute.xlu0 %4015
      %4017 = vrot.lane.b32.xlu0 %v3310, 111
      %v4018 = vpop.permute.xlu0 %4017
      %4019 = vrot.lane.b32.xlu0 %v3316, 111
      %v4020 = vpop.permute.xlu0 %4019
      %4021 = vrot.lane.b32.xlu0 %v3385, 111
      %v4022 = vpop.permute.xlu0 %4021
      %4023 = vrot.lane.b32.xlu0 %v3391, 111
      %v4024 = vpop.permute.xlu0 %4023
      %4025 = vrot.lane.b32.xlu0 %v3387, 111
      %v4026 = vpop.permute.xlu0 %4025
      %4027 = vrot.lane.b32.xlu0 %v3393, 111
      %v4028 = vpop.permute.xlu0 %4027
      %4029 = vrot.lane.b32.xlu0 %v3462, 111
      %v4030 = vpop.permute.xlu0 %4029
      %4031 = vrot.lane.b32.xlu0 %v3468, 111
      %v4032 = vpop.permute.xlu0 %4031
      %4033 = vrot.lane.b32.xlu0 %v3464, 111
      %v4034 = vpop.permute.xlu0 %4033
      %4035 = vrot.lane.b32.xlu0 %v3470, 111
      %v4036 = vpop.permute.xlu0 %4035
      %4037 = vrot.lane.b32.xlu0 %v3539, 111
      %v4038 = vpop.permute.xlu0 %4037
      %4039 = vrot.lane.b32.xlu0 %v3545, 111
      %v4040 = vpop.permute.xlu0 %4039
      %4041 = vrot.lane.b32.xlu0 %v3541, 111
      %v4042 = vpop.permute.xlu0 %4041
      %4043 = vrot.lane.b32.xlu0 %v3547, 111
      %v4044 = vpop.permute.xlu0 %4043
      %v4045 = vsel %vm1101, %v4038, %v4042
      %v4046 = vsel %vm1101, %v4040, %v4044
      %v4047 = vsel %vm1101, %v4034, %v4038
      %v4048 = vsel %vm1101, %v4036, %v4040
      %v4049 = vsel %vm1101, %v4030, %v4034
      %v4050 = vsel %vm1101, %v4032, %v4036
      %v4051 = vsel %vm1101, %v4026, %v4030
      %v4052 = vsel %vm1101, %v4028, %v4032
      %v4053 = vsel %vm1101, %v4022, %v4026
      %v4054 = vsel %vm1101, %v4024, %v4028
      %v4055 = vsel %vm1101, %v4018, %v4022
      %v4056 = vsel %vm1101, %v4020, %v4024
      %v4057 = vsel %vm1101, %v4014, %v4018
      %v4058 = vsel %vm1101, %v4016, %v4020
      %v4059 = vsel %vm1101, %v4042, %v4014
      %v4060 = vsel %vm1101, %v4044, %v4016
      %v4061 = vmul.f32 %v4057, %v1116
      %v4062 = vmul.f32 %v4055, %v1120
      %v4063 = vmul.f32 %v4053, %v1124
      %v4064 = vmul.f32 %v4051, %v1128
      %v4065 = vmul.f32 %v4049, %v1132
      %v4066 = vmul.f32 %v4047, %v1136
      %v4067 = vmul.f32 %v4045, %v1140
      %v4068 = vmul.f32 %v4059, %v1144
      %v4069 = vmul.f32 %v4058, %v1116
      %v4070 = vmul.f32 %v4056, %v1120
      %v4071 = vmul.f32 %v4054, %v1124
      %v4072 = vmul.f32 %v4052, %v1128
      %v4073 = vmul.f32 %v4050, %v1132
      %v4074 = vmul.f32 %v4048, %v1136
      %v4075 = vmul.f32 %v4046, %v1140
      %v4076 = vmul.f32 %v4060, %v1144
      %v4077 = vld [vmem:[%s7] sm:$0xff]
      %v4078 = vld [vmem:[%s7 + $0x8] sm:$0xff]
      %v4079 = vld [vmem:[%s8] sm:$0xff]
      %4081 = vset.pattern.permute.xlu0 0
      %4082 = vperm.xlu0 %4081, %v4079
      %v4083 = vpop.permute.xlu0 %4082
      %v4086 = vsel %vm2524, %v4078, 0
      %4088 = vmatprep.subr.mxu0 %v3598
      %4089 = vmatpush1.msra.mxu0 %v3597
      %4090 = vmatprep.subr.mxu0 %v3606
      %4091 = vmatpush1.msra.mxu0 %v3605
      %4092 = vmatprep.subr.mxu0 %v3662
      %4093 = vmatpush1.msra.mxu0 %v3661
      %4094 = vmatprep.subr.mxu0 %v3670
      %4095 = vmatpush1.msra.mxu0 %v3669
      %4096 = vmatprep.subr.mxu0 %v3726
      %4097 = vmatpush1.msra.mxu0 %v3725
      %4098 = vmatprep.subr.mxu0 %v3734
      %4099 = vmatpush1.msra.mxu0 %v3733
      %4100 = vmatprep.subr.mxu0 %v3790
      %4101 = vmatpush1.msra.mxu0 %v3789
      %4102 = vmatprep.subr.mxu0 %v3798
      %4103 = vmatpush1.msra.mxu0 %v3797
      %4104 = vmatprep.subr.mxu0 %v3806
      %4105 = vmatpush1.msra.mxu0 %v3805
      %4106 = vmatprep.subr.mxu0 %v3814
      %4107 = vmatpush1.msra.mxu0 %v3813
      %4108 = vmatprep.subr.mxu0 %v3870
      %4109 = vmatpush1.msra.mxu0 %v3869
      %4110 = vmatprep.subr.mxu0 %v3878
      %4111 = vmatpush1.msra.mxu0 %v3877
      %4112 = vmatprep.subr.mxu0 %v3934
      %4113 = vmatpush1.msra.mxu0 %v3933
      %4114 = vmatprep.subr.mxu0 %v3942
      %4115 = vmatpush1.msra.mxu0 %v3941
      %4116 = vmatprep.subr.mxu0 %v3998
      %4117 = vmatpush1.msra.mxu0 %v3997
      %4118 = vmatprep.subr.mxu0 %v4006
      %4119 = vmatpush1.msra.mxu0 %v4005
      %4120 = vmatprep.subr.mxu0 %v4062
      %4121 = vmatpush1.msra.mxu0 %v4061
      %4122 = vmatprep.subr.mxu0 %v4070
      %4123 = vmatpush1.msra.mxu0 %v4069
      %4124 = vmatprep.subr.mxu0 0.0
      %4125 = vmatpush1.msra.mxu0 0.0
      %4126 = vmatprep.subr.mxu0 0.0
      %4127 = vmatpush1.msra.mxu0 0.0
      %4128 = vmatprep.subr.mxu0 0.0
      %4129 = vmatpush1.msra.mxu0 0.0
      %4130 = vmatprep.subr.mxu0 0.0
      %4131 = vmatpush1.msra.mxu0 0.0
      %4132 = vmatprep.subr.mxu0 0.0
      %4133 = vmatpush1.msra.mxu0 0.0
      %4134 = vmatprep.subr.mxu0 0.0
      %4135 = vmatpush1.msra.mxu0 0.0
      %4136 = vmatprep.subr.mxu0 0.0
      %4137 = vmatpush1.msra.mxu0 0.0
      %4138 = vmatprep.subr.mxu0 0.0
      %4139 = vmatpush1.msra.mxu0 0.0
      %4140 = vmatprep.subr.mxu0 0.0
      %4141 = vmatpush1.msra.mxu0 0.0
      %4142 = vmatprep.subr.mxu0 0.0
      %4143 = vmatpush1.msra.mxu0 0.0
      %4144 = vmatprep.subr.mxu0 0.0
      %4145 = vmatpush1.msra.mxu0 0.0
      %4146 = vmatprep.subr.mxu0 0.0
      %4147 = vmatpush1.msra.mxu0 0.0
      %4148 = vmatprep.subr.mxu0 0.0
      %4149 = vmatpush1.msra.mxu0 0.0
      %4150 = vmatprep.subr.mxu0 0.0
      %4151 = vmatpush1.msra.mxu0 0.0
      %4152 = vmatprep.mubr.f32.mxu0 %v4086
      %4153 = vmatmul.mubr.f32.gmra.mrb[0].mxu0 %v4077
      %v4154 = vpop.f32.mrb[0].mxu0
      %v4155 = vadd.f32 %v4083, %v4154
      %v4156 = vpop.f32.mrb[0].mxu0
      %v4157 = vadd.f32 %v4083, %v4156
      %4158 = vdwg.mxu0
      %4159 = vmatprep.subr.mxu0 %v3600
      %4160 = vmatpush1.msra.mxu0 %v3599
      %4161 = vmatprep.subr.mxu0 %v3608
      %4162 = vmatpush1.msra.mxu0 %v3607
      %4163 = vmatprep.subr.mxu0 %v3664
      %4164 = vmatpush1.msra.mxu0 %v3663
      %4165 = vmatprep.subr.mxu0 %v3672
      %4166 = vmatpush1.msra.mxu0 %v3671
      %4167 = vmatprep.subr.mxu0 %v3728
      %4168 = vmatpush1.msra.mxu0 %v3727
      %4169 = vmatprep.subr.mxu0 %v3736
      %4170 = vmatpush1.msra.mxu0 %v3735
      %4171 = vmatprep.subr.mxu0 %v3792
      %4172 = vmatpush1.msra.mxu0 %v3791
      %4173 = vmatprep.subr.mxu0 %v3800
      %4174 = vmatpush1.msra.mxu0 %v3799
      %4175 = vmatprep.subr.mxu0 %v3808
      %4176 = vmatpush1.msra.mxu0 %v3807
      %4177 = vmatprep.subr.mxu0 %v3816
      %4178 = vmatpush1.msra.mxu0 %v3815
      %4179 = vmatprep.subr.mxu0 %v3872
      %4180 = vmatpush1.msra.mxu0 %v3871
      %4181 = vmatprep.subr.mxu0 %v3880
      %4182 = vmatpush1.msra.mxu0 %v3879
      %4183 = vmatprep.subr.mxu0 %v3936
      %4184 = vmatpush1.msra.mxu0 %v3935
      %4185 = vmatprep.subr.mxu0 %v3944
      %4186 = vmatpush1.msra.mxu0 %v3943
      %4187 = vmatprep.subr.mxu0 %v4000
      %4188 = vmatpush1.msra.mxu0 %v3999
      %4189 = vmatprep.subr.mxu0 %v4008
      %4190 = vmatpush1.msra.mxu0 %v4007
      %4191 = vmatprep.subr.mxu0 %v4064
      %4192 = vmatpush1.msra.mxu0 %v4063
      %4193 = vmatprep.subr.mxu0 %v4072
      %4194 = vmatpush1.msra.mxu0 %v4071
      %4195 = vmatprep.subr.mxu0 0.0
      %4196 = vmatpush1.msra.mxu0 0.0
      %4197 = vmatprep.subr.mxu0 0.0
      %4198 = vmatpush1.msra.mxu0 0.0
      %4199 = vmatprep.subr.mxu0 0.0
      %4200 = vmatpush1.msra.mxu0 0.0
      %4201 = vmatprep.subr.mxu0 0.0
      %4202 = vmatpush1.msra.mxu0 0.0
      %4203 = vmatprep.subr.mxu0 0.0
      %4204 = vmatpush1.msra.mxu0 0.0
      %4205 = vmatprep.subr.mxu0 0.0
      %4206 = vmatpush1.msra.mxu0 0.0
      %4207 = vmatprep.subr.mxu0 0.0
      %4208 = vmatpush1.msra.mxu0 0.0
      %4209 = vmatprep.subr.mxu0 0.0
      %4210 = vmatpush1.msra.mxu0 0.0
      %4211 = vmatprep.subr.mxu0 0.0
      %4212 = vmatpush1.msra.mxu0 0.0
      %4213 = vmatprep.subr.mxu0 0.0
      %4214 = vmatpush1.msra.mxu0 0.0
      %4215 = vmatprep.subr.mxu0 0.0
      %4216 = vmatpush1.msra.mxu0 0.0
      %4217 = vmatprep.subr.mxu0 0.0
      %4218 = vmatpush1.msra.mxu0 0.0
      %4219 = vmatprep.subr.mxu0 0.0
      %4220 = vmatpush1.msra.mxu0 0.0
      %4221 = vmatprep.subr.mxu0 0.0
      %4222 = vmatpush1.msra.mxu0 0.0
      %4223 = vmatprep.mubr.f32.mxu0 %v4086
      %4224 = vmatmul.mubr.f32.gmra.mrb[0].mxu0 %v4077
      %v4225 = vpop.f32.mrb[0].mxu0
      %v4226 = vadd.f32 %v4083, %v4225
      %v4227 = vpop.f32.mrb[0].mxu0
      %v4228 = vadd.f32 %v4083, %v4227
      %4229 = vdwg.mxu0
      %4230 = vmatprep.subr.mxu0 %v3602
      %4231 = vmatpush1.msra.mxu0 %v3601
      %4232 = vmatprep.subr.mxu0 %v3610
      %4233 = vmatpush1.msra.mxu0 %v3609
      %4234 = vmatprep.subr.mxu0 %v3666
      %4235 = vmatpush1.msra.mxu0 %v3665
      %4236 = vmatprep.subr.mxu0 %v3674
      %4237 = vmatpush1.msra.mxu0 %v3673
      %4238 = vmatprep.subr.mxu0 %v3730
      %4239 = vmatpush1.msra.mxu0 %v3729
      %4240 = vmatprep.subr.mxu0 %v3738
      %4241 = vmatpush1.msra.mxu0 %v3737
      %4242 = vmatprep.subr.mxu0 %v3794
      %4243 = vmatpush1.msra.mxu0 %v3793
      %4244 = vmatprep.subr.mxu0 %v3802
      %4245 = vmatpush1.msra.mxu0 %v3801
      %4246 = vmatprep.subr.mxu0 %v3810
      %4247 = vmatpush1.msra.mxu0 %v3809
      %4248 = vmatprep.subr.mxu0 %v3818
      %4249 = vmatpush1.msra.mxu0 %v3817
      %4250 = vmatprep.subr.mxu0 %v3874
      %4251 = vmatpush1.msra.mxu0 %v3873
      %4252 = vmatprep.subr.mxu0 %v3882
      %4253 = vmatpush1.msra.mxu0 %v3881
      %4254 = vmatprep.subr.mxu0 %v3938
      %4255 = vmatpush1.msra.mxu0 %v3937
      %4256 = vmatprep.subr.mxu0 %v3946
      %4257 = vmatpush1.msra.mxu0 %v3945
      %4258 = vmatprep.subr.mxu0 %v4002
      %4259 = vmatpush1.msra.mxu0 %v4001
      %4260 = vmatprep.subr.mxu0 %v4010
      %4261 = vmatpush1.msra.mxu0 %v4009
      %4262 = vmatprep.subr.mxu0 %v4066
      %4263 = vmatpush1.msra.mxu0 %v4065
      %4264 = vmatprep.subr.mxu0 %v4074
      %4265 = vmatpush1.msra.mxu0 %v4073
      %4266 = vmatprep.subr.mxu0 0.0
      %4267 = vmatpush1.msra.mxu0 0.0
      %4268 = vmatprep.subr.mxu0 0.0
      %4269 = vmatpush1.msra.mxu0 0.0
      %4270 = vmatprep.subr.mxu0 0.0
      %4271 = vmatpush1.msra.mxu0 0.0
      %4272 = vmatprep.subr.mxu0 0.0
      %4273 = vmatpush1.msra.mxu0 0.0
      %4274 = vmatprep.subr.mxu0 0.0
      %4275 = vmatpush1.msra.mxu0 0.0
      %4276 = vmatprep.subr.mxu0 0.0
      %4277 = vmatpush1.msra.mxu0 0.0
      %4278 = vmatprep.subr.mxu0 0.0
      %4279 = vmatpush1.msra.mxu0 0.0
      %4280 = vmatprep.subr.mxu0 0.0
      %4281 = vmatpush1.msra.mxu0 0.0
      %4282 = vmatprep.subr.mxu0 0.0
      %4283 = vmatpush1.msra.mxu0 0.0
      %4284 = vmatprep.subr.mxu0 0.0
      %4285 = vmatpush1.msra.mxu0 0.0
      %4286 = vmatprep.subr.mxu0 0.0
      %4287 = vmatpush1.msra.mxu0 0.0
      %4288 = vmatprep.subr.mxu0 0.0
      %4289 = vmatpush1.msra.mxu0 0.0
      %4290 = vmatprep.subr.mxu0 0.0
      %4291 = vmatpush1.msra.mxu0 0.0
      %4292 = vmatprep.subr.mxu0 0.0
      %4293 = vmatpush1.msra.mxu0 0.0
      %4294 = vmatprep.mubr.f32.mxu0 %v4086
      %4295 = vmatmul.mubr.f32.gmra.mrb[0].mxu0 %v4077
      %v4296 = vpop.f32.mrb[0].mxu0
      %v4297 = vadd.f32 %v4083, %v4296
      %v4298 = vpop.f32.mrb[0].mxu0
      %v4299 = vadd.f32 %v4083, %v4298
      %4300 = vdwg.mxu0
      %4301 = vmatprep.subr.mxu0 %v3604
      %4302 = vmatpush1.msra.mxu0 %v3603
      %4303 = vmatprep.subr.mxu0 %v3612
      %4304 = vmatpush1.msra.mxu0 %v3611
      %4305 = vmatprep.subr.mxu0 %v3668
      %4306 = vmatpush1.msra.mxu0 %v3667
      %4307 = vmatprep.subr.mxu0 %v3676
      %4308 = vmatpush1.msra.mxu0 %v3675
      %4309 = vmatprep.subr.mxu0 %v3732
      %4310 = vmatpush1.msra.mxu0 %v3731
      %4311 = vmatprep.subr.mxu0 %v3740
      %4312 = vmatpush1.msra.mxu0 %v3739
      %4313 = vmatprep.subr.mxu0 %v3796
      %4314 = vmatpush1.msra.mxu0 %v3795
      %4315 = vmatprep.subr.mxu0 %v3804
      %4316 = vmatpush1.msra.mxu0 %v3803
      %4317 = vmatprep.subr.mxu0 %v3812
      %4318 = vmatpush1.msra.mxu0 %v3811
      %4319 = vmatprep.subr.mxu0 %v3820
      %4320 = vmatpush1.msra.mxu0 %v3819
      %4321 = vmatprep.subr.mxu0 %v3876
      %4322 = vmatpush1.msra.mxu0 %v3875
      %4323 = vmatprep.subr.mxu0 %v3884
      %4324 = vmatpush1.msra.mxu0 %v3883
      %4325 = vmatprep.subr.mxu0 %v3940
      %4326 = vmatpush1.msra.mxu0 %v3939
      %4327 = vmatprep.subr.mxu0 %v3948
      %4328 = vmatpush1.msra.mxu0 %v3947
      %4329 = vmatprep.subr.mxu0 %v4004
      %4330 = vmatpush1.msra.mxu0 %v4003
      %4331 = vmatprep.subr.mxu0 %v4012
      %4332 = vmatpush1.msra.mxu0 %v4011
      %4333 = vmatprep.subr.mxu0 %v4068
      %4334 = vmatpush1.msra.mxu0 %v4067
      %4335 = vmatprep.subr.mxu0 %v4076
      %4336 = vmatpush1.msra.mxu0 %v4075
      %4337 = vmatprep.subr.mxu0 0.0
      %4338 = vmatpush1.msra.mxu0 0.0
      %4339 = vmatprep.subr.mxu0 0.0
      %4340 = vmatpush1.msra.mxu0 0.0
      %4341 = vmatprep.subr.mxu0 0.0
      %4342 = vmatpush1.msra.mxu0 0.0
      %4343 = vmatprep.subr.mxu0 0.0
      %4344 = vmatpush1.msra.mxu0 0.0
      %4345 = vmatprep.subr.mxu0 0.0
      %4346 = vmatpush1.msra.mxu0 0.0
      %4347 = vmatprep.subr.mxu0 0.0
      %4348 = vmatpush1.msra.mxu0 0.0
      %4349 = vmatprep.subr.mxu0 0.0
      %4350 = vmatpush1.msra.mxu0 0.0
      %4351 = vmatprep.subr.mxu0 0.0
      %4352 = vmatpush1.msra.mxu0 0.0
      %4353 = vmatprep.subr.mxu0 0.0
      %4354 = vmatpush1.msra.mxu0 0.0
      %4355 = vmatprep.subr.mxu0 0.0
      %4356 = vmatpush1.msra.mxu0 0.0
      %4357 = vmatprep.subr.mxu0 0.0
      %4358 = vmatpush1.msra.mxu0 0.0
      %4359 = vmatprep.subr.mxu0 0.0
      %4360 = vmatpush1.msra.mxu0 0.0
      %4361 = vmatprep.subr.mxu0 0.0
      %4362 = vmatpush1.msra.mxu0 0.0
      %4363 = vmatprep.subr.mxu0 0.0
      %4364 = vmatpush1.msra.mxu0 0.0
      %4365 = vmatprep.mubr.f32.mxu0 %v4086
      %4366 = vmatmul.mubr.f32.gmra.mrb[0].mxu0 %v4077
      %v4367 = vpop.f32.mrb[0].mxu0
      %v4368 = vadd.f32 %v4083, %v4367
      %v4369 = vpop.f32.mrb[0].mxu0
      %v4370 = vadd.f32 %v4083, %v4369
      %4371 = vdwg.mxu0
      %v4372 = vmax.f32 %v4155, 0.0
      %v4373 = vmax.f32 %v4157, 0.0
      %v4374 = vmax.f32 %v4226, 0.0
      %v4375 = vmax.f32 %v4228, 0.0
      %v4376 = vmax.f32 %v4297, 0.0
      %v4377 = vmax.f32 %v4299, 0.0
      %v4378 = vmax.f32 %v4368, 0.0
      %v4379 = vmax.f32 %v4370, 0.0
      %v4388 = vcombine.low %v4372, %v4373
      %v4389 = vcombine.low %v4374, %v4375
      %v4390 = vcombine.low %v4376, %v4377
      %v4391 = vcombine.low %v4378, %v4379
      %v4393 = vunpack.c.l.s4 1966171168
      %v4394 = vunpack.c.0.s8 %v4393
      %v4395 = vlaneseq
      %v4396 = vshrl.u32 %v4395, 7
      %v4397 = vsub.s32 %v4394, %v4396
      %v4398 = vrot.slane %v4388, %v4397
      %v4400 = vunpack.c.l.s4 1966171168
      %v4401 = vunpack.c.0.s8 %v4400
      %v4402 = vlaneseq
      %v4403 = vshrl.u32 %v4402, 7
      %v4404 = vsub.s32 %v4401, %v4403
      %v4405 = vrot.slane %v4389, %v4404
      %v4407 = vunpack.c.l.s4 1966171168
      %v4408 = vunpack.c.0.s8 %v4407
      %v4409 = vlaneseq
      %v4410 = vshrl.u32 %v4409, 7
      %v4411 = vsub.s32 %v4408, %v4410
      %v4412 = vrot.slane %v4390, %v4411
      %v4414 = vunpack.c.l.s4 1966171168
      %v4415 = vunpack.c.0.s8 %v4414
      %v4416 = vlaneseq
      %v4417 = vshrl.u32 %v4416, 7
      %v4418 = vsub.s32 %v4415, %v4417
      %v4419 = vrot.slane %v4391, %v4418
      %v4420 = vcombine.low %v4398, %v4405
      %v4421 = vcombine.low %v4412, %v4419
      %v4423 = vunpack.c.l.s4 1966171168
      %v4424 = vunpack.c.0.s8 %v4423
      %v4425 = vlaneseq
      %v4426 = vshrl.u32 %v4425, 7
      %v4427 = vsub.s32 %v4424, %v4426
      %v4428 = vrot.slane %v4420, %v4427
      %v4430 = vunpack.c.l.s4 1966171168
      %v4431 = vunpack.c.0.s8 %v4430
      %v4432 = vlaneseq
      %v4433 = vshrl.u32 %v4432, 7
      %v4434 = vsub.s32 %v4431, %v4433
      %v4435 = vrot.slane %v4421, %v4434
      %v4436 = vcombine.low %v4428, %v4435
      %4438 = vst [vmem:[%s492] sm:$0xff] %v4436
      %p4439 = scmp.lt.s32.totalorder %s26, 1
      %s4440 = scalar_select %p4439, %s26, 1
      %s4441 = smul.addr %s4440, 8
      %s4442 = scalar_lea.vmem %s15, %s4441
      // Predicated region
      $region81: #{autoencoder_forward.1} parent=79 // pred_check
        %p4443 = pneg %p364
      $region82: #{autoencoder_forward.1} parent=79 // pred_check_branch
        %4445 = sbr.rel (%p4443) target = $region84
      $region83: #{autoencoder_forward.1} parent=79 // pred_region
        _
      $region84: #{autoencoder_forward.1} parent=79 // pred_fallthru
        _
    $region80: #{autoencoder_forward.1} parent=5 // pred_fallthru
      _
    %p4446 = scmp.le.s32.totalorder 2, %s21
    // Predicated region
    $region85: #{autoencoder_forward.1} parent=5 // pred_check
      %p4447 = pneg %p4446
    $region86: #{autoencoder_forward.1} parent=5 // pred_check_branch
      %4449 = sbr.rel (%p4447) target = $region88
    $region87: #{autoencoder_forward.1} parent=5 // pred_region
      %s4450 = ssub.s32 %s21, 2
      // Predicated region
      $region89: #{autoencoder_forward.1} parent=87 // pred_check
        %p4451 = pneg %p370
      $region90: #{autoencoder_forward.1} parent=87 // pred_check_branch
        %4453 = sbr.rel (%p4451) target = $region92
      $region91: #{autoencoder_forward.1} parent=87 // pred_region
        %p4454 = scmp.lt.s32.totalorder %s27, 1
        %s4455 = scalar_select %p4454, %s27, 1
        %s4456 = smul.addr %s4455, 8
        %s4457 = scalar_lea.vmem %s15, %s4456
      $region92: #{autoencoder_forward.1} parent=87 // pred_fallthru
        _
    $region88: #{autoencoder_forward.1} parent=5 // pred_fallthru
      _
  $region6: #{autoencoder_forward.1} parent=0 // loop_footer
    %s25 = sadd.s32 1, %s21
  $region7: #{autoencoder_forward.1} parent=0 // loop_footer_branch
    %20 = sbr.rel target = $region3
  $region8: #{autoencoder_forward.1} parent=0 // loop_exit
    _

</llo_original>
